<compile_context>
chip_gen: v7x
topology: tpu7x:2x2x1
jax: 0.10.0
libtpu: 0.0.40
codegen_flags: <defaults>
</compile_context>

<pallas_src>
import jax
import jax.numpy as jnp
from jax.experimental import pallas as pl
from jax.experimental.pallas import tpu as pltpu


# ----------------------------------------------------------------------------
# Fused Pallas kernel: conv -> FC -> LSTM cell -> merged policy/value head.
# One grid step == one batch element; all weights resident in VMEM.
# ----------------------------------------------------------------------------
def fused_policy_kernel(patches_ref, w_conv_ref, b_conv_ref,
                        w_fc_ref, b_fc_ref,
                        h0_ref, c0_ref,
                        w_ih_ref, w_hh_ref, b_lstm_ref,
                        w_head_ref, b_head_ref,
                        head_ref, h1_ref, c1_ref):
    hidden = h0_ref.shape[-1]
    conv_ch = w_conv_ref.shape[0]

    # 3x3 conv as one lane-dense transposed matmul on im2col patches:
    #   (conv_ch, 9*C) @ (9*C, H*W) -> (conv_ch, H*W), bf16 operands, f32 acc.
    act = jnp.maximum(
        jnp.dot(w_conv_ref[...], patches_ref[0],
                preferred_element_type=jnp.float32) + b_conv_ref[...],
        0.0)                                                  # (conv_ch, HW) f32

    # FC to HIDDEN.  flat = conv_ch*HW is K-split per conv channel so the
    # (c, h, w)-ordered flatten never needs an in-kernel relayout.
    acc = b_fc_ref[...]                                       # (1, hidden) f32
    for c in range(conv_ch):                                  # unrolled; 32 MXU pushes
        acc = acc + jnp.dot(act[c:c + 1, :].astype(jnp.bfloat16),
                            w_fc_ref[c],
                            preferred_element_type=jnp.float32)
    x_hid = jnp.maximum(acc, 0.0)                             # (1, hidden)

    # LSTM cell (PyTorch LSTMCell gate order i|f|g|o); two dots, no lane concat.
    h0 = h0_ref[0]                                            # (1, hidden)
    c0 = c0_ref[0]
    gates = (jnp.dot(x_hid, w_ih_ref[...], preferred_element_type=jnp.float32)
             + jnp.dot(h0, w_hh_ref[...], preferred_element_type=jnp.float32)
             + b_lstm_ref[...])                               # (1, 4*hidden)
    i_g = jax.nn.sigmoid(gates[:, 0 * hidden:1 * hidden])
    f_g = jax.nn.sigmoid(gates[:, 1 * hidden:2 * hidden])
    g_g = jnp.tanh(gates[:, 2 * hidden:3 * hidden])
    o_g = jax.nn.sigmoid(gates[:, 3 * hidden:4 * hidden])
    c_new = f_g * c0 + i_g * g_g
    h_new = o_g * jnp.tanh(c_new)
    h1_ref[0] = h_new
    c1_ref[0] = c_new

    # Merged policy heads (sorted action-space order) + value column.
    head_ref[0] = (jnp.dot(h_new, w_head_ref[...],
                           preferred_element_type=jnp.float32)
                   + b_head_ref[...])


# ----------------------------------------------------------------------------
# Wrapper: transposed im2col in XLA (tiny, fuses) + one pallas_call.
# ----------------------------------------------------------------------------
def _replicated(shape):
    return pl.BlockSpec(tuple(shape), lambda b: (0,) * len(shape))


def _per_batch(shape):
    return pl.BlockSpec((1,) + tuple(shape[1:]),
                        lambda b: (b,) + (0,) * (len(shape) - 1))


@jax.jit
def pcg_policy_forward(obs_nchw, h0, c0, params):
    B, C, H, W = obs_nchw.shape
    conv_ch, hw, hidden = params["w_fc3"].shape
    n_heads = params["w_head"].shape[1]               # n_logits + 1 (value)

    # im2col, transposed: (B, 9*C, H*W), feature order (kh, kw, c_in), bf16.
    xp = jnp.pad(obs_nchw.astype(jnp.float32), ((0, 0), (0, 0), (1, 1), (1, 1)))
    slabs = [xp[:, :, di:di + H, dj:dj + W]
             for di in range(3) for dj in range(3)]
    patches = (jnp.concatenate(slabs, axis=1)
               .reshape(B, 9 * C, H * W).astype(jnp.bfloat16))

    h0r = h0.reshape(B, 1, hidden)
    c0r = c0.reshape(B, 1, hidden)

    head, h1, c1 = pl.pallas_call(
        fused_policy_kernel,
        grid=(B,),
        in_specs=[
            _per_batch(patches.shape),
            _replicated(params["w_conv_t"].shape),
            _replicated(params["b_conv"].shape),
            _replicated(params["w_fc3"].shape),
            _replicated(params["b_fc"].shape),
            _per_batch(h0r.shape),
            _per_batch(c0r.shape),
            _replicated(params["w_ih"].shape),
            _replicated(params["w_hh"].shape),
            _replicated(params["b_lstm"].shape),
            _replicated(params["w_head"].shape),
            _replicated(params["b_head"].shape),
        ],
        out_specs=(
            _per_batch((B, 1, n_heads)),
            _per_batch((B, 1, hidden)),
            _per_batch((B, 1, hidden)),
        ),
        out_shape=(
            jax.ShapeDtypeStruct((B, 1, n_heads), jnp.float32),
            jax.ShapeDtypeStruct((B, 1, hidden), jnp.float32),
            jax.ShapeDtypeStruct((B, 1, hidden), jnp.float32),
        ),
        input_output_aliases={5: 1, 6: 2},            # h0 -> h1, c0 -> c1
        compiler_params=pltpu.CompilerParams(
            dimension_semantics=("parallel",)),
    )(patches, params["w_conv_t"], params["b_conv"],
      params["w_fc3"], params["b_fc"], h0r, c0r,
      params["w_ih"], params["w_hh"], params["b_lstm"],
      params["w_head"], params["b_head"])

    head = head[:, 0, :]
    logits = head[:, :n_heads - 1]                    # torch.cat(logits, dim=1)
    value = head[:, n_heads - 1]                      # value_function(): (B,)
    return logits, (h1[:, 0, :], c1[:, 0, :]), value


# ----------------------------------------------------------------------------
# Pure-JAX reference (same parameterization, f32 math) for correctness check.
# ----------------------------------------------------------------------------
def reference_forward(obs_nchw, h0, c0, params):
    B, C, H, W = obs_nchw.shape
    conv_ch, hw, hidden = params["w_fc3"].shape
    xp = jnp.pad(obs_nchw.astype(jnp.float32), ((0, 0), (0, 0), (1, 1), (1, 1)))
    slabs = [xp[:, :, di:di + H, dj:dj + W]
             for di in range(3) for dj in range(3)]
    patches = jnp.concatenate(slabs, axis=1).reshape(B, 9 * C, H * W)
    w_conv = params["w_conv_t"].astype(jnp.float32)
    act = jax.nn.relu(jnp.einsum("ok,bks->bos", w_conv, patches)
                      + params["b_conv"][None])
    feat = act.reshape(B, conv_ch * hw)               # (c, h, w) flatten order
    w_fc = params["w_fc3"].astype(jnp.float32).reshape(conv_ch * hw, hidden)
    x_hid = jax.nn.relu(feat @ w_fc + params["b_fc"])
    gates = x_hid @ params["w_ih"] + h0 @ params["w_hh"] + params["b_lstm"]
    i_g = jax.nn.sigmoid(gates[:, 0 * hidden:1 * hidden])
    f_g = jax.nn.sigmoid(gates[:, 1 * hidden:2 * hidden])
    g_g = jnp.tanh(gates[:, 2 * hidden:3 * hidden])
    o_g = jax.nn.sigmoid(gates[:, 3 * hidden:4 * hidden])
    c1 = f_g * c0 + i_g * g_g
    h1 = o_g * jnp.tanh(c1)
    head = h1 @ params["w_head"] + params["b_head"]
    return head[:, :-1], (h1, c1), head[:, -1]


# ----------------------------------------------------------------------------
# Deterministic synthetic parameters (shapes follow the module config); merged /
# pre-reshaped forms are built once, outside the hot path.
# ----------------------------------------------------------------------------
def init_params(key, *, c_in, conv_ch, img, hidden, head_dims):
    ks = jax.random.split(key, 9)
    scale = 0.05
    hw = img * img
    n_logits = int(sum(head_dims))

    # TODO(synk): real-checkpoint import needs: PyTorch Conv2d (out,in,kh,kw) ->
    # (out, kh, kw, in) column order used here; LSTMCell bias = b_ih + b_hh
    # pre-summed; gate chunk order i|f|g|o already matches PyTorch.
    w_conv = scale * jax.random.normal(ks[0], (3, 3, c_in, conv_ch), jnp.float32)
    w_conv_t = (jnp.transpose(w_conv, (3, 0, 1, 2))
                .reshape(conv_ch, 9 * c_in).astype(jnp.bfloat16))
    b_conv = (scale * jax.random.normal(ks[1], (conv_ch,), jnp.float32)
              ).reshape(conv_ch, 1)

    # FC weight rows in (c_out, h, w) flatten order == PyTorch NCHW flatten;
    # reshaped per conv channel for the in-kernel K-split.  bf16 = dominant DMA.
    w_fc = scale * jax.random.normal(ks[2], (conv_ch * hw, hidden), jnp.float32)
    w_fc3 = w_fc.reshape(conv_ch, hw, hidden).astype(jnp.bfloat16)
    b_fc = (scale * jax.random.normal(ks[3], (hidden,), jnp.float32)
            ).reshape(1, hidden)

    w_ih = scale * jax.random.normal(ks[4], (hidden, 4 * hidden), jnp.float32)
    w_hh = scale * jax.random.normal(ks[5], (hidden, 4 * hidden), jnp.float32)
    b_lstm = (scale * jax.random.normal(ks[6], (4 * hidden,), jnp.float32)
              ).reshape(1, 4 * hidden)

    # heads for sorted action space {'build': {'tile': 8}, 'move': {'x': 3, 'y': 3}}
    w_pi = scale * jax.random.normal(ks[7], (hidden, n_logits), jnp.float32)
    w_v = scale * jax.random.normal(ks[8], (hidden, 1), jnp.float32)

    return {
        "w_conv_t": w_conv_t, "b_conv": b_conv,
        "w_fc3": w_fc3, "b_fc": b_fc,
        "w_ih": w_ih, "w_hh": w_hh, "b_lstm": b_lstm,
        "w_head": jnp.concatenate([w_pi, w_v], axis=1),
        "b_head": jnp.zeros((1, n_logits + 1), jnp.float32),
    }


# ----------------------------------------------------------------------------
if __name__ == "__main__":
    B, C, IMG = 2, 4, 16
    HIDDEN = 32
    CONV_CH = 32
    HEAD_DIMS = (8, 3, 3)      # sorted action space: build/tile, move/x, move/y

    key = jax.random.PRNGKey(0)
    k_obs, k_h, k_c, k_par = jax.random.split(key, 4)

    obs = jax.random.normal(k_obs, (B, C, IMG, IMG), dtype=jnp.float32)
    # get_initial_state() is zeros; use a small nonzero state here so the
    # recurrent (w_hh) path is actually exercised by the reference check.
    h0 = 0.1 * jax.random.normal(k_h, (B, HIDDEN), dtype=jnp.float32)
    c0 = 0.1 * jax.random.normal(k_c, (B, HIDDEN), dtype=jnp.float32)
    params = init_params(k_par, c_in=C, conv_ch=CONV_CH, img=IMG,
                         hidden=HIDDEN, head_dims=HEAD_DIMS)

    logits, (h1, c1), value = pcg_policy_forward(obs, h0, c0, params)
    jax.block_until_ready((logits, h1, c1, value))

    assert logits.shape == (B, sum(HEAD_DIMS))
    assert h1.shape == (B, HIDDEN) and c1.shape == (B, HIDDEN)
    assert value.shape == (B,)
    assert bool(jnp.all(jnp.isfinite(logits))) and bool(jnp.all(jnp.isfinite(value)))

    # Pure-JAX reference (f32): catches layout / flatten-order / gate-order bugs.
    r_logits, (r_h1, r_c1), r_value = reference_forward(obs, h0, c0, params)
    for got, want in ((logits, r_logits), (h1, r_h1), (c1, r_c1), (value, r_value)):
        assert bool(jnp.allclose(got, want, rtol=2e-2, atol=2e-2)), (
            "max abs err", float(jnp.max(jnp.abs(got - want))))

    print("KERNEL_OK")
</pallas_src>

<mosaic_0001>
module attributes {stable_mosaic.version = 11 : i64} {
  func.func @fused_policy_kernel(%arg0: i32, %arg1: memref<1x36x256xbf16, #tpu.memory_space<vmem>>, %arg2: memref<32x36xbf16, #tpu.memory_space<vmem>>, %arg3: memref<32x1xf32, #tpu.memory_space<vmem>>, %arg4: memref<32x256x32xbf16, #tpu.memory_space<vmem>>, %arg5: memref<1x32xf32, #tpu.memory_space<vmem>>, %arg6: memref<1x1x32xf32, #tpu.memory_space<vmem>>, %arg7: memref<1x1x32xf32, #tpu.memory_space<vmem>>, %arg8: memref<32x128xf32, #tpu.memory_space<vmem>>, %arg9: memref<32x128xf32, #tpu.memory_space<vmem>>, %arg10: memref<1x128xf32, #tpu.memory_space<vmem>>, %arg11: memref<32x15xf32, #tpu.memory_space<vmem>>, %arg12: memref<1x15xf32, #tpu.memory_space<vmem>>, %arg13: memref<1x1x15xf32, #tpu.memory_space<vmem>>, %arg14: memref<1x1x32xf32, #tpu.memory_space<vmem>>, %arg15: memref<1x1x32xf32, #tpu.memory_space<vmem>>) attributes {dimension_semantics = [#tpu.dimension_semantics<parallel>], iteration_bounds = array<i64: 2>, scalar_prefetch = 0 : i64, scratch_operands = 0 : i64, tpu.core_type = #tpu.core_type<tc>, window_params = [{transform_indices = @transform_0, window_bounds = array<i64: 1, 36, 256>}, {pipeline_mode = #tpu.pipeline_mode<synchronous>, transform_indices = @transform_1, window_bounds = array<i64: 32, 36>}, {pipeline_mode = #tpu.pipeline_mode<synchronous>, transform_indices = @transform_2, window_bounds = array<i64: 32, 1>}, {pipeline_mode = #tpu.pipeline_mode<synchronous>, transform_indices = @transform_3, window_bounds = array<i64: 32, 256, 32>}, {pipeline_mode = #tpu.pipeline_mode<synchronous>, transform_indices = @transform_4, window_bounds = array<i64: 1, 32>}, {transform_indices = @transform_5, window_bounds = array<i64: 1, 1, 32>}, {transform_indices = @transform_6, window_bounds = array<i64: 1, 1, 32>}, {pipeline_mode = #tpu.pipeline_mode<synchronous>, transform_indices = @transform_7, window_bounds = array<i64: 32, 128>}, {pipeline_mode = #tpu.pipeline_mode<synchronous>, transform_indices = @transform_8, window_bounds = array<i64: 32, 128>}, {pipeline_mode = #tpu.pipeline_mode<synchronous>, transform_indices = @transform_9, window_bounds = array<i64: 1, 128>}, {pipeline_mode = #tpu.pipeline_mode<synchronous>, transform_indices = @transform_10, window_bounds = array<i64: 32, 15>}, {pipeline_mode = #tpu.pipeline_mode<synchronous>, transform_indices = @transform_11, window_bounds = array<i64: 1, 15>}, {transform_indices = @transform_12, window_bounds = array<i64: 1, 1, 15>}, {transform_indices = @transform_13, window_bounds = array<i64: 1, 1, 32>}, {transform_indices = @transform_14, window_bounds = array<i64: 1, 1, 32>}]} {
    %c0 = arith.constant 0 : index
    %c0_0 = arith.constant 0 : index
    %0 = vector.load %arg2[%c0, %c0_0] : memref<32x36xbf16, #tpu.memory_space<vmem>>, vector<32x36xbf16>
    %c0_1 = arith.constant 0 : index
    %c0_2 = arith.constant 0 : index
    %c0_3 = arith.constant 0 : index
    %1 = vector.load %arg1[%c0_1, %c0_2, %c0_3] : memref<1x36x256xbf16, #tpu.memory_space<vmem>>, vector<1x36x256xbf16>
    %2 = vector.shape_cast %1 : vector<1x36x256xbf16> to vector<36x256xbf16>
    %cst = arith.constant dense<0.000000e+00> : vector<32x256xf32>
    %3 = tpu.matmul %0, %2, %cst {dimension_numbers = #tpu.dot_dimension_numbers<[1], [0], [0], [1], [0, 0, 1, 1], [], []>} : vector<32x36xbf16>, vector<36x256xbf16>, vector<32x256xf32> -> vector<32x256xf32>
    %c0_4 = arith.constant 0 : index
    %c0_5 = arith.constant 0 : index
    %4 = vector.load %arg3[%c0_4, %c0_5] : memref<32x1xf32, #tpu.memory_space<vmem>>, vector<32x1xf32>
    %5 = vector.broadcast %4 : vector<32x1xf32> to vector<32x256xf32>
    %6 = arith.addf %3, %5 : vector<32x256xf32>
    %cst_6 = arith.constant 0.000000e+00 : f32
    %7 = vector.broadcast %cst_6 : f32 to vector<32x256xf32>
    %8 = arith.maximumf %6, %7 : vector<32x256xf32>
    %c0_7 = arith.constant 0 : index
    %c0_8 = arith.constant 0 : index
    %9 = vector.load %arg5[%c0_7, %c0_8] : memref<1x32xf32, #tpu.memory_space<vmem>>, vector<1x32xf32>
    %10 = vector.extract_strided_slice %8 {offsets = [0, 0], sizes = [1, 256], strides = [1, 1]} : vector<32x256xf32> to vector<1x256xf32>
    %11 = arith.truncf %10 : vector<1x256xf32> to vector<1x256xbf16>
    %c0_9 = arith.constant 0 : index
    %c0_10 = arith.constant 0 : index
    %c0_11 = arith.constant 0 : index
    %12 = vector.load %arg4[%c0_9, %c0_10, %c0_11] : memref<32x256x32xbf16, #tpu.memory_space<vmem>>, vector<1x256x32xbf16>
    %13 = vector.shape_cast %12 : vector<1x256x32xbf16> to vector<256x32xbf16>
    %cst_12 = arith.constant dense<0.000000e+00> : vector<1x32xf32>
    %14 = tpu.matmul %11, %13, %cst_12 {dimension_numbers = #tpu.dot_dimension_numbers<[1], [0], [0], [1], [0, 0, 1, 1], [], []>} : vector<1x256xbf16>, vector<256x32xbf16>, vector<1x32xf32> -> vector<1x32xf32>
    %15 = arith.addf %9, %14 : vector<1x32xf32>
    %16 = vector.extract_strided_slice %8 {offsets = [1, 0], sizes = [1, 256], strides = [1, 1]} : vector<32x256xf32> to vector<1x256xf32>
    %17 = arith.truncf %16 : vector<1x256xf32> to vector<1x256xbf16>
    %c1 = arith.constant 1 : index
    %c0_13 = arith.constant 0 : index
    %c0_14 = arith.constant 0 : index
    %18 = vector.load %arg4[%c1, %c0_13, %c0_14] : memref<32x256x32xbf16, #tpu.memory_space<vmem>>, vector<1x256x32xbf16>
    %19 = vector.shape_cast %18 : vector<1x256x32xbf16> to vector<256x32xbf16>
    %cst_15 = arith.constant dense<0.000000e+00> : vector<1x32xf32>
    %20 = tpu.matmul %17, %19, %cst_15 {dimension_numbers = #tpu.dot_dimension_numbers<[1], [0], [0], [1], [0, 0, 1, 1], [], []>} : vector<1x256xbf16>, vector<256x32xbf16>, vector<1x32xf32> -> vector<1x32xf32>
    %21 = arith.addf %15, %20 : vector<1x32xf32>
    %22 = vector.extract_strided_slice %8 {offsets = [2, 0], sizes = [1, 256], strides = [1, 1]} : vector<32x256xf32> to vector<1x256xf32>
    %23 = arith.truncf %22 : vector<1x256xf32> to vector<1x256xbf16>
    %c2 = arith.constant 2 : index
    %c0_16 = arith.constant 0 : index
    %c0_17 = arith.constant 0 : index
    %24 = vector.load %arg4[%c2, %c0_16, %c0_17] : memref<32x256x32xbf16, #tpu.memory_space<vmem>>, vector<1x256x32xbf16>
    %25 = vector.shape_cast %24 : vector<1x256x32xbf16> to vector<256x32xbf16>
    %cst_18 = arith.constant dense<0.000000e+00> : vector<1x32xf32>
    %26 = tpu.matmul %23, %25, %cst_18 {dimension_numbers = #tpu.dot_dimension_numbers<[1], [0], [0], [1], [0, 0, 1, 1], [], []>} : vector<1x256xbf16>, vector<256x32xbf16>, vector<1x32xf32> -> vector<1x32xf32>
    %27 = arith.addf %21, %26 : vector<1x32xf32>
    %28 = vector.extract_strided_slice %8 {offsets = [3, 0], sizes = [1, 256], strides = [1, 1]} : vector<32x256xf32> to vector<1x256xf32>
    %29 = arith.truncf %28 : vector<1x256xf32> to vector<1x256xbf16>
    %c3 = arith.constant 3 : index
    %c0_19 = arith.constant 0 : index
    %c0_20 = arith.constant 0 : index
    %30 = vector.load %arg4[%c3, %c0_19, %c0_20] : memref<32x256x32xbf16, #tpu.memory_space<vmem>>, vector<1x256x32xbf16>
    %31 = vector.shape_cast %30 : vector<1x256x32xbf16> to vector<256x32xbf16>
    %cst_21 = arith.constant dense<0.000000e+00> : vector<1x32xf32>
    %32 = tpu.matmul %29, %31, %cst_21 {dimension_numbers = #tpu.dot_dimension_numbers<[1], [0], [0], [1], [0, 0, 1, 1], [], []>} : vector<1x256xbf16>, vector<256x32xbf16>, vector<1x32xf32> -> vector<1x32xf32>
    %33 = arith.addf %27, %32 : vector<1x32xf32>
    %34 = vector.extract_strided_slice %8 {offsets = [4, 0], sizes = [1, 256], strides = [1, 1]} : vector<32x256xf32> to vector<1x256xf32>
    %35 = arith.truncf %34 : vector<1x256xf32> to vector<1x256xbf16>
    %c4 = arith.constant 4 : index
    %c0_22 = arith.constant 0 : index
    %c0_23 = arith.constant 0 : index
    %36 = vector.load %arg4[%c4, %c0_22, %c0_23] : memref<32x256x32xbf16, #tpu.memory_space<vmem>>, vector<1x256x32xbf16>
    %37 = vector.shape_cast %36 : vector<1x256x32xbf16> to vector<256x32xbf16>
    %cst_24 = arith.constant dense<0.000000e+00> : vector<1x32xf32>
    %38 = tpu.matmul %35, %37, %cst_24 {dimension_numbers = #tpu.dot_dimension_numbers<[1], [0], [0], [1], [0, 0, 1, 1], [], []>} : vector<1x256xbf16>, vector<256x32xbf16>, vector<1x32xf32> -> vector<1x32xf32>
    %39 = arith.addf %33, %38 : vector<1x32xf32>
    %40 = vector.extract_strided_slice %8 {offsets = [5, 0], sizes = [1, 256], strides = [1, 1]} : vector<32x256xf32> to vector<1x256xf32>
    %41 = arith.truncf %40 : vector<1x256xf32> to vector<1x256xbf16>
    %c5 = arith.constant 5 : index
    %c0_25 = arith.constant 0 : index
    %c0_26 = arith.constant 0 : index
    %42 = vector.load %arg4[%c5, %c0_25, %c0_26] : memref<32x256x32xbf16, #tpu.memory_space<vmem>>, vector<1x256x32xbf16>
    %43 = vector.shape_cast %42 : vector<1x256x32xbf16> to vector<256x32xbf16>
    %cst_27 = arith.constant dense<0.000000e+00> : vector<1x32xf32>
    %44 = tpu.matmul %41, %43, %cst_27 {dimension_numbers = #tpu.dot_dimension_numbers<[1], [0], [0], [1], [0, 0, 1, 1], [], []>} : vector<1x256xbf16>, vector<256x32xbf16>, vector<1x32xf32> -> vector<1x32xf32>
    %45 = arith.addf %39, %44 : vector<1x32xf32>
    %46 = vector.extract_strided_slice %8 {offsets = [6, 0], sizes = [1, 256], strides = [1, 1]} : vector<32x256xf32> to vector<1x256xf32>
    %47 = arith.truncf %46 : vector<1x256xf32> to vector<1x256xbf16>
    %c6 = arith.constant 6 : index
    %c0_28 = arith.constant 0 : index
    %c0_29 = arith.constant 0 : index
    %48 = vector.load %arg4[%c6, %c0_28, %c0_29] : memref<32x256x32xbf16, #tpu.memory_space<vmem>>, vector<1x256x32xbf16>
    %49 = vector.shape_cast %48 : vector<1x256x32xbf16> to vector<256x32xbf16>
    %cst_30 = arith.constant dense<0.000000e+00> : vector<1x32xf32>
    %50 = tpu.matmul %47, %49, %cst_30 {dimension_numbers = #tpu.dot_dimension_numbers<[1], [0], [0], [1], [0, 0, 1, 1], [], []>} : vector<1x256xbf16>, vector<256x32xbf16>, vector<1x32xf32> -> vector<1x32xf32>
    %51 = arith.addf %45, %50 : vector<1x32xf32>
    %52 = vector.extract_strided_slice %8 {offsets = [7, 0], sizes = [1, 256], strides = [1, 1]} : vector<32x256xf32> to vector<1x256xf32>
    %53 = arith.truncf %52 : vector<1x256xf32> to vector<1x256xbf16>
    %c7 = arith.constant 7 : index
    %c0_31 = arith.constant 0 : index
    %c0_32 = arith.constant 0 : index
    %54 = vector.load %arg4[%c7, %c0_31, %c0_32] : memref<32x256x32xbf16, #tpu.memory_space<vmem>>, vector<1x256x32xbf16>
    %55 = vector.shape_cast %54 : vector<1x256x32xbf16> to vector<256x32xbf16>
    %cst_33 = arith.constant dense<0.000000e+00> : vector<1x32xf32>
    %56 = tpu.matmul %53, %55, %cst_33 {dimension_numbers = #tpu.dot_dimension_numbers<[1], [0], [0], [1], [0, 0, 1, 1], [], []>} : vector<1x256xbf16>, vector<256x32xbf16>, vector<1x32xf32> -> vector<1x32xf32>
    %57 = arith.addf %51, %56 : vector<1x32xf32>
    %58 = vector.extract_strided_slice %8 {offsets = [8, 0], sizes = [1, 256], strides = [1, 1]} : vector<32x256xf32> to vector<1x256xf32>
    %59 = arith.truncf %58 : vector<1x256xf32> to vector<1x256xbf16>
    %c8 = arith.constant 8 : index
    %c0_34 = arith.constant 0 : index
    %c0_35 = arith.constant 0 : index
    %60 = vector.load %arg4[%c8, %c0_34, %c0_35] : memref<32x256x32xbf16, #tpu.memory_space<vmem>>, vector<1x256x32xbf16>
    %61 = vector.shape_cast %60 : vector<1x256x32xbf16> to vector<256x32xbf16>
    %cst_36 = arith.constant dense<0.000000e+00> : vector<1x32xf32>
    %62 = tpu.matmul %59, %61, %cst_36 {dimension_numbers = #tpu.dot_dimension_numbers<[1], [0], [0], [1], [0, 0, 1, 1], [], []>} : vector<1x256xbf16>, vector<256x32xbf16>, vector<1x32xf32> -> vector<1x32xf32>
    %63 = arith.addf %57, %62 : vector<1x32xf32>
    %64 = vector.extract_strided_slice %8 {offsets = [9, 0], sizes = [1, 256], strides = [1, 1]} : vector<32x256xf32> to vector<1x256xf32>
    %65 = arith.truncf %64 : vector<1x256xf32> to vector<1x256xbf16>
    %c9 = arith.constant 9 : index
    %c0_37 = arith.constant 0 : index
    %c0_38 = arith.constant 0 : index
    %66 = vector.load %arg4[%c9, %c0_37, %c0_38] : memref<32x256x32xbf16, #tpu.memory_space<vmem>>, vector<1x256x32xbf16>
    %67 = vector.shape_cast %66 : vector<1x256x32xbf16> to vector<256x32xbf16>
    %cst_39 = arith.constant dense<0.000000e+00> : vector<1x32xf32>
    %68 = tpu.matmul %65, %67, %cst_39 {dimension_numbers = #tpu.dot_dimension_numbers<[1], [0], [0], [1], [0, 0, 1, 1], [], []>} : vector<1x256xbf16>, vector<256x32xbf16>, vector<1x32xf32> -> vector<1x32xf32>
    %69 = arith.addf %63, %68 : vector<1x32xf32>
    %70 = vector.extract_strided_slice %8 {offsets = [10, 0], sizes = [1, 256], strides = [1, 1]} : vector<32x256xf32> to vector<1x256xf32>
    %71 = arith.truncf %70 : vector<1x256xf32> to vector<1x256xbf16>
    %c10 = arith.constant 10 : index
    %c0_40 = arith.constant 0 : index
    %c0_41 = arith.constant 0 : index
    %72 = vector.load %arg4[%c10, %c0_40, %c0_41] : memref<32x256x32xbf16, #tpu.memory_space<vmem>>, vector<1x256x32xbf16>
    %73 = vector.shape_cast %72 : vector<1x256x32xbf16> to vector<256x32xbf16>
    %cst_42 = arith.constant dense<0.000000e+00> : vector<1x32xf32>
    %74 = tpu.matmul %71, %73, %cst_42 {dimension_numbers = #tpu.dot_dimension_numbers<[1], [0], [0], [1], [0, 0, 1, 1], [], []>} : vector<1x256xbf16>, vector<256x32xbf16>, vector<1x32xf32> -> vector<1x32xf32>
    %75 = arith.addf %69, %74 : vector<1x32xf32>
    %76 = vector.extract_strided_slice %8 {offsets = [11, 0], sizes = [1, 256], strides = [1, 1]} : vector<32x256xf32> to vector<1x256xf32>
    %77 = arith.truncf %76 : vector<1x256xf32> to vector<1x256xbf16>
    %c11 = arith.constant 11 : index
    %c0_43 = arith.constant 0 : index
    %c0_44 = arith.constant 0 : index
    %78 = vector.load %arg4[%c11, %c0_43, %c0_44] : memref<32x256x32xbf16, #tpu.memory_space<vmem>>, vector<1x256x32xbf16>
    %79 = vector.shape_cast %78 : vector<1x256x32xbf16> to vector<256x32xbf16>
    %cst_45 = arith.constant dense<0.000000e+00> : vector<1x32xf32>
    %80 = tpu.matmul %77, %79, %cst_45 {dimension_numbers = #tpu.dot_dimension_numbers<[1], [0], [0], [1], [0, 0, 1, 1], [], []>} : vector<1x256xbf16>, vector<256x32xbf16>, vector<1x32xf32> -> vector<1x32xf32>
    %81 = arith.addf %75, %80 : vector<1x32xf32>
    %82 = vector.extract_strided_slice %8 {offsets = [12, 0], sizes = [1, 256], strides = [1, 1]} : vector<32x256xf32> to vector<1x256xf32>
    %83 = arith.truncf %82 : vector<1x256xf32> to vector<1x256xbf16>
    %c12 = arith.constant 12 : index
    %c0_46 = arith.constant 0 : index
    %c0_47 = arith.constant 0 : index
    %84 = vector.load %arg4[%c12, %c0_46, %c0_47] : memref<32x256x32xbf16, #tpu.memory_space<vmem>>, vector<1x256x32xbf16>
    %85 = vector.shape_cast %84 : vector<1x256x32xbf16> to vector<256x32xbf16>
    %cst_48 = arith.constant dense<0.000000e+00> : vector<1x32xf32>
    %86 = tpu.matmul %83, %85, %cst_48 {dimension_numbers = #tpu.dot_dimension_numbers<[1], [0], [0], [1], [0, 0, 1, 1], [], []>} : vector<1x256xbf16>, vector<256x32xbf16>, vector<1x32xf32> -> vector<1x32xf32>
    %87 = arith.addf %81, %86 : vector<1x32xf32>
    %88 = vector.extract_strided_slice %8 {offsets = [13, 0], sizes = [1, 256], strides = [1, 1]} : vector<32x256xf32> to vector<1x256xf32>
    %89 = arith.truncf %88 : vector<1x256xf32> to vector<1x256xbf16>
    %c13 = arith.constant 13 : index
    %c0_49 = arith.constant 0 : index
    %c0_50 = arith.constant 0 : index
    %90 = vector.load %arg4[%c13, %c0_49, %c0_50] : memref<32x256x32xbf16, #tpu.memory_space<vmem>>, vector<1x256x32xbf16>
    %91 = vector.shape_cast %90 : vector<1x256x32xbf16> to vector<256x32xbf16>
    %cst_51 = arith.constant dense<0.000000e+00> : vector<1x32xf32>
    %92 = tpu.matmul %89, %91, %cst_51 {dimension_numbers = #tpu.dot_dimension_numbers<[1], [0], [0], [1], [0, 0, 1, 1], [], []>} : vector<1x256xbf16>, vector<256x32xbf16>, vector<1x32xf32> -> vector<1x32xf32>
    %93 = arith.addf %87, %92 : vector<1x32xf32>
    %94 = vector.extract_strided_slice %8 {offsets = [14, 0], sizes = [1, 256], strides = [1, 1]} : vector<32x256xf32> to vector<1x256xf32>
    %95 = arith.truncf %94 : vector<1x256xf32> to vector<1x256xbf16>
    %c14 = arith.constant 14 : index
    %c0_52 = arith.constant 0 : index
    %c0_53 = arith.constant 0 : index
    %96 = vector.load %arg4[%c14, %c0_52, %c0_53] : memref<32x256x32xbf16, #tpu.memory_space<vmem>>, vector<1x256x32xbf16>
    %97 = vector.shape_cast %96 : vector<1x256x32xbf16> to vector<256x32xbf16>
    %cst_54 = arith.constant dense<0.000000e+00> : vector<1x32xf32>
    %98 = tpu.matmul %95, %97, %cst_54 {dimension_numbers = #tpu.dot_dimension_numbers<[1], [0], [0], [1], [0, 0, 1, 1], [], []>} : vector<1x256xbf16>, vector<256x32xbf16>, vector<1x32xf32> -> vector<1x32xf32>
    %99 = arith.addf %93, %98 : vector<1x32xf32>
    %100 = vector.extract_strided_slice %8 {offsets = [15, 0], sizes = [1, 256], strides = [1, 1]} : vector<32x256xf32> to vector<1x256xf32>
    %101 = arith.truncf %100 : vector<1x256xf32> to vector<1x256xbf16>
    %c15 = arith.constant 15 : index
    %c0_55 = arith.constant 0 : index
    %c0_56 = arith.constant 0 : index
    %102 = vector.load %arg4[%c15, %c0_55, %c0_56] : memref<32x256x32xbf16, #tpu.memory_space<vmem>>, vector<1x256x32xbf16>
    %103 = vector.shape_cast %102 : vector<1x256x32xbf16> to vector<256x32xbf16>
    %cst_57 = arith.constant dense<0.000000e+00> : vector<1x32xf32>
    %104 = tpu.matmul %101, %103, %cst_57 {dimension_numbers = #tpu.dot_dimension_numbers<[1], [0], [0], [1], [0, 0, 1, 1], [], []>} : vector<1x256xbf16>, vector<256x32xbf16>, vector<1x32xf32> -> vector<1x32xf32>
    %105 = arith.addf %99, %104 : vector<1x32xf32>
    %106 = vector.extract_strided_slice %8 {offsets = [16, 0], sizes = [1, 256], strides = [1, 1]} : vector<32x256xf32> to vector<1x256xf32>
    %107 = arith.truncf %106 : vector<1x256xf32> to vector<1x256xbf16>
    %c16 = arith.constant 16 : index
    %c0_58 = arith.constant 0 : index
    %c0_59 = arith.constant 0 : index
    %108 = vector.load %arg4[%c16, %c0_58, %c0_59] : memref<32x256x32xbf16, #tpu.memory_space<vmem>>, vector<1x256x32xbf16>
    %109 = vector.shape_cast %108 : vector<1x256x32xbf16> to vector<256x32xbf16>
    %cst_60 = arith.constant dense<0.000000e+00> : vector<1x32xf32>
    %110 = tpu.matmul %107, %109, %cst_60 {dimension_numbers = #tpu.dot_dimension_numbers<[1], [0], [0], [1], [0, 0, 1, 1], [], []>} : vector<1x256xbf16>, vector<256x32xbf16>, vector<1x32xf32> -> vector<1x32xf32>
    %111 = arith.addf %105, %110 : vector<1x32xf32>
    %112 = vector.extract_strided_slice %8 {offsets = [17, 0], sizes = [1, 256], strides = [1, 1]} : vector<32x256xf32> to vector<1x256xf32>
    %113 = arith.truncf %112 : vector<1x256xf32> to vector<1x256xbf16>
    %c17 = arith.constant 17 : index
    %c0_61 = arith.constant 0 : index
    %c0_62 = arith.constant 0 : index
    %114 = vector.load %arg4[%c17, %c0_61, %c0_62] : memref<32x256x32xbf16, #tpu.memory_space<vmem>>, vector<1x256x32xbf16>
    %115 = vector.shape_cast %114 : vector<1x256x32xbf16> to vector<256x32xbf16>
    %cst_63 = arith.constant dense<0.000000e+00> : vector<1x32xf32>
    %116 = tpu.matmul %113, %115, %cst_63 {dimension_numbers = #tpu.dot_dimension_numbers<[1], [0], [0], [1], [0, 0, 1, 1], [], []>} : vector<1x256xbf16>, vector<256x32xbf16>, vector<1x32xf32> -> vector<1x32xf32>
    %117 = arith.addf %111, %116 : vector<1x32xf32>
    %118 = vector.extract_strided_slice %8 {offsets = [18, 0], sizes = [1, 256], strides = [1, 1]} : vector<32x256xf32> to vector<1x256xf32>
    %119 = arith.truncf %118 : vector<1x256xf32> to vector<1x256xbf16>
    %c18 = arith.constant 18 : index
    %c0_64 = arith.constant 0 : index
    %c0_65 = arith.constant 0 : index
    %120 = vector.load %arg4[%c18, %c0_64, %c0_65] : memref<32x256x32xbf16, #tpu.memory_space<vmem>>, vector<1x256x32xbf16>
    %121 = vector.shape_cast %120 : vector<1x256x32xbf16> to vector<256x32xbf16>
    %cst_66 = arith.constant dense<0.000000e+00> : vector<1x32xf32>
    %122 = tpu.matmul %119, %121, %cst_66 {dimension_numbers = #tpu.dot_dimension_numbers<[1], [0], [0], [1], [0, 0, 1, 1], [], []>} : vector<1x256xbf16>, vector<256x32xbf16>, vector<1x32xf32> -> vector<1x32xf32>
    %123 = arith.addf %117, %122 : vector<1x32xf32>
    %124 = vector.extract_strided_slice %8 {offsets = [19, 0], sizes = [1, 256], strides = [1, 1]} : vector<32x256xf32> to vector<1x256xf32>
    %125 = arith.truncf %124 : vector<1x256xf32> to vector<1x256xbf16>
    %c19 = arith.constant 19 : index
    %c0_67 = arith.constant 0 : index
    %c0_68 = arith.constant 0 : index
    %126 = vector.load %arg4[%c19, %c0_67, %c0_68] : memref<32x256x32xbf16, #tpu.memory_space<vmem>>, vector<1x256x32xbf16>
    %127 = vector.shape_cast %126 : vector<1x256x32xbf16> to vector<256x32xbf16>
    %cst_69 = arith.constant dense<0.000000e+00> : vector<1x32xf32>
    %128 = tpu.matmul %125, %127, %cst_69 {dimension_numbers = #tpu.dot_dimension_numbers<[1], [0], [0], [1], [0, 0, 1, 1], [], []>} : vector<1x256xbf16>, vector<256x32xbf16>, vector<1x32xf32> -> vector<1x32xf32>
    %129 = arith.addf %123, %128 : vector<1x32xf32>
    %130 = vector.extract_strided_slice %8 {offsets = [20, 0], sizes = [1, 256], strides = [1, 1]} : vector<32x256xf32> to vector<1x256xf32>
    %131 = arith.truncf %130 : vector<1x256xf32> to vector<1x256xbf16>
    %c20 = arith.constant 20 : index
    %c0_70 = arith.constant 0 : index
    %c0_71 = arith.constant 0 : index
    %132 = vector.load %arg4[%c20, %c0_70, %c0_71] : memref<32x256x32xbf16, #tpu.memory_space<vmem>>, vector<1x256x32xbf16>
    %133 = vector.shape_cast %132 : vector<1x256x32xbf16> to vector<256x32xbf16>
    %cst_72 = arith.constant dense<0.000000e+00> : vector<1x32xf32>
    %134 = tpu.matmul %131, %133, %cst_72 {dimension_numbers = #tpu.dot_dimension_numbers<[1], [0], [0], [1], [0, 0, 1, 1], [], []>} : vector<1x256xbf16>, vector<256x32xbf16>, vector<1x32xf32> -> vector<1x32xf32>
    %135 = arith.addf %129, %134 : vector<1x32xf32>
    %136 = vector.extract_strided_slice %8 {offsets = [21, 0], sizes = [1, 256], strides = [1, 1]} : vector<32x256xf32> to vector<1x256xf32>
    %137 = arith.truncf %136 : vector<1x256xf32> to vector<1x256xbf16>
    %c21 = arith.constant 21 : index
    %c0_73 = arith.constant 0 : index
    %c0_74 = arith.constant 0 : index
    %138 = vector.load %arg4[%c21, %c0_73, %c0_74] : memref<32x256x32xbf16, #tpu.memory_space<vmem>>, vector<1x256x32xbf16>
    %139 = vector.shape_cast %138 : vector<1x256x32xbf16> to vector<256x32xbf16>
    %cst_75 = arith.constant dense<0.000000e+00> : vector<1x32xf32>
    %140 = tpu.matmul %137, %139, %cst_75 {dimension_numbers = #tpu.dot_dimension_numbers<[1], [0], [0], [1], [0, 0, 1, 1], [], []>} : vector<1x256xbf16>, vector<256x32xbf16>, vector<1x32xf32> -> vector<1x32xf32>
    %141 = arith.addf %135, %140 : vector<1x32xf32>
    %142 = vector.extract_strided_slice %8 {offsets = [22, 0], sizes = [1, 256], strides = [1, 1]} : vector<32x256xf32> to vector<1x256xf32>
    %143 = arith.truncf %142 : vector<1x256xf32> to vector<1x256xbf16>
    %c22 = arith.constant 22 : index
    %c0_76 = arith.constant 0 : index
    %c0_77 = arith.constant 0 : index
    %144 = vector.load %arg4[%c22, %c0_76, %c0_77] : memref<32x256x32xbf16, #tpu.memory_space<vmem>>, vector<1x256x32xbf16>
    %145 = vector.shape_cast %144 : vector<1x256x32xbf16> to vector<256x32xbf16>
    %cst_78 = arith.constant dense<0.000000e+00> : vector<1x32xf32>
    %146 = tpu.matmul %143, %145, %cst_78 {dimension_numbers = #tpu.dot_dimension_numbers<[1], [0], [0], [1], [0, 0, 1, 1], [], []>} : vector<1x256xbf16>, vector<256x32xbf16>, vector<1x32xf32> -> vector<1x32xf32>
    %147 = arith.addf %141, %146 : vector<1x32xf32>
    %148 = vector.extract_strided_slice %8 {offsets = [23, 0], sizes = [1, 256], strides = [1, 1]} : vector<32x256xf32> to vector<1x256xf32>
    %149 = arith.truncf %148 : vector<1x256xf32> to vector<1x256xbf16>
    %c23 = arith.constant 23 : index
    %c0_79 = arith.constant 0 : index
    %c0_80 = arith.constant 0 : index
    %150 = vector.load %arg4[%c23, %c0_79, %c0_80] : memref<32x256x32xbf16, #tpu.memory_space<vmem>>, vector<1x256x32xbf16>
    %151 = vector.shape_cast %150 : vector<1x256x32xbf16> to vector<256x32xbf16>
    %cst_81 = arith.constant dense<0.000000e+00> : vector<1x32xf32>
    %152 = tpu.matmul %149, %151, %cst_81 {dimension_numbers = #tpu.dot_dimension_numbers<[1], [0], [0], [1], [0, 0, 1, 1], [], []>} : vector<1x256xbf16>, vector<256x32xbf16>, vector<1x32xf32> -> vector<1x32xf32>
    %153 = arith.addf %147, %152 : vector<1x32xf32>
    %154 = vector.extract_strided_slice %8 {offsets = [24, 0], sizes = [1, 256], strides = [1, 1]} : vector<32x256xf32> to vector<1x256xf32>
    %155 = arith.truncf %154 : vector<1x256xf32> to vector<1x256xbf16>
    %c24 = arith.constant 24 : index
    %c0_82 = arith.constant 0 : index
    %c0_83 = arith.constant 0 : index
    %156 = vector.load %arg4[%c24, %c0_82, %c0_83] : memref<32x256x32xbf16, #tpu.memory_space<vmem>>, vector<1x256x32xbf16>
    %157 = vector.shape_cast %156 : vector<1x256x32xbf16> to vector<256x32xbf16>
    %cst_84 = arith.constant dense<0.000000e+00> : vector<1x32xf32>
    %158 = tpu.matmul %155, %157, %cst_84 {dimension_numbers = #tpu.dot_dimension_numbers<[1], [0], [0], [1], [0, 0, 1, 1], [], []>} : vector<1x256xbf16>, vector<256x32xbf16>, vector<1x32xf32> -> vector<1x32xf32>
    %159 = arith.addf %153, %158 : vector<1x32xf32>
    %160 = vector.extract_strided_slice %8 {offsets = [25, 0], sizes = [1, 256], strides = [1, 1]} : vector<32x256xf32> to vector<1x256xf32>
    %161 = arith.truncf %160 : vector<1x256xf32> to vector<1x256xbf16>
    %c25 = arith.constant 25 : index
    %c0_85 = arith.constant 0 : index
    %c0_86 = arith.constant 0 : index
    %162 = vector.load %arg4[%c25, %c0_85, %c0_86] : memref<32x256x32xbf16, #tpu.memory_space<vmem>>, vector<1x256x32xbf16>
    %163 = vector.shape_cast %162 : vector<1x256x32xbf16> to vector<256x32xbf16>
    %cst_87 = arith.constant dense<0.000000e+00> : vector<1x32xf32>
    %164 = tpu.matmul %161, %163, %cst_87 {dimension_numbers = #tpu.dot_dimension_numbers<[1], [0], [0], [1], [0, 0, 1, 1], [], []>} : vector<1x256xbf16>, vector<256x32xbf16>, vector<1x32xf32> -> vector<1x32xf32>
    %165 = arith.addf %159, %164 : vector<1x32xf32>
    %166 = vector.extract_strided_slice %8 {offsets = [26, 0], sizes = [1, 256], strides = [1, 1]} : vector<32x256xf32> to vector<1x256xf32>
    %167 = arith.truncf %166 : vector<1x256xf32> to vector<1x256xbf16>
    %c26 = arith.constant 26 : index
    %c0_88 = arith.constant 0 : index
    %c0_89 = arith.constant 0 : index
    %168 = vector.load %arg4[%c26, %c0_88, %c0_89] : memref<32x256x32xbf16, #tpu.memory_space<vmem>>, vector<1x256x32xbf16>
    %169 = vector.shape_cast %168 : vector<1x256x32xbf16> to vector<256x32xbf16>
    %cst_90 = arith.constant dense<0.000000e+00> : vector<1x32xf32>
    %170 = tpu.matmul %167, %169, %cst_90 {dimension_numbers = #tpu.dot_dimension_numbers<[1], [0], [0], [1], [0, 0, 1, 1], [], []>} : vector<1x256xbf16>, vector<256x32xbf16>, vector<1x32xf32> -> vector<1x32xf32>
    %171 = arith.addf %165, %170 : vector<1x32xf32>
    %172 = vector.extract_strided_slice %8 {offsets = [27, 0], sizes = [1, 256], strides = [1, 1]} : vector<32x256xf32> to vector<1x256xf32>
    %173 = arith.truncf %172 : vector<1x256xf32> to vector<1x256xbf16>
    %c27 = arith.constant 27 : index
    %c0_91 = arith.constant 0 : index
    %c0_92 = arith.constant 0 : index
    %174 = vector.load %arg4[%c27, %c0_91, %c0_92] : memref<32x256x32xbf16, #tpu.memory_space<vmem>>, vector<1x256x32xbf16>
    %175 = vector.shape_cast %174 : vector<1x256x32xbf16> to vector<256x32xbf16>
    %cst_93 = arith.constant dense<0.000000e+00> : vector<1x32xf32>
    %176 = tpu.matmul %173, %175, %cst_93 {dimension_numbers = #tpu.dot_dimension_numbers<[1], [0], [0], [1], [0, 0, 1, 1], [], []>} : vector<1x256xbf16>, vector<256x32xbf16>, vector<1x32xf32> -> vector<1x32xf32>
    %177 = arith.addf %171, %176 : vector<1x32xf32>
    %178 = vector.extract_strided_slice %8 {offsets = [28, 0], sizes = [1, 256], strides = [1, 1]} : vector<32x256xf32> to vector<1x256xf32>
    %179 = arith.truncf %178 : vector<1x256xf32> to vector<1x256xbf16>
    %c28 = arith.constant 28 : index
    %c0_94 = arith.constant 0 : index
    %c0_95 = arith.constant 0 : index
    %180 = vector.load %arg4[%c28, %c0_94, %c0_95] : memref<32x256x32xbf16, #tpu.memory_space<vmem>>, vector<1x256x32xbf16>
    %181 = vector.shape_cast %180 : vector<1x256x32xbf16> to vector<256x32xbf16>
    %cst_96 = arith.constant dense<0.000000e+00> : vector<1x32xf32>
    %182 = tpu.matmul %179, %181, %cst_96 {dimension_numbers = #tpu.dot_dimension_numbers<[1], [0], [0], [1], [0, 0, 1, 1], [], []>} : vector<1x256xbf16>, vector<256x32xbf16>, vector<1x32xf32> -> vector<1x32xf32>
    %183 = arith.addf %177, %182 : vector<1x32xf32>
    %184 = vector.extract_strided_slice %8 {offsets = [29, 0], sizes = [1, 256], strides = [1, 1]} : vector<32x256xf32> to vector<1x256xf32>
    %185 = arith.truncf %184 : vector<1x256xf32> to vector<1x256xbf16>
    %c29 = arith.constant 29 : index
    %c0_97 = arith.constant 0 : index
    %c0_98 = arith.constant 0 : index
    %186 = vector.load %arg4[%c29, %c0_97, %c0_98] : memref<32x256x32xbf16, #tpu.memory_space<vmem>>, vector<1x256x32xbf16>
    %187 = vector.shape_cast %186 : vector<1x256x32xbf16> to vector<256x32xbf16>
    %cst_99 = arith.constant dense<0.000000e+00> : vector<1x32xf32>
    %188 = tpu.matmul %185, %187, %cst_99 {dimension_numbers = #tpu.dot_dimension_numbers<[1], [0], [0], [1], [0, 0, 1, 1], [], []>} : vector<1x256xbf16>, vector<256x32xbf16>, vector<1x32xf32> -> vector<1x32xf32>
    %189 = arith.addf %183, %188 : vector<1x32xf32>
    %190 = vector.extract_strided_slice %8 {offsets = [30, 0], sizes = [1, 256], strides = [1, 1]} : vector<32x256xf32> to vector<1x256xf32>
    %191 = arith.truncf %190 : vector<1x256xf32> to vector<1x256xbf16>
    %c30 = arith.constant 30 : index
    %c0_100 = arith.constant 0 : index
    %c0_101 = arith.constant 0 : index
    %192 = vector.load %arg4[%c30, %c0_100, %c0_101] : memref<32x256x32xbf16, #tpu.memory_space<vmem>>, vector<1x256x32xbf16>
    %193 = vector.shape_cast %192 : vector<1x256x32xbf16> to vector<256x32xbf16>
    %cst_102 = arith.constant dense<0.000000e+00> : vector<1x32xf32>
    %194 = tpu.matmul %191, %193, %cst_102 {dimension_numbers = #tpu.dot_dimension_numbers<[1], [0], [0], [1], [0, 0, 1, 1], [], []>} : vector<1x256xbf16>, vector<256x32xbf16>, vector<1x32xf32> -> vector<1x32xf32>
    %195 = arith.addf %189, %194 : vector<1x32xf32>
    %196 = vector.extract_strided_slice %8 {offsets = [31, 0], sizes = [1, 256], strides = [1, 1]} : vector<32x256xf32> to vector<1x256xf32>
    %197 = arith.truncf %196 : vector<1x256xf32> to vector<1x256xbf16>
    %c31 = arith.constant 31 : index
    %c0_103 = arith.constant 0 : index
    %c0_104 = arith.constant 0 : index
    %198 = vector.load %arg4[%c31, %c0_103, %c0_104] : memref<32x256x32xbf16, #tpu.memory_space<vmem>>, vector<1x256x32xbf16>
    %199 = vector.shape_cast %198 : vector<1x256x32xbf16> to vector<256x32xbf16>
    %cst_105 = arith.constant dense<0.000000e+00> : vector<1x32xf32>
    %200 = tpu.matmul %197, %199, %cst_105 {dimension_numbers = #tpu.dot_dimension_numbers<[1], [0], [0], [1], [0, 0, 1, 1], [], []>} : vector<1x256xbf16>, vector<256x32xbf16>, vector<1x32xf32> -> vector<1x32xf32>
    %201 = arith.addf %195, %200 : vector<1x32xf32>
    %cst_106 = arith.constant 0.000000e+00 : f32
    %202 = vector.broadcast %cst_106 : f32 to vector<1x32xf32>
    %203 = arith.maximumf %201, %202 : vector<1x32xf32>
    %c0_107 = arith.constant 0 : index
    %c0_108 = arith.constant 0 : index
    %c0_109 = arith.constant 0 : index
    %204 = vector.load %arg6[%c0_107, %c0_108, %c0_109] : memref<1x1x32xf32, #tpu.memory_space<vmem>>, vector<1x1x32xf32>
    %205 = vector.shape_cast %204 : vector<1x1x32xf32> to vector<1x32xf32>
    %c0_110 = arith.constant 0 : index
    %c0_111 = arith.constant 0 : index
    %c0_112 = arith.constant 0 : index
    %206 = vector.load %arg7[%c0_110, %c0_111, %c0_112] : memref<1x1x32xf32, #tpu.memory_space<vmem>>, vector<1x1x32xf32>
    %207 = vector.shape_cast %206 : vector<1x1x32xf32> to vector<1x32xf32>
    %c0_113 = arith.constant 0 : index
    %c0_114 = arith.constant 0 : index
    %208 = vector.load %arg8[%c0_113, %c0_114] : memref<32x128xf32, #tpu.memory_space<vmem>>, vector<32x128xf32>
    %cst_115 = arith.constant dense<0.000000e+00> : vector<1x128xf32>
    %209 = tpu.matmul %203, %208, %cst_115 {dimension_numbers = #tpu.dot_dimension_numbers<[1], [0], [0], [1], [0, 0, 1, 1], [], []>} : vector<1x32xf32>, vector<32x128xf32>, vector<1x128xf32> -> vector<1x128xf32>
    %c0_116 = arith.constant 0 : index
    %c0_117 = arith.constant 0 : index
    %210 = vector.load %arg9[%c0_116, %c0_117] : memref<32x128xf32, #tpu.memory_space<vmem>>, vector<32x128xf32>
    %cst_118 = arith.constant dense<0.000000e+00> : vector<1x128xf32>
    %211 = tpu.matmul %205, %210, %cst_118 {dimension_numbers = #tpu.dot_dimension_numbers<[1], [0], [0], [1], [0, 0, 1, 1], [], []>} : vector<1x32xf32>, vector<32x128xf32>, vector<1x128xf32> -> vector<1x128xf32>
    %212 = arith.addf %209, %211 : vector<1x128xf32>
    %c0_119 = arith.constant 0 : index
    %c0_120 = arith.constant 0 : index
    %213 = vector.load %arg10[%c0_119, %c0_120] : memref<1x128xf32, #tpu.memory_space<vmem>>, vector<1x128xf32>
    %214 = arith.addf %212, %213 : vector<1x128xf32>
    %215 = vector.extract_strided_slice %214 {offsets = [0, 0], sizes = [1, 32], strides = [1, 1]} : vector<1x128xf32> to vector<1x32xf32>
    %216 = arith.negf %215 : vector<1x32xf32>
    %217 = math.exp %216 : vector<1x32xf32>
    %cst_121 = arith.constant 1.000000e+00 : f32
    %218 = vector.broadcast %cst_121 : f32 to vector<1x32xf32>
    %219 = arith.addf %218, %217 : vector<1x32xf32>
    %220 = arith.divf %218, %219 : vector<1x32xf32>
    %221 = vector.extract_strided_slice %214 {offsets = [0, 32], sizes = [1, 32], strides = [1, 1]} : vector<1x128xf32> to vector<1x32xf32>
    %222 = arith.negf %221 : vector<1x32xf32>
    %223 = math.exp %222 : vector<1x32xf32>
    %cst_122 = arith.constant 1.000000e+00 : f32
    %224 = vector.broadcast %cst_122 : f32 to vector<1x32xf32>
    %225 = arith.addf %224, %223 : vector<1x32xf32>
    %226 = arith.divf %224, %225 : vector<1x32xf32>
    %227 = vector.extract_strided_slice %214 {offsets = [0, 64], sizes = [1, 32], strides = [1, 1]} : vector<1x128xf32> to vector<1x32xf32>
    %228 = math.tanh %227 : vector<1x32xf32>
    %229 = vector.extract_strided_slice %214 {offsets = [0, 96], sizes = [1, 32], strides = [1, 1]} : vector<1x128xf32> to vector<1x32xf32>
    %230 = arith.negf %229 : vector<1x32xf32>
    %231 = math.exp %230 : vector<1x32xf32>
    %cst_123 = arith.constant 1.000000e+00 : f32
    %232 = vector.broadcast %cst_123 : f32 to vector<1x32xf32>
    %233 = arith.addf %232, %231 : vector<1x32xf32>
    %234 = arith.divf %232, %233 : vector<1x32xf32>
    %235 = arith.mulf %226, %207 : vector<1x32xf32>
    %236 = arith.mulf %220, %228 : vector<1x32xf32>
    %237 = arith.addf %235, %236 : vector<1x32xf32>
    %238 = math.tanh %237 : vector<1x32xf32>
    %239 = arith.mulf %234, %238 : vector<1x32xf32>
    %c0_124 = arith.constant 0 : index
    %c0_125 = arith.constant 0 : index
    %c0_126 = arith.constant 0 : index
    %240 = vector.load %arg14[%c0_124, %c0_125, %c0_126] : memref<1x1x32xf32, #tpu.memory_space<vmem>>, vector<1x1x32xf32>
    %241 = vector.shape_cast %240 : vector<1x1x32xf32> to vector<1x32xf32>
    %242 = vector.shape_cast %239 : vector<1x32xf32> to vector<1x1x32xf32>
    tpu.vector_store %arg14[%c0_124, %c0_125, %c0_126], %242 {strides = array<i32>} : memref<1x1x32xf32, #tpu.memory_space<vmem>>, vector<1x1x32xf32>,
    %c0_127 = arith.constant 0 : index
    %c0_128 = arith.constant 0 : index
    %c0_129 = arith.constant 0 : index
    %243 = vector.load %arg15[%c0_127, %c0_128, %c0_129] : memref<1x1x32xf32, #tpu.memory_space<vmem>>, vector<1x1x32xf32>
    %244 = vector.shape_cast %243 : vector<1x1x32xf32> to vector<1x32xf32>
    %245 = vector.shape_cast %237 : vector<1x32xf32> to vector<1x1x32xf32>
    tpu.vector_store %arg15[%c0_127, %c0_128, %c0_129], %245 {strides = array<i32>} : memref<1x1x32xf32, #tpu.memory_space<vmem>>, vector<1x1x32xf32>,
    %c0_130 = arith.constant 0 : index
    %c0_131 = arith.constant 0 : index
    %246 = vector.load %arg11[%c0_130, %c0_131] : memref<32x15xf32, #tpu.memory_space<vmem>>, vector<32x15xf32>
    %cst_132 = arith.constant dense<0.000000e+00> : vector<1x15xf32>
    %247 = tpu.matmul %239, %246, %cst_132 {dimension_numbers = #tpu.dot_dimension_numbers<[1], [0], [0], [1], [0, 0, 1, 1], [], []>} : vector<1x32xf32>, vector<32x15xf32>, vector<1x15xf32> -> vector<1x15xf32>
    %c0_133 = arith.constant 0 : index
    %c0_134 = arith.constant 0 : index
    %248 = vector.load %arg12[%c0_133, %c0_134] : memref<1x15xf32, #tpu.memory_space<vmem>>, vector<1x15xf32>
    %249 = arith.addf %247, %248 : vector<1x15xf32>
    %c0_135 = arith.constant 0 : index
    %c0_136 = arith.constant 0 : index
    %c0_137 = arith.constant 0 : index
    %250 = vector.load %arg13[%c0_135, %c0_136, %c0_137] : memref<1x1x15xf32, #tpu.memory_space<vmem>>, vector<1x1x15xf32>
    %251 = vector.shape_cast %250 : vector<1x1x15xf32> to vector<1x15xf32>
    %252 = vector.shape_cast %249 : vector<1x15xf32> to vector<1x1x15xf32>
    tpu.vector_store %arg13[%c0_135, %c0_136, %c0_137], %252 {strides = array<i32>} : memref<1x1x15xf32, #tpu.memory_space<vmem>>, vector<1x1x15xf32>,
    return
  }
  func.func @transform_0(%arg0: i32) -> (i32, i32, i32) {
    %c0_i32 = arith.constant 0 : i32
    %c0_i32_0 = arith.constant 0 : i32
    %c0_i32_1 = arith.constant 0 : i32
    return %arg0, %c0_i32, %c0_i32_0 : i32, i32, i32
  }
  func.func @transform_1(%arg0: i32) -> (i32, i32) {
    %c0_i32 = arith.constant 0 : i32
    %c0_i32_0 = arith.constant 0 : i32
    %c0_i32_1 = arith.constant 0 : i32
    return %c0_i32, %c0_i32_0 : i32, i32
  }
  func.func @transform_2(%arg0: i32) -> (i32, i32) {
    %c0_i32 = arith.constant 0 : i32
    %c0_i32_0 = arith.constant 0 : i32
    %c0_i32_1 = arith.constant 0 : i32
    return %c0_i32, %c0_i32_0 : i32, i32
  }
  func.func @transform_3(%arg0: i32) -> (i32, i32, i32) {
    %c0_i32 = arith.constant 0 : i32
    %c0_i32_0 = arith.constant 0 : i32
    %c0_i32_1 = arith.constant 0 : i32
    %c0_i32_2 = arith.constant 0 : i32
    return %c0_i32, %c0_i32_0, %c0_i32_1 : i32, i32, i32
  }
  func.func @transform_4(%arg0: i32) -> (i32, i32) {
    %c0_i32 = arith.constant 0 : i32
    %c0_i32_0 = arith.constant 0 : i32
    %c0_i32_1 = arith.constant 0 : i32
    return %c0_i32, %c0_i32_0 : i32, i32
  }
  func.func @transform_5(%arg0: i32) -> (i32, i32, i32) {
    %c0_i32 = arith.constant 0 : i32
    %c0_i32_0 = arith.constant 0 : i32
    %c0_i32_1 = arith.constant 0 : i32
    return %arg0, %c0_i32, %c0_i32_0 : i32, i32, i32
  }
  func.func @transform_6(%arg0: i32) -> (i32, i32, i32) {
    %c0_i32 = arith.constant 0 : i32
    %c0_i32_0 = arith.constant 0 : i32
    %c0_i32_1 = arith.constant 0 : i32
    return %arg0, %c0_i32, %c0_i32_0 : i32, i32, i32
  }
  func.func @transform_7(%arg0: i32) -> (i32, i32) {
    %c0_i32 = arith.constant 0 : i32
    %c0_i32_0 = arith.constant 0 : i32
    %c0_i32_1 = arith.constant 0 : i32
    return %c0_i32, %c0_i32_0 : i32, i32
  }
  func.func @transform_8(%arg0: i32) -> (i32, i32) {
    %c0_i32 = arith.constant 0 : i32
    %c0_i32_0 = arith.constant 0 : i32
    %c0_i32_1 = arith.constant 0 : i32
    return %c0_i32, %c0_i32_0 : i32, i32
  }
  func.func @transform_9(%arg0: i32) -> (i32, i32) {
    %c0_i32 = arith.constant 0 : i32
    %c0_i32_0 = arith.constant 0 : i32
    %c0_i32_1 = arith.constant 0 : i32
    return %c0_i32, %c0_i32_0 : i32, i32
  }
  func.func @transform_10(%arg0: i32) -> (i32, i32) {
    %c0_i32 = arith.constant 0 : i32
    %c0_i32_0 = arith.constant 0 : i32
    %c0_i32_1 = arith.constant 0 : i32
    return %c0_i32, %c0_i32_0 : i32, i32
  }
  func.func @transform_11(%arg0: i32) -> (i32, i32) {
    %c0_i32 = arith.constant 0 : i32
    %c0_i32_0 = arith.constant 0 : i32
    %c0_i32_1 = arith.constant 0 : i32
    return %c0_i32, %c0_i32_0 : i32, i32
  }
  func.func @transform_12(%arg0: i32) -> (i32, i32, i32) {
    %c0_i32 = arith.constant 0 : i32
    %c0_i32_0 = arith.constant 0 : i32
    %c0_i32_1 = arith.constant 0 : i32
    return %arg0, %c0_i32, %c0_i32_0 : i32, i32, i32
  }
  func.func @transform_13(%arg0: i32) -> (i32, i32, i32) {
    %c0_i32 = arith.constant 0 : i32
    %c0_i32_0 = arith.constant 0 : i32
    %c0_i32_1 = arith.constant 0 : i32
    return %arg0, %c0_i32, %c0_i32_0 : i32, i32, i32
  }
  func.func @transform_14(%arg0: i32) -> (i32, i32, i32) {
    %c0_i32 = arith.constant 0 : i32
    %c0_i32_0 = arith.constant 0 : i32
    %c0_i32_1 = arith.constant 0 : i32
    return %arg0, %c0_i32, %c0_i32_0 : i32, i32, i32
  }
}

</mosaic_0001>

<llo_original>
// kernel: pcg_policy_forward.1
$region0: #{pcg_policy_forward.1}
  #allocation0 [shape = 'u32[]', space=smem, size = 0x4, offset = 0x4, fixed_abs, tag = 'smem constant byte address 0x4 - core index']
  #allocation1 [shape = 'u32[144,128]{1,0:T(1,128)}', space=vmem, size = 0x12000, scoped, tag = 'internal scratch']
  %s0 = inlined_call_operand.vmem [shape: bf16[2,36,256], index: 0, kind: input, shape index: {}]
  %s1 = inlined_call_operand.vmem [shape: bf16[32,36], index: 1, kind: input, shape index: {}]
  %s2 = inlined_call_operand.vmem [shape: f32[32,1], index: 2, kind: input, shape index: {}]
  %s3 = inlined_call_operand.vmem [shape: bf16[32,256,32], index: 3, kind: input, shape index: {}]
  %s4 = inlined_call_operand.vmem [shape: f32[1,32], index: 4, kind: input, shape index: {}]
  %s5 = inlined_call_operand.vmem [shape: f32[2,1,32], index: 5, kind: input, shape index: {}, may-alias: {5,13}]
  %s6 = inlined_call_operand.vmem [shape: f32[2,1,32], index: 6, kind: input, shape index: {}, may-alias: {6,14}]
  %s7 = inlined_call_operand.vmem [shape: f32[32,128], index: 7, kind: input, shape index: {}]
  %s8 = inlined_call_operand.vmem [shape: f32[32,128], index: 8, kind: input, shape index: {}]
  %s9 = inlined_call_operand.vmem [shape: f32[1,128], index: 9, kind: input, shape index: {}]
  %s10 = inlined_call_operand.vmem [shape: f32[32,15], index: 10, kind: input, shape index: {}]
  %s11 = inlined_call_operand.vmem [shape: f32[1,15], index: 11, kind: input, shape index: {}]
  %s12 = inlined_call_operand.vmem [shape: f32[2,1,15], index: 12, kind: output, shape index: {0}]
  %s13 = inlined_call_operand.vmem [shape: f32[2,1,32], index: 13, kind: output, shape index: {1}, may-alias: {5,13}]
  %s14 = inlined_call_operand.vmem [shape: f32[2,1,32], index: 14, kind: output, shape index: {2}, may-alias: {6,14}]
  %15 = xla_tuple %s12, %s13, %s14
  %s16 = sld [smem:[#allocation0]]
  $region97: #{pcg_policy_forward.1} parent=0
    _
  %s18 = ssub.s32 1, %s16
  %s19 = scalar_select 0, %s18, %s16
  loop: start=0, step=1, limit=4
  $region2: #{pcg_policy_forward.1} parent=0 // loop_pre_header
    _
  $region3: #{pcg_policy_forward.1} parent=0 // loop_header
    %s21 = sphi 0, %s25
    %p22 = scmp.ge.s32.totalorder %s21, 4
    %s31 = sphi 0, %s33
    %s34 = sphi 0, %s31
    %s35 = sphi 0, %s34
    %s51 = sphi 0, %s35
    %s55 = sphi 0, %s55
    %s57 = sphi 0, %s55
    %s58 = sphi 0, %s57
    %s72 = sphi 0, %s58
    %s76 = sphi 0, %s76
    %s78 = sphi 0, %s76
    %s79 = sphi 0, %s78
    %s93 = sphi 0, %s79
    %s97 = sphi 0, %s97
    %s99 = sphi 0, %s97
    %s100 = sphi 0, %s99
    %s114 = sphi 0, %s100
    %s118 = sphi 0, %s118
    %s120 = sphi 0, %s118
    %s121 = sphi 0, %s120
    %s135 = sphi 0, %s121
    %s141 = sphi 0, %s143
    %s144 = sphi 0, %s141
    %s145 = sphi 0, %s144
    %s161 = sphi 0, %s145
    %s167 = sphi 0, %s169
    %s170 = sphi 0, %s167
    %s171 = sphi 0, %s170
    %s187 = sphi 0, %s171
    %s191 = sphi 0, %s191
    %s193 = sphi 0, %s191
    %s194 = sphi 0, %s193
    %s208 = sphi 0, %s194
    %s212 = sphi 0, %s212
    %s214 = sphi 0, %s212
    %s215 = sphi 0, %s214
    %s229 = sphi 0, %s215
    %s233 = sphi 0, %s233
    %s235 = sphi 0, %s233
    %s236 = sphi 0, %s235
    %s250 = sphi 0, %s236
    %s254 = sphi 0, %s254
    %s256 = sphi 0, %s254
    %s257 = sphi 0, %s256
    %s271 = sphi 0, %s257
    %s275 = sphi 0, %s275
    %s277 = sphi 0, %s275
    %s278 = sphi 0, %s277
    %s292 = sphi 0, %s278
    %s298 = sphi 0, %s300
    %s301 = sphi 0, %s298
    %s302 = sphi 0, %s301
    %s318 = sphi 0, %s302
    %s324 = sphi 0, %s326
    %s327 = sphi 0, %s324
    %s328 = sphi 0, %s327
    %s344 = sphi 0, %s328
    %s350 = sphi 0, %s352
    %s353 = sphi 0, %s350
    %s354 = sphi 0, %s353
    %s370 = sphi 0, %s354
  $region4: #{pcg_policy_forward.1} parent=0 // loop_header_branch
    %24 = sbr.rel (%p22) target = $region8
  $region5: #{pcg_policy_forward.1} parent=0 // loop_body
    %s26 = ssub.s32 %s21, 1
    %s27 = ssub.s32 %s21, 2
    %s28 = sadd.s32 %s21, 1
    %s29 = ssub.s32 %s21, %s28
    %p30 = scmp.eq.s32.totalorder %s29, 0
    %s32 = sadd.s32 %s31, 1
    %s33 = scalar_select %p30, %s31, %s32
    %p36 = pneg %p30
    %p37 = scmp.eq.s32.totalorder %s21, 1
    %p38 = por %p36, %p37
    %p39 = scmp.ne.s32.totalorder %s31, %s34
    %p40 = scmp.eq.s32.totalorder %s21, 0
    %p41 = por %p39, %p40
    %p42 = scmp.ne.s32.totalorder %s31, %s34
    %p43 = scmp.eq.s32.totalorder %s26, 1
    %p44 = por %p42, %p43
    %p45 = scmp.ne.s32.totalorder %s34, %s35
    %p46 = scmp.eq.s32.totalorder %s26, 0
    %p47 = por %p45, %p46
    %p48 = scmp.ne.s32.totalorder %s34, %s35
    %p49 = scmp.eq.s32.totalorder %s27, 1
    %p50 = por %p48, %p49
    %p52 = scmp.ne.s32.totalorder %s35, %s51
    %p53 = scmp.eq.s32.totalorder %s27, 0
    %p54 = por %p52, %p53
    %s56 = sadd.s32 %s55, 1
    %p59 = scmp.eq.s32.totalorder %s21, 1
    %p60 = scmp.ne.s32.totalorder %s55, %s57
    %p61 = scmp.eq.s32.totalorder %s21, 0
    %p62 = por %p60, %p61
    %p63 = scmp.ne.s32.totalorder %s55, %s57
    %p64 = scmp.eq.s32.totalorder %s26, 1
    %p65 = por %p63, %p64
    %p66 = scmp.ne.s32.totalorder %s57, %s58
    %p67 = scmp.eq.s32.totalorder %s26, 0
    %p68 = por %p66, %p67
    %p69 = scmp.ne.s32.totalorder %s57, %s58
    %p70 = scmp.eq.s32.totalorder %s27, 1
    %p71 = por %p69, %p70
    %p73 = scmp.ne.s32.totalorder %s58, %s72
    %p74 = scmp.eq.s32.totalorder %s27, 0
    %p75 = por %p73, %p74
    %s77 = sadd.s32 %s76, 1
    %p80 = scmp.eq.s32.totalorder %s21, 1
    %p81 = scmp.ne.s32.totalorder %s76, %s78
    %p82 = scmp.eq.s32.totalorder %s21, 0
    %p83 = por %p81, %p82
    %p84 = scmp.ne.s32.totalorder %s76, %s78
    %p85 = scmp.eq.s32.totalorder %s26, 1
    %p86 = por %p84, %p85
    %p87 = scmp.ne.s32.totalorder %s78, %s79
    %p88 = scmp.eq.s32.totalorder %s26, 0
    %p89 = por %p87, %p88
    %p90 = scmp.ne.s32.totalorder %s78, %s79
    %p91 = scmp.eq.s32.totalorder %s27, 1
    %p92 = por %p90, %p91
    %p94 = scmp.ne.s32.totalorder %s79, %s93
    %p95 = scmp.eq.s32.totalorder %s27, 0
    %p96 = por %p94, %p95
    %s98 = sadd.s32 %s97, 1
    %p101 = scmp.eq.s32.totalorder %s21, 1
    %p102 = scmp.ne.s32.totalorder %s97, %s99
    %p103 = scmp.eq.s32.totalorder %s21, 0
    %p104 = por %p102, %p103
    %p105 = scmp.ne.s32.totalorder %s97, %s99
    %p106 = scmp.eq.s32.totalorder %s26, 1
    %p107 = por %p105, %p106
    %p108 = scmp.ne.s32.totalorder %s99, %s100
    %p109 = scmp.eq.s32.totalorder %s26, 0
    %p110 = por %p108, %p109
    %p111 = scmp.ne.s32.totalorder %s99, %s100
    %p112 = scmp.eq.s32.totalorder %s27, 1
    %p113 = por %p111, %p112
    %p115 = scmp.ne.s32.totalorder %s100, %s114
    %p116 = scmp.eq.s32.totalorder %s27, 0
    %p117 = por %p115, %p116
    %s119 = sadd.s32 %s118, 1
    %p122 = scmp.eq.s32.totalorder %s21, 1
    %p123 = scmp.ne.s32.totalorder %s118, %s120
    %p124 = scmp.eq.s32.totalorder %s21, 0
    %p125 = por %p123, %p124
    %p126 = scmp.ne.s32.totalorder %s118, %s120
    %p127 = scmp.eq.s32.totalorder %s26, 1
    %p128 = por %p126, %p127
    %p129 = scmp.ne.s32.totalorder %s120, %s121
    %p130 = scmp.eq.s32.totalorder %s26, 0
    %p131 = por %p129, %p130
    %p132 = scmp.ne.s32.totalorder %s120, %s121
    %p133 = scmp.eq.s32.totalorder %s27, 1
    %p134 = por %p132, %p133
    %p136 = scmp.ne.s32.totalorder %s121, %s135
    %p137 = scmp.eq.s32.totalorder %s27, 0
    %p138 = por %p136, %p137
    %s139 = ssub.s32 %s21, %s28
    %p140 = scmp.eq.s32.totalorder %s139, 0
    %s142 = sadd.s32 %s141, 1
    %s143 = scalar_select %p140, %s141, %s142
    %p146 = pneg %p140
    %p147 = scmp.eq.s32.totalorder %s21, 1
    %p148 = por %p146, %p147
    %p149 = scmp.ne.s32.totalorder %s141, %s144
    %p150 = scmp.eq.s32.totalorder %s21, 0
    %p151 = por %p149, %p150
    %p152 = scmp.ne.s32.totalorder %s141, %s144
    %p153 = scmp.eq.s32.totalorder %s26, 1
    %p154 = por %p152, %p153
    %p155 = scmp.ne.s32.totalorder %s144, %s145
    %p156 = scmp.eq.s32.totalorder %s26, 0
    %p157 = por %p155, %p156
    %p158 = scmp.ne.s32.totalorder %s144, %s145
    %p159 = scmp.eq.s32.totalorder %s27, 1
    %p160 = por %p158, %p159
    %p162 = scmp.ne.s32.totalorder %s145, %s161
    %p163 = scmp.eq.s32.totalorder %s27, 0
    %p164 = por %p162, %p163
    %s165 = ssub.s32 %s21, %s28
    %p166 = scmp.eq.s32.totalorder %s165, 0
    %s168 = sadd.s32 %s167, 1
    %s169 = scalar_select %p166, %s167, %s168
    %p172 = pneg %p166
    %p173 = scmp.eq.s32.totalorder %s21, 1
    %p174 = por %p172, %p173
    %p175 = scmp.ne.s32.totalorder %s167, %s170
    %p176 = scmp.eq.s32.totalorder %s21, 0
    %p177 = por %p175, %p176
    %p178 = scmp.ne.s32.totalorder %s167, %s170
    %p179 = scmp.eq.s32.totalorder %s26, 1
    %p180 = por %p178, %p179
    %p181 = scmp.ne.s32.totalorder %s170, %s171
    %p182 = scmp.eq.s32.totalorder %s26, 0
    %p183 = por %p181, %p182
    %p184 = scmp.ne.s32.totalorder %s170, %s171
    %p185 = scmp.eq.s32.totalorder %s27, 1
    %p186 = por %p184, %p185
    %p188 = scmp.ne.s32.totalorder %s171, %s187
    %p189 = scmp.eq.s32.totalorder %s27, 0
    %p190 = por %p188, %p189
    %s192 = sadd.s32 %s191, 1
    %p195 = scmp.eq.s32.totalorder %s21, 1
    %p196 = scmp.ne.s32.totalorder %s191, %s193
    %p197 = scmp.eq.s32.totalorder %s21, 0
    %p198 = por %p196, %p197
    %p199 = scmp.ne.s32.totalorder %s191, %s193
    %p200 = scmp.eq.s32.totalorder %s26, 1
    %p201 = por %p199, %p200
    %p202 = scmp.ne.s32.totalorder %s193, %s194
    %p203 = scmp.eq.s32.totalorder %s26, 0
    %p204 = por %p202, %p203
    %p205 = scmp.ne.s32.totalorder %s193, %s194
    %p206 = scmp.eq.s32.totalorder %s27, 1
    %p207 = por %p205, %p206
    %p209 = scmp.ne.s32.totalorder %s194, %s208
    %p210 = scmp.eq.s32.totalorder %s27, 0
    %p211 = por %p209, %p210
    %s213 = sadd.s32 %s212, 1
    %p216 = scmp.eq.s32.totalorder %s21, 1
    %p217 = scmp.ne.s32.totalorder %s212, %s214
    %p218 = scmp.eq.s32.totalorder %s21, 0
    %p219 = por %p217, %p218
    %p220 = scmp.ne.s32.totalorder %s212, %s214
    %p221 = scmp.eq.s32.totalorder %s26, 1
    %p222 = por %p220, %p221
    %p223 = scmp.ne.s32.totalorder %s214, %s215
    %p224 = scmp.eq.s32.totalorder %s26, 0
    %p225 = por %p223, %p224
    %p226 = scmp.ne.s32.totalorder %s214, %s215
    %p227 = scmp.eq.s32.totalorder %s27, 1
    %p228 = por %p226, %p227
    %p230 = scmp.ne.s32.totalorder %s215, %s229
    %p231 = scmp.eq.s32.totalorder %s27, 0
    %p232 = por %p230, %p231
    %s234 = sadd.s32 %s233, 1
    %p237 = scmp.eq.s32.totalorder %s21, 1
    %p238 = scmp.ne.s32.totalorder %s233, %s235
    %p239 = scmp.eq.s32.totalorder %s21, 0
    %p240 = por %p238, %p239
    %p241 = scmp.ne.s32.totalorder %s233, %s235
    %p242 = scmp.eq.s32.totalorder %s26, 1
    %p243 = por %p241, %p242
    %p244 = scmp.ne.s32.totalorder %s235, %s236
    %p245 = scmp.eq.s32.totalorder %s26, 0
    %p246 = por %p244, %p245
    %p247 = scmp.ne.s32.totalorder %s235, %s236
    %p248 = scmp.eq.s32.totalorder %s27, 1
    %p249 = por %p247, %p248
    %p251 = scmp.ne.s32.totalorder %s236, %s250
    %p252 = scmp.eq.s32.totalorder %s27, 0
    %p253 = por %p251, %p252
    %s255 = sadd.s32 %s254, 1
    %p258 = scmp.eq.s32.totalorder %s21, 1
    %p259 = scmp.ne.s32.totalorder %s254, %s256
    %p260 = scmp.eq.s32.totalorder %s21, 0
    %p261 = por %p259, %p260
    %p262 = scmp.ne.s32.totalorder %s254, %s256
    %p263 = scmp.eq.s32.totalorder %s26, 1
    %p264 = por %p262, %p263
    %p265 = scmp.ne.s32.totalorder %s256, %s257
    %p266 = scmp.eq.s32.totalorder %s26, 0
    %p267 = por %p265, %p266
    %p268 = scmp.ne.s32.totalorder %s256, %s257
    %p269 = scmp.eq.s32.totalorder %s27, 1
    %p270 = por %p268, %p269
    %p272 = scmp.ne.s32.totalorder %s257, %s271
    %p273 = scmp.eq.s32.totalorder %s27, 0
    %p274 = por %p272, %p273
    %s276 = sadd.s32 %s275, 1
    %p279 = scmp.eq.s32.totalorder %s21, 1
    %p280 = scmp.ne.s32.totalorder %s275, %s277
    %p281 = scmp.eq.s32.totalorder %s21, 0
    %p282 = por %p280, %p281
    %p283 = scmp.ne.s32.totalorder %s275, %s277
    %p284 = scmp.eq.s32.totalorder %s26, 1
    %p285 = por %p283, %p284
    %p286 = scmp.ne.s32.totalorder %s277, %s278
    %p287 = scmp.eq.s32.totalorder %s26, 0
    %p288 = por %p286, %p287
    %p289 = scmp.ne.s32.totalorder %s277, %s278
    %p290 = scmp.eq.s32.totalorder %s27, 1
    %p291 = por %p289, %p290
    %p293 = scmp.ne.s32.totalorder %s278, %s292
    %p294 = scmp.eq.s32.totalorder %s27, 0
    %p295 = por %p293, %p294
    %s296 = ssub.s32 %s21, %s28
    %p297 = scmp.eq.s32.totalorder %s296, 0
    %s299 = sadd.s32 %s298, 1
    %s300 = scalar_select %p297, %s298, %s299
    %p303 = pneg %p297
    %p304 = scmp.eq.s32.totalorder %s21, 1
    %p305 = por %p303, %p304
    %p306 = scmp.ne.s32.totalorder %s298, %s301
    %p307 = scmp.eq.s32.totalorder %s21, 0
    %p308 = por %p306, %p307
    %p309 = scmp.ne.s32.totalorder %s298, %s301
    %p310 = scmp.eq.s32.totalorder %s26, 1
    %p311 = por %p309, %p310
    %p312 = scmp.ne.s32.totalorder %s301, %s302
    %p313 = scmp.eq.s32.totalorder %s26, 0
    %p314 = por %p312, %p313
    %p315 = scmp.ne.s32.totalorder %s301, %s302
    %p316 = scmp.eq.s32.totalorder %s27, 1
    %p317 = por %p315, %p316
    %p319 = scmp.ne.s32.totalorder %s302, %s318
    %p320 = scmp.eq.s32.totalorder %s27, 0
    %p321 = por %p319, %p320
    %s322 = ssub.s32 %s21, %s28
    %p323 = scmp.eq.s32.totalorder %s322, 0
    %s325 = sadd.s32 %s324, 1
    %s326 = scalar_select %p323, %s324, %s325
    %p329 = pneg %p323
    %p330 = scmp.eq.s32.totalorder %s21, 1
    %p331 = por %p329, %p330
    %p332 = scmp.ne.s32.totalorder %s324, %s327
    %p333 = scmp.eq.s32.totalorder %s21, 0
    %p334 = por %p332, %p333
    %p335 = scmp.ne.s32.totalorder %s324, %s327
    %p336 = scmp.eq.s32.totalorder %s26, 1
    %p337 = por %p335, %p336
    %p338 = scmp.ne.s32.totalorder %s327, %s328
    %p339 = scmp.eq.s32.totalorder %s26, 0
    %p340 = por %p338, %p339
    %p341 = scmp.ne.s32.totalorder %s327, %s328
    %p342 = scmp.eq.s32.totalorder %s27, 1
    %p343 = por %p341, %p342
    %p345 = scmp.ne.s32.totalorder %s328, %s344
    %p346 = scmp.eq.s32.totalorder %s27, 0
    %p347 = por %p345, %p346
    %s348 = ssub.s32 %s21, %s28
    %p349 = scmp.eq.s32.totalorder %s348, 0
    %s351 = sadd.s32 %s350, 1
    %s352 = scalar_select %p349, %s350, %s351
    %p355 = pneg %p349
    %p356 = scmp.eq.s32.totalorder %s21, 1
    %p357 = por %p355, %p356
    %p358 = scmp.ne.s32.totalorder %s350, %s353
    %p359 = scmp.eq.s32.totalorder %s21, 0
    %p360 = por %p358, %p359
    %p361 = scmp.ne.s32.totalorder %s350, %s353
    %p362 = scmp.eq.s32.totalorder %s26, 1
    %p363 = por %p361, %p362
    %p364 = scmp.ne.s32.totalorder %s353, %s354
    %p365 = scmp.eq.s32.totalorder %s26, 0
    %p366 = por %p364, %p365
    %p367 = scmp.ne.s32.totalorder %s353, %s354
    %p368 = scmp.eq.s32.totalorder %s27, 1
    %p369 = por %p367, %p368
    %p371 = scmp.ne.s32.totalorder %s354, %s370
    %p372 = scmp.eq.s32.totalorder %s27, 0
    %p373 = por %p371, %p372
    %p374 = scmp.le.s32.totalorder 1, %s21
    %p375 = scmp.lt.s32.totalorder %s21, 3
    %p376 = pnand %p374, %p375
    %p377 = pneg %p376
    // Predicated region
    $region9: #{pcg_policy_forward.1} parent=5 // pred_check
      _
    $region10: #{pcg_policy_forward.1} parent=5 // pred_check_branch
      %379 = sbr.rel (%p376) target = $region12
    $region11: #{pcg_policy_forward.1} parent=5 // pred_region
      %s380 = ssub.s32 %s21, 1
      // Predicated region
      $region13: #{pcg_policy_forward.1} parent=11 // pred_check
        %p381 = pneg %p68
      $region14: #{pcg_policy_forward.1} parent=11 // pred_check_branch
        %383 = sbr.rel (%p381) target = $region16
      $region15: #{pcg_policy_forward.1} parent=11 // pred_region
        _
      $region16: #{pcg_policy_forward.1} parent=11 // pred_fallthru
        _
      // Predicated region
      $region17: #{pcg_policy_forward.1} parent=11 // pred_check
        %p384 = pneg %p89
      $region18: #{pcg_policy_forward.1} parent=11 // pred_check_branch
        %386 = sbr.rel (%p384) target = $region20
      $region19: #{pcg_policy_forward.1} parent=11 // pred_region
        _
      $region20: #{pcg_policy_forward.1} parent=11 // pred_fallthru
        _
      // Predicated region
      $region21: #{pcg_policy_forward.1} parent=11 // pred_check
        %p387 = pneg %p110
      $region22: #{pcg_policy_forward.1} parent=11 // pred_check_branch
        %389 = sbr.rel (%p387) target = $region24
      $region23: #{pcg_policy_forward.1} parent=11 // pred_region
        _
      $region24: #{pcg_policy_forward.1} parent=11 // pred_fallthru
        _
      // Predicated region
      $region25: #{pcg_policy_forward.1} parent=11 // pred_check
        %p390 = pneg %p131
      $region26: #{pcg_policy_forward.1} parent=11 // pred_check_branch
        %392 = sbr.rel (%p390) target = $region28
      $region27: #{pcg_policy_forward.1} parent=11 // pred_region
        _
      $region28: #{pcg_policy_forward.1} parent=11 // pred_fallthru
        _
      // Predicated region
      $region29: #{pcg_policy_forward.1} parent=11 // pred_check
        %p393 = pneg %p204
      $region30: #{pcg_policy_forward.1} parent=11 // pred_check_branch
        %395 = sbr.rel (%p393) target = $region32
      $region31: #{pcg_policy_forward.1} parent=11 // pred_region
        _
      $region32: #{pcg_policy_forward.1} parent=11 // pred_fallthru
        _
      // Predicated region
      $region33: #{pcg_policy_forward.1} parent=11 // pred_check
        %p396 = pneg %p225
      $region34: #{pcg_policy_forward.1} parent=11 // pred_check_branch
        %398 = sbr.rel (%p396) target = $region36
      $region35: #{pcg_policy_forward.1} parent=11 // pred_region
        _
      $region36: #{pcg_policy_forward.1} parent=11 // pred_fallthru
        _
      // Predicated region
      $region37: #{pcg_policy_forward.1} parent=11 // pred_check
        %p399 = pneg %p246
      $region38: #{pcg_policy_forward.1} parent=11 // pred_check_branch
        %401 = sbr.rel (%p399) target = $region40
      $region39: #{pcg_policy_forward.1} parent=11 // pred_region
        _
      $region40: #{pcg_policy_forward.1} parent=11 // pred_fallthru
        _
      // Predicated region
      $region41: #{pcg_policy_forward.1} parent=11 // pred_check
        %p402 = pneg %p267
      $region42: #{pcg_policy_forward.1} parent=11 // pred_check_branch
        %404 = sbr.rel (%p402) target = $region44
      $region43: #{pcg_policy_forward.1} parent=11 // pred_region
        _
      $region44: #{pcg_policy_forward.1} parent=11 // pred_fallthru
        _
      // Predicated region
      $region45: #{pcg_policy_forward.1} parent=11 // pred_check
        %p405 = pneg %p288
      $region46: #{pcg_policy_forward.1} parent=11 // pred_check_branch
        %407 = sbr.rel (%p405) target = $region48
      $region47: #{pcg_policy_forward.1} parent=11 // pred_region
        _
      $region48: #{pcg_policy_forward.1} parent=11 // pred_fallthru
        _
    $region12: #{pcg_policy_forward.1} parent=5 // pred_fallthru
      _
    %p408 = scmp.lt.s32.totalorder %s21, 2
    // Predicated region
    $region49: #{pcg_policy_forward.1} parent=5 // pred_check
      %p409 = pneg %p408
    $region50: #{pcg_policy_forward.1} parent=5 // pred_check_branch
      %411 = sbr.rel (%p409) target = $region52
    $region51: #{pcg_policy_forward.1} parent=5 // pred_region
      // Predicated region
      $region53: #{pcg_policy_forward.1} parent=51 // pred_check
        %p412 = pneg %p41
      $region54: #{pcg_policy_forward.1} parent=51 // pred_check_branch
        %414 = sbr.rel (%p412) target = $region56
      $region55: #{pcg_policy_forward.1} parent=51 // pred_region
        %p415 = scmp.lt.s32.totalorder %s21, 1
        %s416 = scalar_select %p415, %s21, 1
        %s417 = smul.addr %s416, 10
        %s418 = smul.addr %s417, 4
        %s419 = scalar_lea.vmem %s0, %s418
      $region56: #{pcg_policy_forward.1} parent=51 // pred_fallthru
        _
      // Predicated region
      $region57: #{pcg_policy_forward.1} parent=51 // pred_check
        %p420 = pneg %p151
      $region58: #{pcg_policy_forward.1} parent=51 // pred_check_branch
        %422 = sbr.rel (%p420) target = $region60
      $region59: #{pcg_policy_forward.1} parent=51 // pred_region
        %p423 = scmp.lt.s32.totalorder %s21, 1
        %s424 = scalar_select %p423, %s21, 1
        %s425 = scalar_lea.vmem %s5, %s424
      $region60: #{pcg_policy_forward.1} parent=51 // pred_fallthru
        _
      // Predicated region
      $region61: #{pcg_policy_forward.1} parent=51 // pred_check
        %p426 = pneg %p177
      $region62: #{pcg_policy_forward.1} parent=51 // pred_check_branch
        %428 = sbr.rel (%p426) target = $region64
      $region63: #{pcg_policy_forward.1} parent=51 // pred_region
        %p429 = scmp.lt.s32.totalorder %s21, 1
        %s430 = scalar_select %p429, %s21, 1
        %s431 = scalar_lea.vmem %s6, %s430
      $region64: #{pcg_policy_forward.1} parent=51 // pred_fallthru
        _
    $region52: #{pcg_policy_forward.1} parent=5 // pred_fallthru
      _
    %p432 = scmp.le.s32.totalorder 1, %s21
    %p433 = scmp.lt.s32.totalorder %s21, 3
    %p434 = pnand %p432, %p433
    %p435 = pneg %p434
    // Predicated region
    $region65: #{pcg_policy_forward.1} parent=5 // pred_check
      _
    $region66: #{pcg_policy_forward.1} parent=5 // pred_check_branch
      %437 = sbr.rel (%p434) target = $region68
    $region67: #{pcg_policy_forward.1} parent=5 // pred_region
      %s438 = ssub.s32 %s21, 1
      %p439 = scmp.lt.s32.totalorder %s26, 1
      %s440 = scalar_select %p439, %s26, 1
      %s441 = smul.addr %s440, 10
      %s442 = smul.addr %s441, 4
      %s443 = scalar_lea.vmem %s0, %s442
      %p444 = pneg %p47
      %p445 = pneg %p44
      %p446 = pneg %p68
      %p447 = pneg %p65
      %p448 = pneg %p89
      %p449 = pneg %p86
      %p450 = pneg %p110
      %p451 = pneg %p107
      %p452 = pneg %p131
      %p453 = pneg %p128
      %p454 = scmp.lt.s32.totalorder %s26, 1
      %s455 = scalar_select %p454, %s26, 1
      %s456 = scalar_lea.vmem %s5, %s455
      %p457 = pneg %p157
      %p458 = pneg %p154
      %p459 = scmp.lt.s32.totalorder %s26, 1
      %s460 = scalar_select %p459, %s26, 1
      %s461 = scalar_lea.vmem %s6, %s460
      %p462 = pneg %p183
      %p463 = pneg %p180
      %p464 = pneg %p204
      %p465 = pneg %p201
      %p466 = pneg %p225
      %p467 = pneg %p222
      %p468 = pneg %p246
      %p469 = pneg %p243
      %p470 = pneg %p267
      %p471 = pneg %p264
      %p472 = pneg %p288
      %p473 = pneg %p285
      %p474 = pneg %p314
      %p475 = pneg %p311
      %p476 = scmp.lt.s32.totalorder %s26, 1
      %s477 = scalar_select %p476, %s26, 1
      %s478 = scalar_lea.vmem %s12, %s477
      %p479 = pneg %p340
      %p480 = pneg %p337
      %p481 = scmp.lt.s32.totalorder %s26, 1
      %s482 = scalar_select %p481, %s26, 1
      %s483 = scalar_lea.vmem %s13, %s482
      %p484 = pneg %p366
      %p485 = pneg %p363
      %p486 = scmp.lt.s32.totalorder %s26, 1
      %s487 = scalar_select %p486, %s26, 1
      %s488 = scalar_lea.vmem %s14, %s487
      %p489 = scmp.lt.s32.totalorder %s26, 1
      %s490 = scalar_select %p489, %s26, 1
      %s491 = smul.addr %s490, 10
      %s492 = smul.addr %s491, 4
      %s493 = scalar_lea.vmem %s0, %s492
      %p494 = scmp.lt.s32.totalorder %s26, 1
      %s495 = scalar_select %p494, %s26, 1
      %s496 = scalar_lea.vmem %s5, %s495
      %p497 = scmp.lt.s32.totalorder %s26, 1
      %s498 = scalar_select %p497, %s26, 1
      %s499 = scalar_lea.vmem %s6, %s498
      %p500 = scmp.lt.s32.totalorder %s26, 1
      %s501 = scalar_select %p500, %s26, 1
      %s502 = scalar_lea.vmem %s12, %s501
      %p503 = scmp.lt.s32.totalorder %s26, 1
      %s504 = scalar_select %p503, %s26, 1
      %s505 = scalar_lea.vmem %s13, %s504
      %p506 = scmp.lt.s32.totalorder %s26, 1
      %s507 = scalar_select %p506, %s26, 1
      %s508 = scalar_lea.vmem %s14, %s507
      %v510 = vld [vmem:[%s1] sm:$0xf]
      %v511 = vld [vmem:[%s1 + $0x4] sm:$0xf]
      %v512 = vld [vmem:[%s1 + $0x8] sm:$0xf]
      %v513 = vld [vmem:[%s1 + $0xc] sm:$0xf]
      %v514 = vld [vmem:[%s493] sm:$0xff]
      %v515 = vld [vmem:[%s493 + $0x8] sm:$0xff]
      %v516 = vld [vmem:[%s493 + $0x10] sm:$0xff]
      %v517 = vld [vmem:[%s493 + $0x18] sm:$0xff]
      %v518 = vld [vmem:[%s493 + $0x20] sm:$0x33]
      %v519 = vld [vmem:[%s2] sm:$0xff]
      %v520 = vld [vmem:[%s2 + $0x8] sm:$0xff]
      %v521 = vld [vmem:[%s2 + $0x10] sm:$0xff]
      %v522 = vld [vmem:[%s2 + $0x18] sm:$0xff]
      %524 = vset.pattern.permute.xlu0 0
      %525 = vperm.xlu0 %524, %v519
      %v526 = vpop.permute.xlu0 %525
      %529 = vset.pattern.permute.xlu0 0
      %530 = vperm.xlu0 %529, %v520
      %v531 = vpop.permute.xlu0 %530
      %534 = vset.pattern.permute.xlu0 0
      %535 = vperm.xlu0 %534, %v521
      %v536 = vpop.permute.xlu0 %535
      %539 = vset.pattern.permute.xlu0 0
      %540 = vperm.xlu0 %539, %v522
      %v541 = vpop.permute.xlu0 %540
      %v547 = vunpack.c.l.b16 %v510
      %v548 = vunpack.c.l.b16 %v511
      %v549 = vunpack.c.l.b16 %v512
      %v550 = vunpack.c.l.b16 %v513
      %v551 = vpack.c.b16 %v548, %v547
      %v552 = vpack.c.b16 %v550, %v549
      %v558 = vunpack.c.l.b16 %v514
      %v559 = vunpack.c.h.b16 %v514
      %v560 = vunpack.c.l.b16 %v515
      %v561 = vunpack.c.h.b16 %v515
      %v562 = vunpack.c.l.b16 %v516
      %v563 = vunpack.c.h.b16 %v516
      %v564 = vunpack.c.l.b16 %v517
      %v565 = vunpack.c.h.b16 %v517
      %v566 = vunpack.c.l.b16 %v518
      %v567 = vunpack.c.h.b16 %v518
      %v568 = vpack.c.b16 %v560, %v558
      %v569 = vpack.c.b16 %v561, %v559
      %v570 = vpack.c.b16 %v564, %v562
      %v571 = vpack.c.b16 %v565, %v563
      %v572 = vpack.c.b16 %v566, %v566
      %v573 = vpack.c.b16 %v567, %v567
      %vm578 = vcmask 293888
      %v580 = vsel %vm578, %v551, 0
      %v583 = vsel %vm578, %v552, 0
      %vm585 = vcmask 1041408
      %v587 = vsel %vm585, %v572, 0
      %v590 = vsel %vm585, %v573, 0
      %592 = vmatprep.subr.bf16.mxu0 %v569
      %593 = vmatpush1.bf16.msra.mxu0 %v568
      %594 = vmatprep.subr.bf16.mxu0 %v571
      %595 = vmatpush1.bf16.msra.mxu0 %v570
      %596 = vmatprep.subr.bf16.mxu0 %v590
      %597 = vmatpush1.bf16.msra.mxu0 %v587
      %598 = vmatprep.subr.bf16.mxu0 0
      %599 = vmatpush1.bf16.msra.mxu0 0
      %600 = vmatprep.subr.bf16.mxu0 0
      %601 = vmatpush1.bf16.msra.mxu0 0
      %602 = vmatprep.subr.bf16.mxu0 0
      %603 = vmatpush1.bf16.msra.mxu0 0
      %604 = vmatprep.subr.bf16.mxu0 0
      %605 = vmatpush1.bf16.msra.mxu0 0
      %606 = vmatprep.subr.bf16.mxu0 0
      %607 = vmatpush1.bf16.msra.mxu0 0
      %608 = vmatprep.subr.bf16.mxu0 0
      %609 = vmatpush1.bf16.msra.mxu0 0
      %610 = vmatprep.subr.bf16.mxu0 0
      %611 = vmatpush1.bf16.msra.mxu0 0
      %612 = vmatprep.subr.bf16.mxu0 0
      %613 = vmatpush1.bf16.msra.mxu0 0
      %614 = vmatprep.subr.bf16.mxu0 0
      %615 = vmatpush1.bf16.msra.mxu0 0
      %616 = vmatprep.subr.bf16.mxu0 0
      %617 = vmatpush1.bf16.msra.mxu0 0
      %618 = vmatprep.subr.bf16.mxu0 0
      %619 = vmatpush1.bf16.msra.mxu0 0
      %620 = vmatprep.subr.bf16.mxu0 0
      %621 = vmatpush1.bf16.msra.mxu0 0
      %622 = vmatprep.subr.bf16.mxu0 0
      %623 = vmatpush1.bf16.msra.mxu0 0
      %624 = vmatprep.mubr.bf16.mxu0 0
      %625 = vmatmul.mubr.bf16.gmra.mrb[0].mxu0 %v580
      %v626 = vpop.f32.mrb[0].mxu0
      %v627 = vadd.f32 %v526, %v626
      %v628 = vpop.f32.mrb[0].mxu0
      %v629 = vadd.f32 %v526, %v628
      %v630 = vpop.f32.mrb[0].mxu0
      %v631 = vadd.f32 %v531, %v630
      %v632 = vpop.f32.mrb[0].mxu0
      %v633 = vadd.f32 %v531, %v632
      %634 = vmatprep.mubr.bf16.mxu0 0
      %635 = vmatmul.mubr.bf16.gmra.mrb[0].mxu0 %v583
      %v636 = vpop.f32.mrb[0].mxu0
      %v637 = vadd.f32 %v536, %v636
      %v638 = vpop.f32.mrb[0].mxu0
      %v639 = vadd.f32 %v536, %v638
      %v640 = vpop.f32.mrb[0].mxu0
      %v641 = vadd.f32 %v541, %v640
      %v642 = vpop.f32.mrb[0].mxu0
      %v643 = vadd.f32 %v541, %v642
      %644 = vdwg.mxu0
      %v645 = vmax.f32 %v627, 0.0
      %v646 = vmax.f32 %v629, 0.0
      %v647 = vmax.f32 %v631, 0.0
      %v648 = vmax.f32 %v633, 0.0
      %v649 = vmax.f32 %v637, 0.0
      %v650 = vmax.f32 %v639, 0.0
      %v651 = vmax.f32 %v641, 0.0
      %v652 = vmax.f32 %v643, 0.0
      %v653 = vld [vmem:[%s4] sm:$0x1]
      %v654 = vpack.c.bf16 %v645, %v645
      %v655 = vpack.c.bf16 %v646, %v646
      %v656 = vld [vmem:[%s3] sm:$0xf]
      %v657 = vld [vmem:[%s3 + $0x4] sm:$0xf]
      %v658 = vld [vmem:[%s3 + $0x8] sm:$0xf]
      %v659 = vld [vmem:[%s3 + $0xc] sm:$0xf]
      %v660 = vld [vmem:[%s3 + $0x10] sm:$0xf]
      %v661 = vld [vmem:[%s3 + $0x14] sm:$0xf]
      %v662 = vld [vmem:[%s3 + $0x18] sm:$0xf]
      %v663 = vld [vmem:[%s3 + $0x1c] sm:$0xf]
      %v664 = vld [vmem:[%s3 + $0x20] sm:$0xf]
      %v665 = vld [vmem:[%s3 + $0x24] sm:$0xf]
      %v666 = vld [vmem:[%s3 + $0x28] sm:$0xf]
      %v667 = vld [vmem:[%s3 + $0x2c] sm:$0xf]
      %v668 = vld [vmem:[%s3 + $0x30] sm:$0xf]
      %v669 = vld [vmem:[%s3 + $0x34] sm:$0xf]
      %v670 = vld [vmem:[%s3 + $0x38] sm:$0xf]
      %v671 = vld [vmem:[%s3 + $0x3c] sm:$0xf]
      %v672 = vld [vmem:[%s3 + $0x40] sm:$0xf]
      %v673 = vld [vmem:[%s3 + $0x44] sm:$0xf]
      %v674 = vld [vmem:[%s3 + $0x48] sm:$0xf]
      %v675 = vld [vmem:[%s3 + $0x4c] sm:$0xf]
      %v676 = vld [vmem:[%s3 + $0x50] sm:$0xf]
      %v677 = vld [vmem:[%s3 + $0x54] sm:$0xf]
      %v678 = vld [vmem:[%s3 + $0x58] sm:$0xf]
      %v679 = vld [vmem:[%s3 + $0x5c] sm:$0xf]
      %v680 = vld [vmem:[%s3 + $0x60] sm:$0xf]
      %v681 = vld [vmem:[%s3 + $0x64] sm:$0xf]
      %v682 = vld [vmem:[%s3 + $0x68] sm:$0xf]
      %v683 = vld [vmem:[%s3 + $0x6c] sm:$0xf]
      %v684 = vld [vmem:[%s3 + $0x70] sm:$0xf]
      %v685 = vld [vmem:[%s3 + $0x74] sm:$0xf]
      %v686 = vld [vmem:[%s3 + $0x78] sm:$0xf]
      %v687 = vld [vmem:[%s3 + $0x7c] sm:$0xf]
      %v720 = vunpack.c.l.b16 %v656
      %v721 = vunpack.c.l.b16 %v657
      %v722 = vunpack.c.l.b16 %v658
      %v723 = vunpack.c.l.b16 %v659
      %v724 = vunpack.c.l.b16 %v660
      %v725 = vunpack.c.l.b16 %v661
      %v726 = vunpack.c.l.b16 %v662
      %v727 = vunpack.c.l.b16 %v663
      %v728 = vunpack.c.l.b16 %v664
      %v729 = vunpack.c.l.b16 %v665
      %v730 = vunpack.c.l.b16 %v666
      %v731 = vunpack.c.l.b16 %v667
      %v732 = vunpack.c.l.b16 %v668
      %v733 = vunpack.c.l.b16 %v669
      %v734 = vunpack.c.l.b16 %v670
      %v735 = vunpack.c.l.b16 %v671
      %v736 = vunpack.c.l.b16 %v672
      %v737 = vunpack.c.l.b16 %v673
      %v738 = vunpack.c.l.b16 %v674
      %v739 = vunpack.c.l.b16 %v675
      %v740 = vunpack.c.l.b16 %v676
      %v741 = vunpack.c.l.b16 %v677
      %v742 = vunpack.c.l.b16 %v678
      %v743 = vunpack.c.l.b16 %v679
      %v744 = vunpack.c.l.b16 %v680
      %v745 = vunpack.c.l.b16 %v681
      %v746 = vunpack.c.l.b16 %v682
      %v747 = vunpack.c.l.b16 %v683
      %v748 = vunpack.c.l.b16 %v684
      %v749 = vunpack.c.l.b16 %v685
      %v750 = vunpack.c.l.b16 %v686
      %v751 = vunpack.c.l.b16 %v687
      %v752 = vpack.c.b16 %v721, %v720
      %v753 = vpack.c.b16 %v723, %v722
      %v754 = vpack.c.b16 %v725, %v724
      %v755 = vpack.c.b16 %v727, %v726
      %v756 = vpack.c.b16 %v729, %v728
      %v757 = vpack.c.b16 %v731, %v730
      %v758 = vpack.c.b16 %v733, %v732
      %v759 = vpack.c.b16 %v735, %v734
      %v760 = vpack.c.b16 %v737, %v736
      %v761 = vpack.c.b16 %v739, %v738
      %v762 = vpack.c.b16 %v741, %v740
      %v763 = vpack.c.b16 %v743, %v742
      %v764 = vpack.c.b16 %v745, %v744
      %v765 = vpack.c.b16 %v747, %v746
      %v766 = vpack.c.b16 %v749, %v748
      %v767 = vpack.c.b16 %v751, %v750
      %784 = vmatprep.subr.bf16.mxu0 0
      %785 = vmatpush1.bf16.msra.mxu0 %v752
      %786 = vmatprep.subr.bf16.mxu0 0
      %787 = vmatpush1.bf16.msra.mxu0 %v753
      %788 = vmatprep.subr.bf16.mxu0 0
      %789 = vmatpush1.bf16.msra.mxu0 %v754
      %790 = vmatprep.subr.bf16.mxu0 0
      %791 = vmatpush1.bf16.msra.mxu0 %v755
      %792 = vmatprep.subr.bf16.mxu0 0
      %793 = vmatpush1.bf16.msra.mxu0 %v756
      %794 = vmatprep.subr.bf16.mxu0 0
      %795 = vmatpush1.bf16.msra.mxu0 %v757
      %796 = vmatprep.subr.bf16.mxu0 0
      %797 = vmatpush1.bf16.msra.mxu0 %v758
      %798 = vmatprep.subr.bf16.mxu0 0
      %799 = vmatpush1.bf16.msra.mxu0 %v759
      %800 = vmatprep.subr.bf16.mxu0 0
      %801 = vmatpush1.bf16.msra.mxu0 %v760
      %802 = vmatprep.subr.bf16.mxu0 0
      %803 = vmatpush1.bf16.msra.mxu0 %v761
      %804 = vmatprep.subr.bf16.mxu0 0
      %805 = vmatpush1.bf16.msra.mxu0 %v762
      %806 = vmatprep.subr.bf16.mxu0 0
      %807 = vmatpush1.bf16.msra.mxu0 %v763
      %808 = vmatprep.subr.bf16.mxu0 0
      %809 = vmatpush1.bf16.msra.mxu0 %v764
      %810 = vmatprep.subr.bf16.mxu0 0
      %811 = vmatpush1.bf16.msra.mxu0 %v765
      %812 = vmatprep.subr.bf16.mxu0 0
      %813 = vmatpush1.bf16.msra.mxu0 %v766
      %814 = vmatprep.subr.bf16.mxu0 0
      %815 = vmatpush1.bf16.msra.mxu0 %v767
      %816 = vmatprep.mubr.bf16.mxu0 %v655
      %817 = vmatmul.mubr.bf16.gmra.mrb[0].mxu0 %v654
      %v818 = vpop.f32.mrb[0].mxu0
      %v819 = vadd.f32 0.0, %v818
      %v820 = vpop.f32.mrb[0].mxu0
      %v821 = vpop.f32.mrb[0].mxu0
      %v822 = vpop.f32.mrb[0].mxu0
      %823 = vdwg.mxu0
      %v824 = vadd.f32 %v653, %v819
      %s825 = scalar_lea.vmem %s3, 128
      %v826 = vld [vmem:[%s825] sm:$0xf]
      %v827 = vld [vmem:[%s825 + $0x4] sm:$0xf]
      %v828 = vld [vmem:[%s825 + $0x8] sm:$0xf]
      %v829 = vld [vmem:[%s825 + $0xc] sm:$0xf]
      %v830 = vld [vmem:[%s825 + $0x10] sm:$0xf]
      %v831 = vld [vmem:[%s825 + $0x14] sm:$0xf]
      %v832 = vld [vmem:[%s825 + $0x18] sm:$0xf]
      %v833 = vld [vmem:[%s825 + $0x1c] sm:$0xf]
      %v834 = vld [vmem:[%s825 + $0x20] sm:$0xf]
      %v835 = vld [vmem:[%s825 + $0x24] sm:$0xf]
      %v836 = vld [vmem:[%s825 + $0x28] sm:$0xf]
      %v837 = vld [vmem:[%s825 + $0x2c] sm:$0xf]
      %v838 = vld [vmem:[%s825 + $0x30] sm:$0xf]
      %v839 = vld [vmem:[%s825 + $0x34] sm:$0xf]
      %v840 = vld [vmem:[%s825 + $0x38] sm:$0xf]
      %v841 = vld [vmem:[%s825 + $0x3c] sm:$0xf]
      %v842 = vld [vmem:[%s825 + $0x40] sm:$0xf]
      %v843 = vld [vmem:[%s825 + $0x44] sm:$0xf]
      %v844 = vld [vmem:[%s825 + $0x48] sm:$0xf]
      %v845 = vld [vmem:[%s825 + $0x4c] sm:$0xf]
      %v846 = vld [vmem:[%s825 + $0x50] sm:$0xf]
      %v847 = vld [vmem:[%s825 + $0x54] sm:$0xf]
      %v848 = vld [vmem:[%s825 + $0x58] sm:$0xf]
      %v849 = vld [vmem:[%s825 + $0x5c] sm:$0xf]
      %v850 = vld [vmem:[%s825 + $0x60] sm:$0xf]
      %v851 = vld [vmem:[%s825 + $0x64] sm:$0xf]
      %v852 = vld [vmem:[%s825 + $0x68] sm:$0xf]
      %v853 = vld [vmem:[%s825 + $0x6c] sm:$0xf]
      %v854 = vld [vmem:[%s825 + $0x70] sm:$0xf]
      %v855 = vld [vmem:[%s825 + $0x74] sm:$0xf]
      %v856 = vld [vmem:[%s825 + $0x78] sm:$0xf]
      %v857 = vld [vmem:[%s825 + $0x7c] sm:$0xf]
      %v859 = vshrl.u32 %v654, 16
      %v862 = vshrl.u32 %v655, 16
      %v898 = vunpack.c.l.b16 %v826
      %v899 = vunpack.c.l.b16 %v827
      %v900 = vunpack.c.l.b16 %v828
      %v901 = vunpack.c.l.b16 %v829
      %v902 = vunpack.c.l.b16 %v830
      %v903 = vunpack.c.l.b16 %v831
      %v904 = vunpack.c.l.b16 %v832
      %v905 = vunpack.c.l.b16 %v833
      %v906 = vunpack.c.l.b16 %v834
      %v907 = vunpack.c.l.b16 %v835
      %v908 = vunpack.c.l.b16 %v836
      %v909 = vunpack.c.l.b16 %v837
      %v910 = vunpack.c.l.b16 %v838
      %v911 = vunpack.c.l.b16 %v839
      %v912 = vunpack.c.l.b16 %v840
      %v913 = vunpack.c.l.b16 %v841
      %v914 = vunpack.c.l.b16 %v842
      %v915 = vunpack.c.l.b16 %v843
      %v916 = vunpack.c.l.b16 %v844
      %v917 = vunpack.c.l.b16 %v845
      %v918 = vunpack.c.l.b16 %v846
      %v919 = vunpack.c.l.b16 %v847
      %v920 = vunpack.c.l.b16 %v848
      %v921 = vunpack.c.l.b16 %v849
      %v922 = vunpack.c.l.b16 %v850
      %v923 = vunpack.c.l.b16 %v851
      %v924 = vunpack.c.l.b16 %v852
      %v925 = vunpack.c.l.b16 %v853
      %v926 = vunpack.c.l.b16 %v854
      %v927 = vunpack.c.l.b16 %v855
      %v928 = vunpack.c.l.b16 %v856
      %v929 = vunpack.c.l.b16 %v857
      %v930 = vpack.c.b16 %v899, %v898
      %v931 = vpack.c.b16 %v901, %v900
      %v932 = vpack.c.b16 %v903, %v902
      %v933 = vpack.c.b16 %v905, %v904
      %v934 = vpack.c.b16 %v907, %v906
      %v935 = vpack.c.b16 %v909, %v908
      %v936 = vpack.c.b16 %v911, %v910
      %v937 = vpack.c.b16 %v913, %v912
      %v938 = vpack.c.b16 %v915, %v914
      %v939 = vpack.c.b16 %v917, %v916
      %v940 = vpack.c.b16 %v919, %v918
      %v941 = vpack.c.b16 %v921, %v920
      %v942 = vpack.c.b16 %v923, %v922
      %v943 = vpack.c.b16 %v925, %v924
      %v944 = vpack.c.b16 %v927, %v926
      %v945 = vpack.c.b16 %v929, %v928
      %962 = vmatprep.subr.bf16.mxu0 0
      %963 = vmatpush1.bf16.msra.mxu0 %v930
      %964 = vmatprep.subr.bf16.mxu0 0
      %965 = vmatpush1.bf16.msra.mxu0 %v931
      %966 = vmatprep.subr.bf16.mxu0 0
      %967 = vmatpush1.bf16.msra.mxu0 %v932
      %968 = vmatprep.subr.bf16.mxu0 0
      %969 = vmatpush1.bf16.msra.mxu0 %v933
      %970 = vmatprep.subr.bf16.mxu0 0
      %971 = vmatpush1.bf16.msra.mxu0 %v934
      %972 = vmatprep.subr.bf16.mxu0 0
      %973 = vmatpush1.bf16.msra.mxu0 %v935
      %974 = vmatprep.subr.bf16.mxu0 0
      %975 = vmatpush1.bf16.msra.mxu0 %v936
      %976 = vmatprep.subr.bf16.mxu0 0
      %977 = vmatpush1.bf16.msra.mxu0 %v937
      %978 = vmatprep.subr.bf16.mxu0 0
      %979 = vmatpush1.bf16.msra.mxu0 %v938
      %980 = vmatprep.subr.bf16.mxu0 0
      %981 = vmatpush1.bf16.msra.mxu0 %v939
      %982 = vmatprep.subr.bf16.mxu0 0
      %983 = vmatpush1.bf16.msra.mxu0 %v940
      %984 = vmatprep.subr.bf16.mxu0 0
      %985 = vmatpush1.bf16.msra.mxu0 %v941
      %986 = vmatprep.subr.bf16.mxu0 0
      %987 = vmatpush1.bf16.msra.mxu0 %v942
      %988 = vmatprep.subr.bf16.mxu0 0
      %989 = vmatpush1.bf16.msra.mxu0 %v943
      %990 = vmatprep.subr.bf16.mxu0 0
      %991 = vmatpush1.bf16.msra.mxu0 %v944
      %992 = vmatprep.subr.bf16.mxu0 0
      %993 = vmatpush1.bf16.msra.mxu0 %v945
      %994 = vmatprep.mubr.bf16.mxu0 %v862
      %995 = vmatmul.mubr.bf16.gmra.mrb[0].mxu0 %v859
      %v996 = vpop.f32.mrb[0].mxu0
      %v997 = vadd.f32 0.0, %v996
      %v998 = vpop.f32.mrb[0].mxu0
      %v999 = vpop.f32.mrb[0].mxu0
      %v1000 = vpop.f32.mrb[0].mxu0
      %1001 = vdwg.mxu0
      %v1002 = vadd.f32 %v824, %v997
      %s1003 = scalar_lea.vmem %s3, 256
      %v1004 = vld [vmem:[%s1003] sm:$0xf]
      %v1005 = vld [vmem:[%s1003 + $0x4] sm:$0xf]
      %v1006 = vld [vmem:[%s1003 + $0x8] sm:$0xf]
      %v1007 = vld [vmem:[%s1003 + $0xc] sm:$0xf]
      %v1008 = vld [vmem:[%s1003 + $0x10] sm:$0xf]
      %v1009 = vld [vmem:[%s1003 + $0x14] sm:$0xf]
      %v1010 = vld [vmem:[%s1003 + $0x18] sm:$0xf]
      %v1011 = vld [vmem:[%s1003 + $0x1c] sm:$0xf]
      %v1012 = vld [vmem:[%s1003 + $0x20] sm:$0xf]
      %v1013 = vld [vmem:[%s1003 + $0x24] sm:$0xf]
      %v1014 = vld [vmem:[%s1003 + $0x28] sm:$0xf]
      %v1015 = vld [vmem:[%s1003 + $0x2c] sm:$0xf]
      %v1016 = vld [vmem:[%s1003 + $0x30] sm:$0xf]
      %v1017 = vld [vmem:[%s1003 + $0x34] sm:$0xf]
      %v1018 = vld [vmem:[%s1003 + $0x38] sm:$0xf]
      %v1019 = vld [vmem:[%s1003 + $0x3c] sm:$0xf]
      %v1020 = vld [vmem:[%s1003 + $0x40] sm:$0xf]
      %v1021 = vld [vmem:[%s1003 + $0x44] sm:$0xf]
      %v1022 = vld [vmem:[%s1003 + $0x48] sm:$0xf]
      %v1023 = vld [vmem:[%s1003 + $0x4c] sm:$0xf]
      %v1024 = vld [vmem:[%s1003 + $0x50] sm:$0xf]
      %v1025 = vld [vmem:[%s1003 + $0x54] sm:$0xf]
      %v1026 = vld [vmem:[%s1003 + $0x58] sm:$0xf]
      %v1027 = vld [vmem:[%s1003 + $0x5c] sm:$0xf]
      %v1028 = vld [vmem:[%s1003 + $0x60] sm:$0xf]
      %v1029 = vld [vmem:[%s1003 + $0x64] sm:$0xf]
      %v1030 = vld [vmem:[%s1003 + $0x68] sm:$0xf]
      %v1031 = vld [vmem:[%s1003 + $0x6c] sm:$0xf]
      %v1032 = vld [vmem:[%s1003 + $0x70] sm:$0xf]
      %v1033 = vld [vmem:[%s1003 + $0x74] sm:$0xf]
      %v1034 = vld [vmem:[%s1003 + $0x78] sm:$0xf]
      %v1035 = vld [vmem:[%s1003 + $0x7c] sm:$0xf]
      %v1038 = vrot.slane %v654, 1
      %v1039 = vrot.slane %v655, 1
      %v1074 = vunpack.c.l.b16 %v1004
      %v1075 = vunpack.c.l.b16 %v1005
      %v1076 = vunpack.c.l.b16 %v1006
      %v1077 = vunpack.c.l.b16 %v1007
      %v1078 = vunpack.c.l.b16 %v1008
      %v1079 = vunpack.c.l.b16 %v1009
      %v1080 = vunpack.c.l.b16 %v1010
      %v1081 = vunpack.c.l.b16 %v1011
      %v1082 = vunpack.c.l.b16 %v1012
      %v1083 = vunpack.c.l.b16 %v1013
      %v1084 = vunpack.c.l.b16 %v1014
      %v1085 = vunpack.c.l.b16 %v1015
      %v1086 = vunpack.c.l.b16 %v1016
      %v1087 = vunpack.c.l.b16 %v1017
      %v1088 = vunpack.c.l.b16 %v1018
      %v1089 = vunpack.c.l.b16 %v1019
      %v1090 = vunpack.c.l.b16 %v1020
      %v1091 = vunpack.c.l.b16 %v1021
      %v1092 = vunpack.c.l.b16 %v1022
      %v1093 = vunpack.c.l.b16 %v1023
      %v1094 = vunpack.c.l.b16 %v1024
      %v1095 = vunpack.c.l.b16 %v1025
      %v1096 = vunpack.c.l.b16 %v1026
      %v1097 = vunpack.c.l.b16 %v1027
      %v1098 = vunpack.c.l.b16 %v1028
      %v1099 = vunpack.c.l.b16 %v1029
      %v1100 = vunpack.c.l.b16 %v1030
      %v1101 = vunpack.c.l.b16 %v1031
      %v1102 = vunpack.c.l.b16 %v1032
      %v1103 = vunpack.c.l.b16 %v1033
      %v1104 = vunpack.c.l.b16 %v1034
      %v1105 = vunpack.c.l.b16 %v1035
      %v1106 = vpack.c.b16 %v1075, %v1074
      %v1107 = vpack.c.b16 %v1077, %v1076
      %v1108 = vpack.c.b16 %v1079, %v1078
      %v1109 = vpack.c.b16 %v1081, %v1080
      %v1110 = vpack.c.b16 %v1083, %v1082
      %v1111 = vpack.c.b16 %v1085, %v1084
      %v1112 = vpack.c.b16 %v1087, %v1086
      %v1113 = vpack.c.b16 %v1089, %v1088
      %v1114 = vpack.c.b16 %v1091, %v1090
      %v1115 = vpack.c.b16 %v1093, %v1092
      %v1116 = vpack.c.b16 %v1095, %v1094
      %v1117 = vpack.c.b16 %v1097, %v1096
      %v1118 = vpack.c.b16 %v1099, %v1098
      %v1119 = vpack.c.b16 %v1101, %v1100
      %v1120 = vpack.c.b16 %v1103, %v1102
      %v1121 = vpack.c.b16 %v1105, %v1104
      %1138 = vmatprep.subr.bf16.mxu0 0
      %1139 = vmatpush1.bf16.msra.mxu0 %v1106
      %1140 = vmatprep.subr.bf16.mxu0 0
      %1141 = vmatpush1.bf16.msra.mxu0 %v1107
      %1142 = vmatprep.subr.bf16.mxu0 0
      %1143 = vmatpush1.bf16.msra.mxu0 %v1108
      %1144 = vmatprep.subr.bf16.mxu0 0
      %1145 = vmatpush1.bf16.msra.mxu0 %v1109
      %1146 = vmatprep.subr.bf16.mxu0 0
      %1147 = vmatpush1.bf16.msra.mxu0 %v1110
      %1148 = vmatprep.subr.bf16.mxu0 0
      %1149 = vmatpush1.bf16.msra.mxu0 %v1111
      %1150 = vmatprep.subr.bf16.mxu0 0
      %1151 = vmatpush1.bf16.msra.mxu0 %v1112
      %1152 = vmatprep.subr.bf16.mxu0 0
      %1153 = vmatpush1.bf16.msra.mxu0 %v1113
      %1154 = vmatprep.subr.bf16.mxu0 0
      %1155 = vmatpush1.bf16.msra.mxu0 %v1114
      %1156 = vmatprep.subr.bf16.mxu0 0
      %1157 = vmatpush1.bf16.msra.mxu0 %v1115
      %1158 = vmatprep.subr.bf16.mxu0 0
      %1159 = vmatpush1.bf16.msra.mxu0 %v1116
      %1160 = vmatprep.subr.bf16.mxu0 0
      %1161 = vmatpush1.bf16.msra.mxu0 %v1117
      %1162 = vmatprep.subr.bf16.mxu0 0
      %1163 = vmatpush1.bf16.msra.mxu0 %v1118
      %1164 = vmatprep.subr.bf16.mxu0 0
      %1165 = vmatpush1.bf16.msra.mxu0 %v1119
      %1166 = vmatprep.subr.bf16.mxu0 0
      %1167 = vmatpush1.bf16.msra.mxu0 %v1120
      %1168 = vmatprep.subr.bf16.mxu0 0
      %1169 = vmatpush1.bf16.msra.mxu0 %v1121
      %1170 = vmatprep.mubr.bf16.mxu0 %v1039
      %1171 = vmatmul.mubr.bf16.gmra.mrb[0].mxu0 %v1038
      %v1172 = vpop.f32.mrb[0].mxu0
      %v1173 = vadd.f32 0.0, %v1172
      %v1174 = vpop.f32.mrb[0].mxu0
      %v1175 = vpop.f32.mrb[0].mxu0
      %v1176 = vpop.f32.mrb[0].mxu0
      %1177 = vdwg.mxu0
      %v1178 = vadd.f32 %v1002, %v1173
      %s1179 = scalar_lea.vmem %s3, 384
      %v1180 = vld [vmem:[%s1179] sm:$0xf]
      %v1181 = vld [vmem:[%s1179 + $0x4] sm:$0xf]
      %v1182 = vld [vmem:[%s1179 + $0x8] sm:$0xf]
      %v1183 = vld [vmem:[%s1179 + $0xc] sm:$0xf]
      %v1184 = vld [vmem:[%s1179 + $0x10] sm:$0xf]
      %v1185 = vld [vmem:[%s1179 + $0x14] sm:$0xf]
      %v1186 = vld [vmem:[%s1179 + $0x18] sm:$0xf]
      %v1187 = vld [vmem:[%s1179 + $0x1c] sm:$0xf]
      %v1188 = vld [vmem:[%s1179 + $0x20] sm:$0xf]
      %v1189 = vld [vmem:[%s1179 + $0x24] sm:$0xf]
      %v1190 = vld [vmem:[%s1179 + $0x28] sm:$0xf]
      %v1191 = vld [vmem:[%s1179 + $0x2c] sm:$0xf]
      %v1192 = vld [vmem:[%s1179 + $0x30] sm:$0xf]
      %v1193 = vld [vmem:[%s1179 + $0x34] sm:$0xf]
      %v1194 = vld [vmem:[%s1179 + $0x38] sm:$0xf]
      %v1195 = vld [vmem:[%s1179 + $0x3c] sm:$0xf]
      %v1196 = vld [vmem:[%s1179 + $0x40] sm:$0xf]
      %v1197 = vld [vmem:[%s1179 + $0x44] sm:$0xf]
      %v1198 = vld [vmem:[%s1179 + $0x48] sm:$0xf]
      %v1199 = vld [vmem:[%s1179 + $0x4c] sm:$0xf]
      %v1200 = vld [vmem:[%s1179 + $0x50] sm:$0xf]
      %v1201 = vld [vmem:[%s1179 + $0x54] sm:$0xf]
      %v1202 = vld [vmem:[%s1179 + $0x58] sm:$0xf]
      %v1203 = vld [vmem:[%s1179 + $0x5c] sm:$0xf]
      %v1204 = vld [vmem:[%s1179 + $0x60] sm:$0xf]
      %v1205 = vld [vmem:[%s1179 + $0x64] sm:$0xf]
      %v1206 = vld [vmem:[%s1179 + $0x68] sm:$0xf]
      %v1207 = vld [vmem:[%s1179 + $0x6c] sm:$0xf]
      %v1208 = vld [vmem:[%s1179 + $0x70] sm:$0xf]
      %v1209 = vld [vmem:[%s1179 + $0x74] sm:$0xf]
      %v1210 = vld [vmem:[%s1179 + $0x78] sm:$0xf]
      %v1211 = vld [vmem:[%s1179 + $0x7c] sm:$0xf]
      %v1212 = vrot.slane %v859, 1
      %v1213 = vrot.slane %v862, 1
      %v1248 = vunpack.c.l.b16 %v1180
      %v1249 = vunpack.c.l.b16 %v1181
      %v1250 = vunpack.c.l.b16 %v1182
      %v1251 = vunpack.c.l.b16 %v1183
      %v1252 = vunpack.c.l.b16 %v1184
      %v1253 = vunpack.c.l.b16 %v1185
      %v1254 = vunpack.c.l.b16 %v1186
      %v1255 = vunpack.c.l.b16 %v1187
      %v1256 = vunpack.c.l.b16 %v1188
      %v1257 = vunpack.c.l.b16 %v1189
      %v1258 = vunpack.c.l.b16 %v1190
      %v1259 = vunpack.c.l.b16 %v1191
      %v1260 = vunpack.c.l.b16 %v1192
      %v1261 = vunpack.c.l.b16 %v1193
      %v1262 = vunpack.c.l.b16 %v1194
      %v1263 = vunpack.c.l.b16 %v1195
      %v1264 = vunpack.c.l.b16 %v1196
      %v1265 = vunpack.c.l.b16 %v1197
      %v1266 = vunpack.c.l.b16 %v1198
      %v1267 = vunpack.c.l.b16 %v1199
      %v1268 = vunpack.c.l.b16 %v1200
      %v1269 = vunpack.c.l.b16 %v1201
      %v1270 = vunpack.c.l.b16 %v1202
      %v1271 = vunpack.c.l.b16 %v1203
      %v1272 = vunpack.c.l.b16 %v1204
      %v1273 = vunpack.c.l.b16 %v1205
      %v1274 = vunpack.c.l.b16 %v1206
      %v1275 = vunpack.c.l.b16 %v1207
      %v1276 = vunpack.c.l.b16 %v1208
      %v1277 = vunpack.c.l.b16 %v1209
      %v1278 = vunpack.c.l.b16 %v1210
      %v1279 = vunpack.c.l.b16 %v1211
      %v1280 = vpack.c.b16 %v1249, %v1248
      %v1281 = vpack.c.b16 %v1251, %v1250
      %v1282 = vpack.c.b16 %v1253, %v1252
      %v1283 = vpack.c.b16 %v1255, %v1254
      %v1284 = vpack.c.b16 %v1257, %v1256
      %v1285 = vpack.c.b16 %v1259, %v1258
      %v1286 = vpack.c.b16 %v1261, %v1260
      %v1287 = vpack.c.b16 %v1263, %v1262
      %v1288 = vpack.c.b16 %v1265, %v1264
      %v1289 = vpack.c.b16 %v1267, %v1266
      %v1290 = vpack.c.b16 %v1269, %v1268
      %v1291 = vpack.c.b16 %v1271, %v1270
      %v1292 = vpack.c.b16 %v1273, %v1272
      %v1293 = vpack.c.b16 %v1275, %v1274
      %v1294 = vpack.c.b16 %v1277, %v1276
      %v1295 = vpack.c.b16 %v1279, %v1278
      %1312 = vmatprep.subr.bf16.mxu0 0
      %1313 = vmatpush1.bf16.msra.mxu0 %v1280
      %1314 = vmatprep.subr.bf16.mxu0 0
      %1315 = vmatpush1.bf16.msra.mxu0 %v1281
      %1316 = vmatprep.subr.bf16.mxu0 0
      %1317 = vmatpush1.bf16.msra.mxu0 %v1282
      %1318 = vmatprep.subr.bf16.mxu0 0
      %1319 = vmatpush1.bf16.msra.mxu0 %v1283
      %1320 = vmatprep.subr.bf16.mxu0 0
      %1321 = vmatpush1.bf16.msra.mxu0 %v1284
      %1322 = vmatprep.subr.bf16.mxu0 0
      %1323 = vmatpush1.bf16.msra.mxu0 %v1285
      %1324 = vmatprep.subr.bf16.mxu0 0
      %1325 = vmatpush1.bf16.msra.mxu0 %v1286
      %1326 = vmatprep.subr.bf16.mxu0 0
      %1327 = vmatpush1.bf16.msra.mxu0 %v1287
      %1328 = vmatprep.subr.bf16.mxu0 0
      %1329 = vmatpush1.bf16.msra.mxu0 %v1288
      %1330 = vmatprep.subr.bf16.mxu0 0
      %1331 = vmatpush1.bf16.msra.mxu0 %v1289
      %1332 = vmatprep.subr.bf16.mxu0 0
      %1333 = vmatpush1.bf16.msra.mxu0 %v1290
      %1334 = vmatprep.subr.bf16.mxu0 0
      %1335 = vmatpush1.bf16.msra.mxu0 %v1291
      %1336 = vmatprep.subr.bf16.mxu0 0
      %1337 = vmatpush1.bf16.msra.mxu0 %v1292
      %1338 = vmatprep.subr.bf16.mxu0 0
      %1339 = vmatpush1.bf16.msra.mxu0 %v1293
      %1340 = vmatprep.subr.bf16.mxu0 0
      %1341 = vmatpush1.bf16.msra.mxu0 %v1294
      %1342 = vmatprep.subr.bf16.mxu0 0
      %1343 = vmatpush1.bf16.msra.mxu0 %v1295
      %1344 = vmatprep.mubr.bf16.mxu0 %v1213
      %1345 = vmatmul.mubr.bf16.gmra.mrb[0].mxu0 %v1212
      %v1346 = vpop.f32.mrb[0].mxu0
      %v1347 = vadd.f32 0.0, %v1346
      %v1348 = vpop.f32.mrb[0].mxu0
      %v1349 = vpop.f32.mrb[0].mxu0
      %v1350 = vpop.f32.mrb[0].mxu0
      %1351 = vdwg.mxu0
      %v1352 = vadd.f32 %v1178, %v1347
      %s1353 = scalar_lea.vmem %s3, 512
      %v1354 = vld [vmem:[%s1353] sm:$0xf]
      %v1355 = vld [vmem:[%s1353 + $0x4] sm:$0xf]
      %v1356 = vld [vmem:[%s1353 + $0x8] sm:$0xf]
      %v1357 = vld [vmem:[%s1353 + $0xc] sm:$0xf]
      %v1358 = vld [vmem:[%s1353 + $0x10] sm:$0xf]
      %v1359 = vld [vmem:[%s1353 + $0x14] sm:$0xf]
      %v1360 = vld [vmem:[%s1353 + $0x18] sm:$0xf]
      %v1361 = vld [vmem:[%s1353 + $0x1c] sm:$0xf]
      %v1362 = vld [vmem:[%s1353 + $0x20] sm:$0xf]
      %v1363 = vld [vmem:[%s1353 + $0x24] sm:$0xf]
      %v1364 = vld [vmem:[%s1353 + $0x28] sm:$0xf]
      %v1365 = vld [vmem:[%s1353 + $0x2c] sm:$0xf]
      %v1366 = vld [vmem:[%s1353 + $0x30] sm:$0xf]
      %v1367 = vld [vmem:[%s1353 + $0x34] sm:$0xf]
      %v1368 = vld [vmem:[%s1353 + $0x38] sm:$0xf]
      %v1369 = vld [vmem:[%s1353 + $0x3c] sm:$0xf]
      %v1370 = vld [vmem:[%s1353 + $0x40] sm:$0xf]
      %v1371 = vld [vmem:[%s1353 + $0x44] sm:$0xf]
      %v1372 = vld [vmem:[%s1353 + $0x48] sm:$0xf]
      %v1373 = vld [vmem:[%s1353 + $0x4c] sm:$0xf]
      %v1374 = vld [vmem:[%s1353 + $0x50] sm:$0xf]
      %v1375 = vld [vmem:[%s1353 + $0x54] sm:$0xf]
      %v1376 = vld [vmem:[%s1353 + $0x58] sm:$0xf]
      %v1377 = vld [vmem:[%s1353 + $0x5c] sm:$0xf]
      %v1378 = vld [vmem:[%s1353 + $0x60] sm:$0xf]
      %v1379 = vld [vmem:[%s1353 + $0x64] sm:$0xf]
      %v1380 = vld [vmem:[%s1353 + $0x68] sm:$0xf]
      %v1381 = vld [vmem:[%s1353 + $0x6c] sm:$0xf]
      %v1382 = vld [vmem:[%s1353 + $0x70] sm:$0xf]
      %v1383 = vld [vmem:[%s1353 + $0x74] sm:$0xf]
      %v1384 = vld [vmem:[%s1353 + $0x78] sm:$0xf]
      %v1385 = vld [vmem:[%s1353 + $0x7c] sm:$0xf]
      %v1386 = vrot.slane %v654, 2
      %v1387 = vrot.slane %v655, 2
      %v1422 = vunpack.c.l.b16 %v1354
      %v1423 = vunpack.c.l.b16 %v1355
      %v1424 = vunpack.c.l.b16 %v1356
      %v1425 = vunpack.c.l.b16 %v1357
      %v1426 = vunpack.c.l.b16 %v1358
      %v1427 = vunpack.c.l.b16 %v1359
      %v1428 = vunpack.c.l.b16 %v1360
      %v1429 = vunpack.c.l.b16 %v1361
      %v1430 = vunpack.c.l.b16 %v1362
      %v1431 = vunpack.c.l.b16 %v1363
      %v1432 = vunpack.c.l.b16 %v1364
      %v1433 = vunpack.c.l.b16 %v1365
      %v1434 = vunpack.c.l.b16 %v1366
      %v1435 = vunpack.c.l.b16 %v1367
      %v1436 = vunpack.c.l.b16 %v1368
      %v1437 = vunpack.c.l.b16 %v1369
      %v1438 = vunpack.c.l.b16 %v1370
      %v1439 = vunpack.c.l.b16 %v1371
      %v1440 = vunpack.c.l.b16 %v1372
      %v1441 = vunpack.c.l.b16 %v1373
      %v1442 = vunpack.c.l.b16 %v1374
      %v1443 = vunpack.c.l.b16 %v1375
      %v1444 = vunpack.c.l.b16 %v1376
      %v1445 = vunpack.c.l.b16 %v1377
      %v1446 = vunpack.c.l.b16 %v1378
      %v1447 = vunpack.c.l.b16 %v1379
      %v1448 = vunpack.c.l.b16 %v1380
      %v1449 = vunpack.c.l.b16 %v1381
      %v1450 = vunpack.c.l.b16 %v1382
      %v1451 = vunpack.c.l.b16 %v1383
      %v1452 = vunpack.c.l.b16 %v1384
      %v1453 = vunpack.c.l.b16 %v1385
      %v1454 = vpack.c.b16 %v1423, %v1422
      %v1455 = vpack.c.b16 %v1425, %v1424
      %v1456 = vpack.c.b16 %v1427, %v1426
      %v1457 = vpack.c.b16 %v1429, %v1428
      %v1458 = vpack.c.b16 %v1431, %v1430
      %v1459 = vpack.c.b16 %v1433, %v1432
      %v1460 = vpack.c.b16 %v1435, %v1434
      %v1461 = vpack.c.b16 %v1437, %v1436
      %v1462 = vpack.c.b16 %v1439, %v1438
      %v1463 = vpack.c.b16 %v1441, %v1440
      %v1464 = vpack.c.b16 %v1443, %v1442
      %v1465 = vpack.c.b16 %v1445, %v1444
      %v1466 = vpack.c.b16 %v1447, %v1446
      %v1467 = vpack.c.b16 %v1449, %v1448
      %v1468 = vpack.c.b16 %v1451, %v1450
      %v1469 = vpack.c.b16 %v1453, %v1452
      %1486 = vmatprep.subr.bf16.mxu0 0
      %1487 = vmatpush1.bf16.msra.mxu0 %v1454
      %1488 = vmatprep.subr.bf16.mxu0 0
      %1489 = vmatpush1.bf16.msra.mxu0 %v1455
      %1490 = vmatprep.subr.bf16.mxu0 0
      %1491 = vmatpush1.bf16.msra.mxu0 %v1456
      %1492 = vmatprep.subr.bf16.mxu0 0
      %1493 = vmatpush1.bf16.msra.mxu0 %v1457
      %1494 = vmatprep.subr.bf16.mxu0 0
      %1495 = vmatpush1.bf16.msra.mxu0 %v1458
      %1496 = vmatprep.subr.bf16.mxu0 0
      %1497 = vmatpush1.bf16.msra.mxu0 %v1459
      %1498 = vmatprep.subr.bf16.mxu0 0
      %1499 = vmatpush1.bf16.msra.mxu0 %v1460
      %1500 = vmatprep.subr.bf16.mxu0 0
      %1501 = vmatpush1.bf16.msra.mxu0 %v1461
      %1502 = vmatprep.subr.bf16.mxu0 0
      %1503 = vmatpush1.bf16.msra.mxu0 %v1462
      %1504 = vmatprep.subr.bf16.mxu0 0
      %1505 = vmatpush1.bf16.msra.mxu0 %v1463
      %1506 = vmatprep.subr.bf16.mxu0 0
      %1507 = vmatpush1.bf16.msra.mxu0 %v1464
      %1508 = vmatprep.subr.bf16.mxu0 0
      %1509 = vmatpush1.bf16.msra.mxu0 %v1465
      %1510 = vmatprep.subr.bf16.mxu0 0
      %1511 = vmatpush1.bf16.msra.mxu0 %v1466
      %1512 = vmatprep.subr.bf16.mxu0 0
      %1513 = vmatpush1.bf16.msra.mxu0 %v1467
      %1514 = vmatprep.subr.bf16.mxu0 0
      %1515 = vmatpush1.bf16.msra.mxu0 %v1468
      %1516 = vmatprep.subr.bf16.mxu0 0
      %1517 = vmatpush1.bf16.msra.mxu0 %v1469
      %1518 = vmatprep.mubr.bf16.mxu0 %v1387
      %1519 = vmatmul.mubr.bf16.gmra.mrb[0].mxu0 %v1386
      %v1520 = vpop.f32.mrb[0].mxu0
      %v1521 = vadd.f32 0.0, %v1520
      %v1522 = vpop.f32.mrb[0].mxu0
      %v1523 = vpop.f32.mrb[0].mxu0
      %v1524 = vpop.f32.mrb[0].mxu0
      %1525 = vdwg.mxu0
      %v1526 = vadd.f32 %v1352, %v1521
      %s1527 = scalar_lea.vmem %s3, 640
      %v1528 = vld [vmem:[%s1527] sm:$0xf]
      %v1529 = vld [vmem:[%s1527 + $0x4] sm:$0xf]
      %v1530 = vld [vmem:[%s1527 + $0x8] sm:$0xf]
      %v1531 = vld [vmem:[%s1527 + $0xc] sm:$0xf]
      %v1532 = vld [vmem:[%s1527 + $0x10] sm:$0xf]
      %v1533 = vld [vmem:[%s1527 + $0x14] sm:$0xf]
      %v1534 = vld [vmem:[%s1527 + $0x18] sm:$0xf]
      %v1535 = vld [vmem:[%s1527 + $0x1c] sm:$0xf]
      %v1536 = vld [vmem:[%s1527 + $0x20] sm:$0xf]
      %v1537 = vld [vmem:[%s1527 + $0x24] sm:$0xf]
      %v1538 = vld [vmem:[%s1527 + $0x28] sm:$0xf]
      %v1539 = vld [vmem:[%s1527 + $0x2c] sm:$0xf]
      %v1540 = vld [vmem:[%s1527 + $0x30] sm:$0xf]
      %v1541 = vld [vmem:[%s1527 + $0x34] sm:$0xf]
      %v1542 = vld [vmem:[%s1527 + $0x38] sm:$0xf]
      %v1543 = vld [vmem:[%s1527 + $0x3c] sm:$0xf]
      %v1544 = vld [vmem:[%s1527 + $0x40] sm:$0xf]
      %v1545 = vld [vmem:[%s1527 + $0x44] sm:$0xf]
      %v1546 = vld [vmem:[%s1527 + $0x48] sm:$0xf]
      %v1547 = vld [vmem:[%s1527 + $0x4c] sm:$0xf]
      %v1548 = vld [vmem:[%s1527 + $0x50] sm:$0xf]
      %v1549 = vld [vmem:[%s1527 + $0x54] sm:$0xf]
      %v1550 = vld [vmem:[%s1527 + $0x58] sm:$0xf]
      %v1551 = vld [vmem:[%s1527 + $0x5c] sm:$0xf]
      %v1552 = vld [vmem:[%s1527 + $0x60] sm:$0xf]
      %v1553 = vld [vmem:[%s1527 + $0x64] sm:$0xf]
      %v1554 = vld [vmem:[%s1527 + $0x68] sm:$0xf]
      %v1555 = vld [vmem:[%s1527 + $0x6c] sm:$0xf]
      %v1556 = vld [vmem:[%s1527 + $0x70] sm:$0xf]
      %v1557 = vld [vmem:[%s1527 + $0x74] sm:$0xf]
      %v1558 = vld [vmem:[%s1527 + $0x78] sm:$0xf]
      %v1559 = vld [vmem:[%s1527 + $0x7c] sm:$0xf]
      %v1560 = vrot.slane %v859, 2
      %v1561 = vrot.slane %v862, 2
      %v1596 = vunpack.c.l.b16 %v1528
      %v1597 = vunpack.c.l.b16 %v1529
      %v1598 = vunpack.c.l.b16 %v1530
      %v1599 = vunpack.c.l.b16 %v1531
      %v1600 = vunpack.c.l.b16 %v1532
      %v1601 = vunpack.c.l.b16 %v1533
      %v1602 = vunpack.c.l.b16 %v1534
      %v1603 = vunpack.c.l.b16 %v1535
      %v1604 = vunpack.c.l.b16 %v1536
      %v1605 = vunpack.c.l.b16 %v1537
      %v1606 = vunpack.c.l.b16 %v1538
      %v1607 = vunpack.c.l.b16 %v1539
      %v1608 = vunpack.c.l.b16 %v1540
      %v1609 = vunpack.c.l.b16 %v1541
      %v1610 = vunpack.c.l.b16 %v1542
      %v1611 = vunpack.c.l.b16 %v1543
      %v1612 = vunpack.c.l.b16 %v1544
      %v1613 = vunpack.c.l.b16 %v1545
      %v1614 = vunpack.c.l.b16 %v1546
      %v1615 = vunpack.c.l.b16 %v1547
      %v1616 = vunpack.c.l.b16 %v1548
      %v1617 = vunpack.c.l.b16 %v1549
      %v1618 = vunpack.c.l.b16 %v1550
      %v1619 = vunpack.c.l.b16 %v1551
      %v1620 = vunpack.c.l.b16 %v1552
      %v1621 = vunpack.c.l.b16 %v1553
      %v1622 = vunpack.c.l.b16 %v1554
      %v1623 = vunpack.c.l.b16 %v1555
      %v1624 = vunpack.c.l.b16 %v1556
      %v1625 = vunpack.c.l.b16 %v1557
      %v1626 = vunpack.c.l.b16 %v1558
      %v1627 = vunpack.c.l.b16 %v1559
      %v1628 = vpack.c.b16 %v1597, %v1596
      %v1629 = vpack.c.b16 %v1599, %v1598
      %v1630 = vpack.c.b16 %v1601, %v1600
      %v1631 = vpack.c.b16 %v1603, %v1602
      %v1632 = vpack.c.b16 %v1605, %v1604
      %v1633 = vpack.c.b16 %v1607, %v1606
      %v1634 = vpack.c.b16 %v1609, %v1608
      %v1635 = vpack.c.b16 %v1611, %v1610
      %v1636 = vpack.c.b16 %v1613, %v1612
      %v1637 = vpack.c.b16 %v1615, %v1614
      %v1638 = vpack.c.b16 %v1617, %v1616
      %v1639 = vpack.c.b16 %v1619, %v1618
      %v1640 = vpack.c.b16 %v1621, %v1620
      %v1641 = vpack.c.b16 %v1623, %v1622
      %v1642 = vpack.c.b16 %v1625, %v1624
      %v1643 = vpack.c.b16 %v1627, %v1626
      %1660 = vmatprep.subr.bf16.mxu0 0
      %1661 = vmatpush1.bf16.msra.mxu0 %v1628
      %1662 = vmatprep.subr.bf16.mxu0 0
      %1663 = vmatpush1.bf16.msra.mxu0 %v1629
      %1664 = vmatprep.subr.bf16.mxu0 0
      %1665 = vmatpush1.bf16.msra.mxu0 %v1630
      %1666 = vmatprep.subr.bf16.mxu0 0
      %1667 = vmatpush1.bf16.msra.mxu0 %v1631
      %1668 = vmatprep.subr.bf16.mxu0 0
      %1669 = vmatpush1.bf16.msra.mxu0 %v1632
      %1670 = vmatprep.subr.bf16.mxu0 0
      %1671 = vmatpush1.bf16.msra.mxu0 %v1633
      %1672 = vmatprep.subr.bf16.mxu0 0
      %1673 = vmatpush1.bf16.msra.mxu0 %v1634
      %1674 = vmatprep.subr.bf16.mxu0 0
      %1675 = vmatpush1.bf16.msra.mxu0 %v1635
      %1676 = vmatprep.subr.bf16.mxu0 0
      %1677 = vmatpush1.bf16.msra.mxu0 %v1636
      %1678 = vmatprep.subr.bf16.mxu0 0
      %1679 = vmatpush1.bf16.msra.mxu0 %v1637
      %1680 = vmatprep.subr.bf16.mxu0 0
      %1681 = vmatpush1.bf16.msra.mxu0 %v1638
      %1682 = vmatprep.subr.bf16.mxu0 0
      %1683 = vmatpush1.bf16.msra.mxu0 %v1639
      %1684 = vmatprep.subr.bf16.mxu0 0
      %1685 = vmatpush1.bf16.msra.mxu0 %v1640
      %1686 = vmatprep.subr.bf16.mxu0 0
      %1687 = vmatpush1.bf16.msra.mxu0 %v1641
      %1688 = vmatprep.subr.bf16.mxu0 0
      %1689 = vmatpush1.bf16.msra.mxu0 %v1642
      %1690 = vmatprep.subr.bf16.mxu0 0
      %1691 = vmatpush1.bf16.msra.mxu0 %v1643
      %1692 = vmatprep.mubr.bf16.mxu0 %v1561
      %1693 = vmatmul.mubr.bf16.gmra.mrb[0].mxu0 %v1560
      %v1694 = vpop.f32.mrb[0].mxu0
      %v1695 = vadd.f32 0.0, %v1694
      %v1696 = vpop.f32.mrb[0].mxu0
      %v1697 = vpop.f32.mrb[0].mxu0
      %v1698 = vpop.f32.mrb[0].mxu0
      %1699 = vdwg.mxu0
      %v1700 = vadd.f32 %v1526, %v1695
      %s1701 = scalar_lea.vmem %s3, 768
      %v1702 = vld [vmem:[%s1701] sm:$0xf]
      %v1703 = vld [vmem:[%s1701 + $0x4] sm:$0xf]
      %v1704 = vld [vmem:[%s1701 + $0x8] sm:$0xf]
      %v1705 = vld [vmem:[%s1701 + $0xc] sm:$0xf]
      %v1706 = vld [vmem:[%s1701 + $0x10] sm:$0xf]
      %v1707 = vld [vmem:[%s1701 + $0x14] sm:$0xf]
      %v1708 = vld [vmem:[%s1701 + $0x18] sm:$0xf]
      %v1709 = vld [vmem:[%s1701 + $0x1c] sm:$0xf]
      %v1710 = vld [vmem:[%s1701 + $0x20] sm:$0xf]
      %v1711 = vld [vmem:[%s1701 + $0x24] sm:$0xf]
      %v1712 = vld [vmem:[%s1701 + $0x28] sm:$0xf]
      %v1713 = vld [vmem:[%s1701 + $0x2c] sm:$0xf]
      %v1714 = vld [vmem:[%s1701 + $0x30] sm:$0xf]
      %v1715 = vld [vmem:[%s1701 + $0x34] sm:$0xf]
      %v1716 = vld [vmem:[%s1701 + $0x38] sm:$0xf]
      %v1717 = vld [vmem:[%s1701 + $0x3c] sm:$0xf]
      %v1718 = vld [vmem:[%s1701 + $0x40] sm:$0xf]
      %v1719 = vld [vmem:[%s1701 + $0x44] sm:$0xf]
      %v1720 = vld [vmem:[%s1701 + $0x48] sm:$0xf]
      %v1721 = vld [vmem:[%s1701 + $0x4c] sm:$0xf]
      %v1722 = vld [vmem:[%s1701 + $0x50] sm:$0xf]
      %v1723 = vld [vmem:[%s1701 + $0x54] sm:$0xf]
      %v1724 = vld [vmem:[%s1701 + $0x58] sm:$0xf]
      %v1725 = vld [vmem:[%s1701 + $0x5c] sm:$0xf]
      %v1726 = vld [vmem:[%s1701 + $0x60] sm:$0xf]
      %v1727 = vld [vmem:[%s1701 + $0x64] sm:$0xf]
      %v1728 = vld [vmem:[%s1701 + $0x68] sm:$0xf]
      %v1729 = vld [vmem:[%s1701 + $0x6c] sm:$0xf]
      %v1730 = vld [vmem:[%s1701 + $0x70] sm:$0xf]
      %v1731 = vld [vmem:[%s1701 + $0x74] sm:$0xf]
      %v1732 = vld [vmem:[%s1701 + $0x78] sm:$0xf]
      %v1733 = vld [vmem:[%s1701 + $0x7c] sm:$0xf]
      %v1734 = vrot.slane %v654, 3
      %v1735 = vrot.slane %v655, 3
      %v1770 = vunpack.c.l.b16 %v1702
      %v1771 = vunpack.c.l.b16 %v1703
      %v1772 = vunpack.c.l.b16 %v1704
      %v1773 = vunpack.c.l.b16 %v1705
      %v1774 = vunpack.c.l.b16 %v1706
      %v1775 = vunpack.c.l.b16 %v1707
      %v1776 = vunpack.c.l.b16 %v1708
      %v1777 = vunpack.c.l.b16 %v1709
      %v1778 = vunpack.c.l.b16 %v1710
      %v1779 = vunpack.c.l.b16 %v1711
      %v1780 = vunpack.c.l.b16 %v1712
      %v1781 = vunpack.c.l.b16 %v1713
      %v1782 = vunpack.c.l.b16 %v1714
      %v1783 = vunpack.c.l.b16 %v1715
      %v1784 = vunpack.c.l.b16 %v1716
      %v1785 = vunpack.c.l.b16 %v1717
      %v1786 = vunpack.c.l.b16 %v1718
      %v1787 = vunpack.c.l.b16 %v1719
      %v1788 = vunpack.c.l.b16 %v1720
      %v1789 = vunpack.c.l.b16 %v1721
      %v1790 = vunpack.c.l.b16 %v1722
      %v1791 = vunpack.c.l.b16 %v1723
      %v1792 = vunpack.c.l.b16 %v1724
      %v1793 = vunpack.c.l.b16 %v1725
      %v1794 = vunpack.c.l.b16 %v1726
      %v1795 = vunpack.c.l.b16 %v1727
      %v1796 = vunpack.c.l.b16 %v1728
      %v1797 = vunpack.c.l.b16 %v1729
      %v1798 = vunpack.c.l.b16 %v1730
      %v1799 = vunpack.c.l.b16 %v1731
      %v1800 = vunpack.c.l.b16 %v1732
      %v1801 = vunpack.c.l.b16 %v1733
      %v1802 = vpack.c.b16 %v1771, %v1770
      %v1803 = vpack.c.b16 %v1773, %v1772
      %v1804 = vpack.c.b16 %v1775, %v1774
      %v1805 = vpack.c.b16 %v1777, %v1776
      %v1806 = vpack.c.b16 %v1779, %v1778
      %v1807 = vpack.c.b16 %v1781, %v1780
      %v1808 = vpack.c.b16 %v1783, %v1782
      %v1809 = vpack.c.b16 %v1785, %v1784
      %v1810 = vpack.c.b16 %v1787, %v1786
      %v1811 = vpack.c.b16 %v1789, %v1788
      %v1812 = vpack.c.b16 %v1791, %v1790
      %v1813 = vpack.c.b16 %v1793, %v1792
      %v1814 = vpack.c.b16 %v1795, %v1794
      %v1815 = vpack.c.b16 %v1797, %v1796
      %v1816 = vpack.c.b16 %v1799, %v1798
      %v1817 = vpack.c.b16 %v1801, %v1800
      %1834 = vmatprep.subr.bf16.mxu0 0
      %1835 = vmatpush1.bf16.msra.mxu0 %v1802
      %1836 = vmatprep.subr.bf16.mxu0 0
      %1837 = vmatpush1.bf16.msra.mxu0 %v1803
      %1838 = vmatprep.subr.bf16.mxu0 0
      %1839 = vmatpush1.bf16.msra.mxu0 %v1804
      %1840 = vmatprep.subr.bf16.mxu0 0
      %1841 = vmatpush1.bf16.msra.mxu0 %v1805
      %1842 = vmatprep.subr.bf16.mxu0 0
      %1843 = vmatpush1.bf16.msra.mxu0 %v1806
      %1844 = vmatprep.subr.bf16.mxu0 0
      %1845 = vmatpush1.bf16.msra.mxu0 %v1807
      %1846 = vmatprep.subr.bf16.mxu0 0
      %1847 = vmatpush1.bf16.msra.mxu0 %v1808
      %1848 = vmatprep.subr.bf16.mxu0 0
      %1849 = vmatpush1.bf16.msra.mxu0 %v1809
      %1850 = vmatprep.subr.bf16.mxu0 0
      %1851 = vmatpush1.bf16.msra.mxu0 %v1810
      %1852 = vmatprep.subr.bf16.mxu0 0
      %1853 = vmatpush1.bf16.msra.mxu0 %v1811
      %1854 = vmatprep.subr.bf16.mxu0 0
      %1855 = vmatpush1.bf16.msra.mxu0 %v1812
      %1856 = vmatprep.subr.bf16.mxu0 0
      %1857 = vmatpush1.bf16.msra.mxu0 %v1813
      %1858 = vmatprep.subr.bf16.mxu0 0
      %1859 = vmatpush1.bf16.msra.mxu0 %v1814
      %1860 = vmatprep.subr.bf16.mxu0 0
      %1861 = vmatpush1.bf16.msra.mxu0 %v1815
      %1862 = vmatprep.subr.bf16.mxu0 0
      %1863 = vmatpush1.bf16.msra.mxu0 %v1816
      %1864 = vmatprep.subr.bf16.mxu0 0
      %1865 = vmatpush1.bf16.msra.mxu0 %v1817
      %1866 = vmatprep.mubr.bf16.mxu0 %v1735
      %1867 = vmatmul.mubr.bf16.gmra.mrb[0].mxu0 %v1734
      %v1868 = vpop.f32.mrb[0].mxu0
      %v1869 = vadd.f32 0.0, %v1868
      %v1870 = vpop.f32.mrb[0].mxu0
      %v1871 = vpop.f32.mrb[0].mxu0
      %v1872 = vpop.f32.mrb[0].mxu0
      %1873 = vdwg.mxu0
      %v1874 = vadd.f32 %v1700, %v1869
      %s1875 = scalar_lea.vmem %s3, 896
      %v1876 = vld [vmem:[%s1875] sm:$0xf]
      %v1877 = vld [vmem:[%s1875 + $0x4] sm:$0xf]
      %v1878 = vld [vmem:[%s1875 + $0x8] sm:$0xf]
      %v1879 = vld [vmem:[%s1875 + $0xc] sm:$0xf]
      %v1880 = vld [vmem:[%s1875 + $0x10] sm:$0xf]
      %v1881 = vld [vmem:[%s1875 + $0x14] sm:$0xf]
      %v1882 = vld [vmem:[%s1875 + $0x18] sm:$0xf]
      %v1883 = vld [vmem:[%s1875 + $0x1c] sm:$0xf]
      %v1884 = vld [vmem:[%s1875 + $0x20] sm:$0xf]
      %v1885 = vld [vmem:[%s1875 + $0x24] sm:$0xf]
      %v1886 = vld [vmem:[%s1875 + $0x28] sm:$0xf]
      %v1887 = vld [vmem:[%s1875 + $0x2c] sm:$0xf]
      %v1888 = vld [vmem:[%s1875 + $0x30] sm:$0xf]
      %v1889 = vld [vmem:[%s1875 + $0x34] sm:$0xf]
      %v1890 = vld [vmem:[%s1875 + $0x38] sm:$0xf]
      %v1891 = vld [vmem:[%s1875 + $0x3c] sm:$0xf]
      %v1892 = vld [vmem:[%s1875 + $0x40] sm:$0xf]
      %v1893 = vld [vmem:[%s1875 + $0x44] sm:$0xf]
      %v1894 = vld [vmem:[%s1875 + $0x48] sm:$0xf]
      %v1895 = vld [vmem:[%s1875 + $0x4c] sm:$0xf]
      %v1896 = vld [vmem:[%s1875 + $0x50] sm:$0xf]
      %v1897 = vld [vmem:[%s1875 + $0x54] sm:$0xf]
      %v1898 = vld [vmem:[%s1875 + $0x58] sm:$0xf]
      %v1899 = vld [vmem:[%s1875 + $0x5c] sm:$0xf]
      %v1900 = vld [vmem:[%s1875 + $0x60] sm:$0xf]
      %v1901 = vld [vmem:[%s1875 + $0x64] sm:$0xf]
      %v1902 = vld [vmem:[%s1875 + $0x68] sm:$0xf]
      %v1903 = vld [vmem:[%s1875 + $0x6c] sm:$0xf]
      %v1904 = vld [vmem:[%s1875 + $0x70] sm:$0xf]
      %v1905 = vld [vmem:[%s1875 + $0x74] sm:$0xf]
      %v1906 = vld [vmem:[%s1875 + $0x78] sm:$0xf]
      %v1907 = vld [vmem:[%s1875 + $0x7c] sm:$0xf]
      %v1908 = vrot.slane %v859, 3
      %v1909 = vrot.slane %v862, 3
      %v1944 = vunpack.c.l.b16 %v1876
      %v1945 = vunpack.c.l.b16 %v1877
      %v1946 = vunpack.c.l.b16 %v1878
      %v1947 = vunpack.c.l.b16 %v1879
      %v1948 = vunpack.c.l.b16 %v1880
      %v1949 = vunpack.c.l.b16 %v1881
      %v1950 = vunpack.c.l.b16 %v1882
      %v1951 = vunpack.c.l.b16 %v1883
      %v1952 = vunpack.c.l.b16 %v1884
      %v1953 = vunpack.c.l.b16 %v1885
      %v1954 = vunpack.c.l.b16 %v1886
      %v1955 = vunpack.c.l.b16 %v1887
      %v1956 = vunpack.c.l.b16 %v1888
      %v1957 = vunpack.c.l.b16 %v1889
      %v1958 = vunpack.c.l.b16 %v1890
      %v1959 = vunpack.c.l.b16 %v1891
      %v1960 = vunpack.c.l.b16 %v1892
      %v1961 = vunpack.c.l.b16 %v1893
      %v1962 = vunpack.c.l.b16 %v1894
      %v1963 = vunpack.c.l.b16 %v1895
      %v1964 = vunpack.c.l.b16 %v1896
      %v1965 = vunpack.c.l.b16 %v1897
      %v1966 = vunpack.c.l.b16 %v1898
      %v1967 = vunpack.c.l.b16 %v1899
      %v1968 = vunpack.c.l.b16 %v1900
      %v1969 = vunpack.c.l.b16 %v1901
      %v1970 = vunpack.c.l.b16 %v1902
      %v1971 = vunpack.c.l.b16 %v1903
      %v1972 = vunpack.c.l.b16 %v1904
      %v1973 = vunpack.c.l.b16 %v1905
      %v1974 = vunpack.c.l.b16 %v1906
      %v1975 = vunpack.c.l.b16 %v1907
      %v1976 = vpack.c.b16 %v1945, %v1944
      %v1977 = vpack.c.b16 %v1947, %v1946
      %v1978 = vpack.c.b16 %v1949, %v1948
      %v1979 = vpack.c.b16 %v1951, %v1950
      %v1980 = vpack.c.b16 %v1953, %v1952
      %v1981 = vpack.c.b16 %v1955, %v1954
      %v1982 = vpack.c.b16 %v1957, %v1956
      %v1983 = vpack.c.b16 %v1959, %v1958
      %v1984 = vpack.c.b16 %v1961, %v1960
      %v1985 = vpack.c.b16 %v1963, %v1962
      %v1986 = vpack.c.b16 %v1965, %v1964
      %v1987 = vpack.c.b16 %v1967, %v1966
      %v1988 = vpack.c.b16 %v1969, %v1968
      %v1989 = vpack.c.b16 %v1971, %v1970
      %v1990 = vpack.c.b16 %v1973, %v1972
      %v1991 = vpack.c.b16 %v1975, %v1974
      %2008 = vmatprep.subr.bf16.mxu0 0
      %2009 = vmatpush1.bf16.msra.mxu0 %v1976
      %2010 = vmatprep.subr.bf16.mxu0 0
      %2011 = vmatpush1.bf16.msra.mxu0 %v1977
      %2012 = vmatprep.subr.bf16.mxu0 0
      %2013 = vmatpush1.bf16.msra.mxu0 %v1978
      %2014 = vmatprep.subr.bf16.mxu0 0
      %2015 = vmatpush1.bf16.msra.mxu0 %v1979
      %2016 = vmatprep.subr.bf16.mxu0 0
      %2017 = vmatpush1.bf16.msra.mxu0 %v1980
      %2018 = vmatprep.subr.bf16.mxu0 0
      %2019 = vmatpush1.bf16.msra.mxu0 %v1981
      %2020 = vmatprep.subr.bf16.mxu0 0
      %2021 = vmatpush1.bf16.msra.mxu0 %v1982
      %2022 = vmatprep.subr.bf16.mxu0 0
      %2023 = vmatpush1.bf16.msra.mxu0 %v1983
      %2024 = vmatprep.subr.bf16.mxu0 0
      %2025 = vmatpush1.bf16.msra.mxu0 %v1984
      %2026 = vmatprep.subr.bf16.mxu0 0
      %2027 = vmatpush1.bf16.msra.mxu0 %v1985
      %2028 = vmatprep.subr.bf16.mxu0 0
      %2029 = vmatpush1.bf16.msra.mxu0 %v1986
      %2030 = vmatprep.subr.bf16.mxu0 0
      %2031 = vmatpush1.bf16.msra.mxu0 %v1987
      %2032 = vmatprep.subr.bf16.mxu0 0
      %2033 = vmatpush1.bf16.msra.mxu0 %v1988
      %2034 = vmatprep.subr.bf16.mxu0 0
      %2035 = vmatpush1.bf16.msra.mxu0 %v1989
      %2036 = vmatprep.subr.bf16.mxu0 0
      %2037 = vmatpush1.bf16.msra.mxu0 %v1990
      %2038 = vmatprep.subr.bf16.mxu0 0
      %2039 = vmatpush1.bf16.msra.mxu0 %v1991
      %2040 = vmatprep.mubr.bf16.mxu0 %v1909
      %2041 = vmatmul.mubr.bf16.gmra.mrb[0].mxu0 %v1908
      %v2042 = vpop.f32.mrb[0].mxu0
      %v2043 = vadd.f32 0.0, %v2042
      %v2044 = vpop.f32.mrb[0].mxu0
      %v2045 = vpop.f32.mrb[0].mxu0
      %v2046 = vpop.f32.mrb[0].mxu0
      %2047 = vdwg.mxu0
      %v2048 = vadd.f32 %v1874, %v2043
      %v2049 = vpack.c.bf16 %v647, %v647
      %v2050 = vpack.c.bf16 %v648, %v648
      %s2051 = scalar_lea.vmem %s3, 1024
      %v2052 = vld [vmem:[%s2051] sm:$0xf]
      %v2053 = vld [vmem:[%s2051 + $0x4] sm:$0xf]
      %v2054 = vld [vmem:[%s2051 + $0x8] sm:$0xf]
      %v2055 = vld [vmem:[%s2051 + $0xc] sm:$0xf]
      %v2056 = vld [vmem:[%s2051 + $0x10] sm:$0xf]
      %v2057 = vld [vmem:[%s2051 + $0x14] sm:$0xf]
      %v2058 = vld [vmem:[%s2051 + $0x18] sm:$0xf]
      %v2059 = vld [vmem:[%s2051 + $0x1c] sm:$0xf]
      %v2060 = vld [vmem:[%s2051 + $0x20] sm:$0xf]
      %v2061 = vld [vmem:[%s2051 + $0x24] sm:$0xf]
      %v2062 = vld [vmem:[%s2051 + $0x28] sm:$0xf]
      %v2063 = vld [vmem:[%s2051 + $0x2c] sm:$0xf]
      %v2064 = vld [vmem:[%s2051 + $0x30] sm:$0xf]
      %v2065 = vld [vmem:[%s2051 + $0x34] sm:$0xf]
      %v2066 = vld [vmem:[%s2051 + $0x38] sm:$0xf]
      %v2067 = vld [vmem:[%s2051 + $0x3c] sm:$0xf]
      %v2068 = vld [vmem:[%s2051 + $0x40] sm:$0xf]
      %v2069 = vld [vmem:[%s2051 + $0x44] sm:$0xf]
      %v2070 = vld [vmem:[%s2051 + $0x48] sm:$0xf]
      %v2071 = vld [vmem:[%s2051 + $0x4c] sm:$0xf]
      %v2072 = vld [vmem:[%s2051 + $0x50] sm:$0xf]
      %v2073 = vld [vmem:[%s2051 + $0x54] sm:$0xf]
      %v2074 = vld [vmem:[%s2051 + $0x58] sm:$0xf]
      %v2075 = vld [vmem:[%s2051 + $0x5c] sm:$0xf]
      %v2076 = vld [vmem:[%s2051 + $0x60] sm:$0xf]
      %v2077 = vld [vmem:[%s2051 + $0x64] sm:$0xf]
      %v2078 = vld [vmem:[%s2051 + $0x68] sm:$0xf]
      %v2079 = vld [vmem:[%s2051 + $0x6c] sm:$0xf]
      %v2080 = vld [vmem:[%s2051 + $0x70] sm:$0xf]
      %v2081 = vld [vmem:[%s2051 + $0x74] sm:$0xf]
      %v2082 = vld [vmem:[%s2051 + $0x78] sm:$0xf]
      %v2083 = vld [vmem:[%s2051 + $0x7c] sm:$0xf]
      %v2116 = vunpack.c.l.b16 %v2052
      %v2117 = vunpack.c.l.b16 %v2053
      %v2118 = vunpack.c.l.b16 %v2054
      %v2119 = vunpack.c.l.b16 %v2055
      %v2120 = vunpack.c.l.b16 %v2056
      %v2121 = vunpack.c.l.b16 %v2057
      %v2122 = vunpack.c.l.b16 %v2058
      %v2123 = vunpack.c.l.b16 %v2059
      %v2124 = vunpack.c.l.b16 %v2060
      %v2125 = vunpack.c.l.b16 %v2061
      %v2126 = vunpack.c.l.b16 %v2062
      %v2127 = vunpack.c.l.b16 %v2063
      %v2128 = vunpack.c.l.b16 %v2064
      %v2129 = vunpack.c.l.b16 %v2065
      %v2130 = vunpack.c.l.b16 %v2066
      %v2131 = vunpack.c.l.b16 %v2067
      %v2132 = vunpack.c.l.b16 %v2068
      %v2133 = vunpack.c.l.b16 %v2069
      %v2134 = vunpack.c.l.b16 %v2070
      %v2135 = vunpack.c.l.b16 %v2071
      %v2136 = vunpack.c.l.b16 %v2072
      %v2137 = vunpack.c.l.b16 %v2073
      %v2138 = vunpack.c.l.b16 %v2074
      %v2139 = vunpack.c.l.b16 %v2075
      %v2140 = vunpack.c.l.b16 %v2076
      %v2141 = vunpack.c.l.b16 %v2077
      %v2142 = vunpack.c.l.b16 %v2078
      %v2143 = vunpack.c.l.b16 %v2079
      %v2144 = vunpack.c.l.b16 %v2080
      %v2145 = vunpack.c.l.b16 %v2081
      %v2146 = vunpack.c.l.b16 %v2082
      %v2147 = vunpack.c.l.b16 %v2083
      %v2148 = vpack.c.b16 %v2117, %v2116
      %v2149 = vpack.c.b16 %v2119, %v2118
      %v2150 = vpack.c.b16 %v2121, %v2120
      %v2151 = vpack.c.b16 %v2123, %v2122
      %v2152 = vpack.c.b16 %v2125, %v2124
      %v2153 = vpack.c.b16 %v2127, %v2126
      %v2154 = vpack.c.b16 %v2129, %v2128
      %v2155 = vpack.c.b16 %v2131, %v2130
      %v2156 = vpack.c.b16 %v2133, %v2132
      %v2157 = vpack.c.b16 %v2135, %v2134
      %v2158 = vpack.c.b16 %v2137, %v2136
      %v2159 = vpack.c.b16 %v2139, %v2138
      %v2160 = vpack.c.b16 %v2141, %v2140
      %v2161 = vpack.c.b16 %v2143, %v2142
      %v2162 = vpack.c.b16 %v2145, %v2144
      %v2163 = vpack.c.b16 %v2147, %v2146
      %2180 = vmatprep.subr.bf16.mxu0 0
      %2181 = vmatpush1.bf16.msra.mxu0 %v2148
      %2182 = vmatprep.subr.bf16.mxu0 0
      %2183 = vmatpush1.bf16.msra.mxu0 %v2149
      %2184 = vmatprep.subr.bf16.mxu0 0
      %2185 = vmatpush1.bf16.msra.mxu0 %v2150
      %2186 = vmatprep.subr.bf16.mxu0 0
      %2187 = vmatpush1.bf16.msra.mxu0 %v2151
      %2188 = vmatprep.subr.bf16.mxu0 0
      %2189 = vmatpush1.bf16.msra.mxu0 %v2152
      %2190 = vmatprep.subr.bf16.mxu0 0
      %2191 = vmatpush1.bf16.msra.mxu0 %v2153
      %2192 = vmatprep.subr.bf16.mxu0 0
      %2193 = vmatpush1.bf16.msra.mxu0 %v2154
      %2194 = vmatprep.subr.bf16.mxu0 0
      %2195 = vmatpush1.bf16.msra.mxu0 %v2155
      %2196 = vmatprep.subr.bf16.mxu0 0
      %2197 = vmatpush1.bf16.msra.mxu0 %v2156
      %2198 = vmatprep.subr.bf16.mxu0 0
      %2199 = vmatpush1.bf16.msra.mxu0 %v2157
      %2200 = vmatprep.subr.bf16.mxu0 0
      %2201 = vmatpush1.bf16.msra.mxu0 %v2158
      %2202 = vmatprep.subr.bf16.mxu0 0
      %2203 = vmatpush1.bf16.msra.mxu0 %v2159
      %2204 = vmatprep.subr.bf16.mxu0 0
      %2205 = vmatpush1.bf16.msra.mxu0 %v2160
      %2206 = vmatprep.subr.bf16.mxu0 0
      %2207 = vmatpush1.bf16.msra.mxu0 %v2161
      %2208 = vmatprep.subr.bf16.mxu0 0
      %2209 = vmatpush1.bf16.msra.mxu0 %v2162
      %2210 = vmatprep.subr.bf16.mxu0 0
      %2211 = vmatpush1.bf16.msra.mxu0 %v2163
      %2212 = vmatprep.mubr.bf16.mxu0 %v2050
      %2213 = vmatmul.mubr.bf16.gmra.mrb[0].mxu0 %v2049
      %v2214 = vpop.f32.mrb[0].mxu0
      %v2215 = vadd.f32 0.0, %v2214
      %v2216 = vpop.f32.mrb[0].mxu0
      %v2217 = vpop.f32.mrb[0].mxu0
      %v2218 = vpop.f32.mrb[0].mxu0
      %2219 = vdwg.mxu0
      %v2220 = vadd.f32 %v2048, %v2215
      %s2221 = scalar_lea.vmem %s3, 1152
      %v2222 = vld [vmem:[%s2221] sm:$0xf]
      %v2223 = vld [vmem:[%s2221 + $0x4] sm:$0xf]
      %v2224 = vld [vmem:[%s2221 + $0x8] sm:$0xf]
      %v2225 = vld [vmem:[%s2221 + $0xc] sm:$0xf]
      %v2226 = vld [vmem:[%s2221 + $0x10] sm:$0xf]
      %v2227 = vld [vmem:[%s2221 + $0x14] sm:$0xf]
      %v2228 = vld [vmem:[%s2221 + $0x18] sm:$0xf]
      %v2229 = vld [vmem:[%s2221 + $0x1c] sm:$0xf]
      %v2230 = vld [vmem:[%s2221 + $0x20] sm:$0xf]
      %v2231 = vld [vmem:[%s2221 + $0x24] sm:$0xf]
      %v2232 = vld [vmem:[%s2221 + $0x28] sm:$0xf]
      %v2233 = vld [vmem:[%s2221 + $0x2c] sm:$0xf]
      %v2234 = vld [vmem:[%s2221 + $0x30] sm:$0xf]
      %v2235 = vld [vmem:[%s2221 + $0x34] sm:$0xf]
      %v2236 = vld [vmem:[%s2221 + $0x38] sm:$0xf]
      %v2237 = vld [vmem:[%s2221 + $0x3c] sm:$0xf]
      %v2238 = vld [vmem:[%s2221 + $0x40] sm:$0xf]
      %v2239 = vld [vmem:[%s2221 + $0x44] sm:$0xf]
      %v2240 = vld [vmem:[%s2221 + $0x48] sm:$0xf]
      %v2241 = vld [vmem:[%s2221 + $0x4c] sm:$0xf]
      %v2242 = vld [vmem:[%s2221 + $0x50] sm:$0xf]
      %v2243 = vld [vmem:[%s2221 + $0x54] sm:$0xf]
      %v2244 = vld [vmem:[%s2221 + $0x58] sm:$0xf]
      %v2245 = vld [vmem:[%s2221 + $0x5c] sm:$0xf]
      %v2246 = vld [vmem:[%s2221 + $0x60] sm:$0xf]
      %v2247 = vld [vmem:[%s2221 + $0x64] sm:$0xf]
      %v2248 = vld [vmem:[%s2221 + $0x68] sm:$0xf]
      %v2249 = vld [vmem:[%s2221 + $0x6c] sm:$0xf]
      %v2250 = vld [vmem:[%s2221 + $0x70] sm:$0xf]
      %v2251 = vld [vmem:[%s2221 + $0x74] sm:$0xf]
      %v2252 = vld [vmem:[%s2221 + $0x78] sm:$0xf]
      %v2253 = vld [vmem:[%s2221 + $0x7c] sm:$0xf]
      %v2255 = vshrl.u32 %v2049, 16
      %v2258 = vshrl.u32 %v2050, 16
      %v2294 = vunpack.c.l.b16 %v2222
      %v2295 = vunpack.c.l.b16 %v2223
      %v2296 = vunpack.c.l.b16 %v2224
      %v2297 = vunpack.c.l.b16 %v2225
      %v2298 = vunpack.c.l.b16 %v2226
      %v2299 = vunpack.c.l.b16 %v2227
      %v2300 = vunpack.c.l.b16 %v2228
      %v2301 = vunpack.c.l.b16 %v2229
      %v2302 = vunpack.c.l.b16 %v2230
      %v2303 = vunpack.c.l.b16 %v2231
      %v2304 = vunpack.c.l.b16 %v2232
      %v2305 = vunpack.c.l.b16 %v2233
      %v2306 = vunpack.c.l.b16 %v2234
      %v2307 = vunpack.c.l.b16 %v2235
      %v2308 = vunpack.c.l.b16 %v2236
      %v2309 = vunpack.c.l.b16 %v2237
      %v2310 = vunpack.c.l.b16 %v2238
      %v2311 = vunpack.c.l.b16 %v2239
      %v2312 = vunpack.c.l.b16 %v2240
      %v2313 = vunpack.c.l.b16 %v2241
      %v2314 = vunpack.c.l.b16 %v2242
      %v2315 = vunpack.c.l.b16 %v2243
      %v2316 = vunpack.c.l.b16 %v2244
      %v2317 = vunpack.c.l.b16 %v2245
      %v2318 = vunpack.c.l.b16 %v2246
      %v2319 = vunpack.c.l.b16 %v2247
      %v2320 = vunpack.c.l.b16 %v2248
      %v2321 = vunpack.c.l.b16 %v2249
      %v2322 = vunpack.c.l.b16 %v2250
      %v2323 = vunpack.c.l.b16 %v2251
      %v2324 = vunpack.c.l.b16 %v2252
      %v2325 = vunpack.c.l.b16 %v2253
      %v2326 = vpack.c.b16 %v2295, %v2294
      %v2327 = vpack.c.b16 %v2297, %v2296
      %v2328 = vpack.c.b16 %v2299, %v2298
      %v2329 = vpack.c.b16 %v2301, %v2300
      %v2330 = vpack.c.b16 %v2303, %v2302
      %v2331 = vpack.c.b16 %v2305, %v2304
      %v2332 = vpack.c.b16 %v2307, %v2306
      %v2333 = vpack.c.b16 %v2309, %v2308
      %v2334 = vpack.c.b16 %v2311, %v2310
      %v2335 = vpack.c.b16 %v2313, %v2312
      %v2336 = vpack.c.b16 %v2315, %v2314
      %v2337 = vpack.c.b16 %v2317, %v2316
      %v2338 = vpack.c.b16 %v2319, %v2318
      %v2339 = vpack.c.b16 %v2321, %v2320
      %v2340 = vpack.c.b16 %v2323, %v2322
      %v2341 = vpack.c.b16 %v2325, %v2324
      %2358 = vmatprep.subr.bf16.mxu0 0
      %2359 = vmatpush1.bf16.msra.mxu0 %v2326
      %2360 = vmatprep.subr.bf16.mxu0 0
      %2361 = vmatpush1.bf16.msra.mxu0 %v2327
      %2362 = vmatprep.subr.bf16.mxu0 0
      %2363 = vmatpush1.bf16.msra.mxu0 %v2328
      %2364 = vmatprep.subr.bf16.mxu0 0
      %2365 = vmatpush1.bf16.msra.mxu0 %v2329
      %2366 = vmatprep.subr.bf16.mxu0 0
      %2367 = vmatpush1.bf16.msra.mxu0 %v2330
      %2368 = vmatprep.subr.bf16.mxu0 0
      %2369 = vmatpush1.bf16.msra.mxu0 %v2331
      %2370 = vmatprep.subr.bf16.mxu0 0
      %2371 = vmatpush1.bf16.msra.mxu0 %v2332
      %2372 = vmatprep.subr.bf16.mxu0 0
      %2373 = vmatpush1.bf16.msra.mxu0 %v2333
      %2374 = vmatprep.subr.bf16.mxu0 0
      %2375 = vmatpush1.bf16.msra.mxu0 %v2334
      %2376 = vmatprep.subr.bf16.mxu0 0
      %2377 = vmatpush1.bf16.msra.mxu0 %v2335
      %2378 = vmatprep.subr.bf16.mxu0 0
      %2379 = vmatpush1.bf16.msra.mxu0 %v2336
      %2380 = vmatprep.subr.bf16.mxu0 0
      %2381 = vmatpush1.bf16.msra.mxu0 %v2337
      %2382 = vmatprep.subr.bf16.mxu0 0
      %2383 = vmatpush1.bf16.msra.mxu0 %v2338
      %2384 = vmatprep.subr.bf16.mxu0 0
      %2385 = vmatpush1.bf16.msra.mxu0 %v2339
      %2386 = vmatprep.subr.bf16.mxu0 0
      %2387 = vmatpush1.bf16.msra.mxu0 %v2340
      %2388 = vmatprep.subr.bf16.mxu0 0
      %2389 = vmatpush1.bf16.msra.mxu0 %v2341
      %2390 = vmatprep.mubr.bf16.mxu0 %v2258
      %2391 = vmatmul.mubr.bf16.gmra.mrb[0].mxu0 %v2255
      %v2392 = vpop.f32.mrb[0].mxu0
      %v2393 = vadd.f32 0.0, %v2392
      %v2394 = vpop.f32.mrb[0].mxu0
      %v2395 = vpop.f32.mrb[0].mxu0
      %v2396 = vpop.f32.mrb[0].mxu0
      %2397 = vdwg.mxu0
      %v2398 = vadd.f32 %v2220, %v2393
      %s2399 = scalar_lea.vmem %s3, 1280
      %v2400 = vld [vmem:[%s2399] sm:$0xf]
      %v2401 = vld [vmem:[%s2399 + $0x4] sm:$0xf]
      %v2402 = vld [vmem:[%s2399 + $0x8] sm:$0xf]
      %v2403 = vld [vmem:[%s2399 + $0xc] sm:$0xf]
      %v2404 = vld [vmem:[%s2399 + $0x10] sm:$0xf]
      %v2405 = vld [vmem:[%s2399 + $0x14] sm:$0xf]
      %v2406 = vld [vmem:[%s2399 + $0x18] sm:$0xf]
      %v2407 = vld [vmem:[%s2399 + $0x1c] sm:$0xf]
      %v2408 = vld [vmem:[%s2399 + $0x20] sm:$0xf]
      %v2409 = vld [vmem:[%s2399 + $0x24] sm:$0xf]
      %v2410 = vld [vmem:[%s2399 + $0x28] sm:$0xf]
      %v2411 = vld [vmem:[%s2399 + $0x2c] sm:$0xf]
      %v2412 = vld [vmem:[%s2399 + $0x30] sm:$0xf]
      %v2413 = vld [vmem:[%s2399 + $0x34] sm:$0xf]
      %v2414 = vld [vmem:[%s2399 + $0x38] sm:$0xf]
      %v2415 = vld [vmem:[%s2399 + $0x3c] sm:$0xf]
      %v2416 = vld [vmem:[%s2399 + $0x40] sm:$0xf]
      %v2417 = vld [vmem:[%s2399 + $0x44] sm:$0xf]
      %v2418 = vld [vmem:[%s2399 + $0x48] sm:$0xf]
      %v2419 = vld [vmem:[%s2399 + $0x4c] sm:$0xf]
      %v2420 = vld [vmem:[%s2399 + $0x50] sm:$0xf]
      %v2421 = vld [vmem:[%s2399 + $0x54] sm:$0xf]
      %v2422 = vld [vmem:[%s2399 + $0x58] sm:$0xf]
      %v2423 = vld [vmem:[%s2399 + $0x5c] sm:$0xf]
      %v2424 = vld [vmem:[%s2399 + $0x60] sm:$0xf]
      %v2425 = vld [vmem:[%s2399 + $0x64] sm:$0xf]
      %v2426 = vld [vmem:[%s2399 + $0x68] sm:$0xf]
      %v2427 = vld [vmem:[%s2399 + $0x6c] sm:$0xf]
      %v2428 = vld [vmem:[%s2399 + $0x70] sm:$0xf]
      %v2429 = vld [vmem:[%s2399 + $0x74] sm:$0xf]
      %v2430 = vld [vmem:[%s2399 + $0x78] sm:$0xf]
      %v2431 = vld [vmem:[%s2399 + $0x7c] sm:$0xf]
      %v2434 = vrot.slane %v2049, 1
      %v2435 = vrot.slane %v2050, 1
      %v2470 = vunpack.c.l.b16 %v2400
      %v2471 = vunpack.c.l.b16 %v2401
      %v2472 = vunpack.c.l.b16 %v2402
      %v2473 = vunpack.c.l.b16 %v2403
      %v2474 = vunpack.c.l.b16 %v2404
      %v2475 = vunpack.c.l.b16 %v2405
      %v2476 = vunpack.c.l.b16 %v2406
      %v2477 = vunpack.c.l.b16 %v2407
      %v2478 = vunpack.c.l.b16 %v2408
      %v2479 = vunpack.c.l.b16 %v2409
      %v2480 = vunpack.c.l.b16 %v2410
      %v2481 = vunpack.c.l.b16 %v2411
      %v2482 = vunpack.c.l.b16 %v2412
      %v2483 = vunpack.c.l.b16 %v2413
      %v2484 = vunpack.c.l.b16 %v2414
      %v2485 = vunpack.c.l.b16 %v2415
      %v2486 = vunpack.c.l.b16 %v2416
      %v2487 = vunpack.c.l.b16 %v2417
      %v2488 = vunpack.c.l.b16 %v2418
      %v2489 = vunpack.c.l.b16 %v2419
      %v2490 = vunpack.c.l.b16 %v2420
      %v2491 = vunpack.c.l.b16 %v2421
      %v2492 = vunpack.c.l.b16 %v2422
      %v2493 = vunpack.c.l.b16 %v2423
      %v2494 = vunpack.c.l.b16 %v2424
      %v2495 = vunpack.c.l.b16 %v2425
      %v2496 = vunpack.c.l.b16 %v2426
      %v2497 = vunpack.c.l.b16 %v2427
      %v2498 = vunpack.c.l.b16 %v2428
      %v2499 = vunpack.c.l.b16 %v2429
      %v2500 = vunpack.c.l.b16 %v2430
      %v2501 = vunpack.c.l.b16 %v2431
      %v2502 = vpack.c.b16 %v2471, %v2470
      %v2503 = vpack.c.b16 %v2473, %v2472
      %v2504 = vpack.c.b16 %v2475, %v2474
      %v2505 = vpack.c.b16 %v2477, %v2476
      %v2506 = vpack.c.b16 %v2479, %v2478
      %v2507 = vpack.c.b16 %v2481, %v2480
      %v2508 = vpack.c.b16 %v2483, %v2482
      %v2509 = vpack.c.b16 %v2485, %v2484
      %v2510 = vpack.c.b16 %v2487, %v2486
      %v2511 = vpack.c.b16 %v2489, %v2488
      %v2512 = vpack.c.b16 %v2491, %v2490
      %v2513 = vpack.c.b16 %v2493, %v2492
      %v2514 = vpack.c.b16 %v2495, %v2494
      %v2515 = vpack.c.b16 %v2497, %v2496
      %v2516 = vpack.c.b16 %v2499, %v2498
      %v2517 = vpack.c.b16 %v2501, %v2500
      %2534 = vmatprep.subr.bf16.mxu0 0
      %2535 = vmatpush1.bf16.msra.mxu0 %v2502
      %2536 = vmatprep.subr.bf16.mxu0 0
      %2537 = vmatpush1.bf16.msra.mxu0 %v2503
      %2538 = vmatprep.subr.bf16.mxu0 0
      %2539 = vmatpush1.bf16.msra.mxu0 %v2504
      %2540 = vmatprep.subr.bf16.mxu0 0
      %2541 = vmatpush1.bf16.msra.mxu0 %v2505
      %2542 = vmatprep.subr.bf16.mxu0 0
      %2543 = vmatpush1.bf16.msra.mxu0 %v2506
      %2544 = vmatprep.subr.bf16.mxu0 0
      %2545 = vmatpush1.bf16.msra.mxu0 %v2507
      %2546 = vmatprep.subr.bf16.mxu0 0
      %2547 = vmatpush1.bf16.msra.mxu0 %v2508
      %2548 = vmatprep.subr.bf16.mxu0 0
      %2549 = vmatpush1.bf16.msra.mxu0 %v2509
      %2550 = vmatprep.subr.bf16.mxu0 0
      %2551 = vmatpush1.bf16.msra.mxu0 %v2510
      %2552 = vmatprep.subr.bf16.mxu0 0
      %2553 = vmatpush1.bf16.msra.mxu0 %v2511
      %2554 = vmatprep.subr.bf16.mxu0 0
      %2555 = vmatpush1.bf16.msra.mxu0 %v2512
      %2556 = vmatprep.subr.bf16.mxu0 0
      %2557 = vmatpush1.bf16.msra.mxu0 %v2513
      %2558 = vmatprep.subr.bf16.mxu0 0
      %2559 = vmatpush1.bf16.msra.mxu0 %v2514
      %2560 = vmatprep.subr.bf16.mxu0 0
      %2561 = vmatpush1.bf16.msra.mxu0 %v2515
      %2562 = vmatprep.subr.bf16.mxu0 0
      %2563 = vmatpush1.bf16.msra.mxu0 %v2516
      %2564 = vmatprep.subr.bf16.mxu0 0
      %2565 = vmatpush1.bf16.msra.mxu0 %v2517
      %2566 = vmatprep.mubr.bf16.mxu0 %v2435
      %2567 = vmatmul.mubr.bf16.gmra.mrb[0].mxu0 %v2434
      %v2568 = vpop.f32.mrb[0].mxu0
      %v2569 = vadd.f32 0.0, %v2568
      %v2570 = vpop.f32.mrb[0].mxu0
      %v2571 = vpop.f32.mrb[0].mxu0
      %v2572 = vpop.f32.mrb[0].mxu0
      %2573 = vdwg.mxu0
      %v2574 = vadd.f32 %v2398, %v2569
      %s2575 = scalar_lea.vmem %s3, 1408
      %v2576 = vld [vmem:[%s2575] sm:$0xf]
      %v2577 = vld [vmem:[%s2575 + $0x4] sm:$0xf]
      %v2578 = vld [vmem:[%s2575 + $0x8] sm:$0xf]
      %v2579 = vld [vmem:[%s2575 + $0xc] sm:$0xf]
      %v2580 = vld [vmem:[%s2575 + $0x10] sm:$0xf]
      %v2581 = vld [vmem:[%s2575 + $0x14] sm:$0xf]
      %v2582 = vld [vmem:[%s2575 + $0x18] sm:$0xf]
      %v2583 = vld [vmem:[%s2575 + $0x1c] sm:$0xf]
      %v2584 = vld [vmem:[%s2575 + $0x20] sm:$0xf]
      %v2585 = vld [vmem:[%s2575 + $0x24] sm:$0xf]
      %v2586 = vld [vmem:[%s2575 + $0x28] sm:$0xf]
      %v2587 = vld [vmem:[%s2575 + $0x2c] sm:$0xf]
      %v2588 = vld [vmem:[%s2575 + $0x30] sm:$0xf]
      %v2589 = vld [vmem:[%s2575 + $0x34] sm:$0xf]
      %v2590 = vld [vmem:[%s2575 + $0x38] sm:$0xf]
      %v2591 = vld [vmem:[%s2575 + $0x3c] sm:$0xf]
      %v2592 = vld [vmem:[%s2575 + $0x40] sm:$0xf]
      %v2593 = vld [vmem:[%s2575 + $0x44] sm:$0xf]
      %v2594 = vld [vmem:[%s2575 + $0x48] sm:$0xf]
      %v2595 = vld [vmem:[%s2575 + $0x4c] sm:$0xf]
      %v2596 = vld [vmem:[%s2575 + $0x50] sm:$0xf]
      %v2597 = vld [vmem:[%s2575 + $0x54] sm:$0xf]
      %v2598 = vld [vmem:[%s2575 + $0x58] sm:$0xf]
      %v2599 = vld [vmem:[%s2575 + $0x5c] sm:$0xf]
      %v2600 = vld [vmem:[%s2575 + $0x60] sm:$0xf]
      %v2601 = vld [vmem:[%s2575 + $0x64] sm:$0xf]
      %v2602 = vld [vmem:[%s2575 + $0x68] sm:$0xf]
      %v2603 = vld [vmem:[%s2575 + $0x6c] sm:$0xf]
      %v2604 = vld [vmem:[%s2575 + $0x70] sm:$0xf]
      %v2605 = vld [vmem:[%s2575 + $0x74] sm:$0xf]
      %v2606 = vld [vmem:[%s2575 + $0x78] sm:$0xf]
      %v2607 = vld [vmem:[%s2575 + $0x7c] sm:$0xf]
      %v2608 = vrot.slane %v2255, 1
      %v2609 = vrot.slane %v2258, 1
      %v2644 = vunpack.c.l.b16 %v2576
      %v2645 = vunpack.c.l.b16 %v2577
      %v2646 = vunpack.c.l.b16 %v2578
      %v2647 = vunpack.c.l.b16 %v2579
      %v2648 = vunpack.c.l.b16 %v2580
      %v2649 = vunpack.c.l.b16 %v2581
      %v2650 = vunpack.c.l.b16 %v2582
      %v2651 = vunpack.c.l.b16 %v2583
      %v2652 = vunpack.c.l.b16 %v2584
      %v2653 = vunpack.c.l.b16 %v2585
      %v2654 = vunpack.c.l.b16 %v2586
      %v2655 = vunpack.c.l.b16 %v2587
      %v2656 = vunpack.c.l.b16 %v2588
      %v2657 = vunpack.c.l.b16 %v2589
      %v2658 = vunpack.c.l.b16 %v2590
      %v2659 = vunpack.c.l.b16 %v2591
      %v2660 = vunpack.c.l.b16 %v2592
      %v2661 = vunpack.c.l.b16 %v2593
      %v2662 = vunpack.c.l.b16 %v2594
      %v2663 = vunpack.c.l.b16 %v2595
      %v2664 = vunpack.c.l.b16 %v2596
      %v2665 = vunpack.c.l.b16 %v2597
      %v2666 = vunpack.c.l.b16 %v2598
      %v2667 = vunpack.c.l.b16 %v2599
      %v2668 = vunpack.c.l.b16 %v2600
      %v2669 = vunpack.c.l.b16 %v2601
      %v2670 = vunpack.c.l.b16 %v2602
      %v2671 = vunpack.c.l.b16 %v2603
      %v2672 = vunpack.c.l.b16 %v2604
      %v2673 = vunpack.c.l.b16 %v2605
      %v2674 = vunpack.c.l.b16 %v2606
      %v2675 = vunpack.c.l.b16 %v2607
      %v2676 = vpack.c.b16 %v2645, %v2644
      %v2677 = vpack.c.b16 %v2647, %v2646
      %v2678 = vpack.c.b16 %v2649, %v2648
      %v2679 = vpack.c.b16 %v2651, %v2650
      %v2680 = vpack.c.b16 %v2653, %v2652
      %v2681 = vpack.c.b16 %v2655, %v2654
      %v2682 = vpack.c.b16 %v2657, %v2656
      %v2683 = vpack.c.b16 %v2659, %v2658
      %v2684 = vpack.c.b16 %v2661, %v2660
      %v2685 = vpack.c.b16 %v2663, %v2662
      %v2686 = vpack.c.b16 %v2665, %v2664
      %v2687 = vpack.c.b16 %v2667, %v2666
      %v2688 = vpack.c.b16 %v2669, %v2668
      %v2689 = vpack.c.b16 %v2671, %v2670
      %v2690 = vpack.c.b16 %v2673, %v2672
      %v2691 = vpack.c.b16 %v2675, %v2674
      %2708 = vmatprep.subr.bf16.mxu0 0
      %2709 = vmatpush1.bf16.msra.mxu0 %v2676
      %2710 = vmatprep.subr.bf16.mxu0 0
      %2711 = vmatpush1.bf16.msra.mxu0 %v2677
      %2712 = vmatprep.subr.bf16.mxu0 0
      %2713 = vmatpush1.bf16.msra.mxu0 %v2678
      %2714 = vmatprep.subr.bf16.mxu0 0
      %2715 = vmatpush1.bf16.msra.mxu0 %v2679
      %2716 = vmatprep.subr.bf16.mxu0 0
      %2717 = vmatpush1.bf16.msra.mxu0 %v2680
      %2718 = vmatprep.subr.bf16.mxu0 0
      %2719 = vmatpush1.bf16.msra.mxu0 %v2681
      %2720 = vmatprep.subr.bf16.mxu0 0
      %2721 = vmatpush1.bf16.msra.mxu0 %v2682
      %2722 = vmatprep.subr.bf16.mxu0 0
      %2723 = vmatpush1.bf16.msra.mxu0 %v2683
      %2724 = vmatprep.subr.bf16.mxu0 0
      %2725 = vmatpush1.bf16.msra.mxu0 %v2684
      %2726 = vmatprep.subr.bf16.mxu0 0
      %2727 = vmatpush1.bf16.msra.mxu0 %v2685
      %2728 = vmatprep.subr.bf16.mxu0 0
      %2729 = vmatpush1.bf16.msra.mxu0 %v2686
      %2730 = vmatprep.subr.bf16.mxu0 0
      %2731 = vmatpush1.bf16.msra.mxu0 %v2687
      %2732 = vmatprep.subr.bf16.mxu0 0
      %2733 = vmatpush1.bf16.msra.mxu0 %v2688
      %2734 = vmatprep.subr.bf16.mxu0 0
      %2735 = vmatpush1.bf16.msra.mxu0 %v2689
      %2736 = vmatprep.subr.bf16.mxu0 0
      %2737 = vmatpush1.bf16.msra.mxu0 %v2690
      %2738 = vmatprep.subr.bf16.mxu0 0
      %2739 = vmatpush1.bf16.msra.mxu0 %v2691
      %2740 = vmatprep.mubr.bf16.mxu0 %v2609
      %2741 = vmatmul.mubr.bf16.gmra.mrb[0].mxu0 %v2608
      %v2742 = vpop.f32.mrb[0].mxu0
      %v2743 = vadd.f32 0.0, %v2742
      %v2744 = vpop.f32.mrb[0].mxu0
      %v2745 = vpop.f32.mrb[0].mxu0
      %v2746 = vpop.f32.mrb[0].mxu0
      %2747 = vdwg.mxu0
      %v2748 = vadd.f32 %v2574, %v2743
      %s2749 = scalar_lea.vmem %s3, 1536
      %v2750 = vld [vmem:[%s2749] sm:$0xf]
      %v2751 = vld [vmem:[%s2749 + $0x4] sm:$0xf]
      %v2752 = vld [vmem:[%s2749 + $0x8] sm:$0xf]
      %v2753 = vld [vmem:[%s2749 + $0xc] sm:$0xf]
      %v2754 = vld [vmem:[%s2749 + $0x10] sm:$0xf]
      %v2755 = vld [vmem:[%s2749 + $0x14] sm:$0xf]
      %v2756 = vld [vmem:[%s2749 + $0x18] sm:$0xf]
      %v2757 = vld [vmem:[%s2749 + $0x1c] sm:$0xf]
      %v2758 = vld [vmem:[%s2749 + $0x20] sm:$0xf]
      %v2759 = vld [vmem:[%s2749 + $0x24] sm:$0xf]
      %v2760 = vld [vmem:[%s2749 + $0x28] sm:$0xf]
      %v2761 = vld [vmem:[%s2749 + $0x2c] sm:$0xf]
      %v2762 = vld [vmem:[%s2749 + $0x30] sm:$0xf]
      %v2763 = vld [vmem:[%s2749 + $0x34] sm:$0xf]
      %v2764 = vld [vmem:[%s2749 + $0x38] sm:$0xf]
      %v2765 = vld [vmem:[%s2749 + $0x3c] sm:$0xf]
      %v2766 = vld [vmem:[%s2749 + $0x40] sm:$0xf]
      %v2767 = vld [vmem:[%s2749 + $0x44] sm:$0xf]
      %v2768 = vld [vmem:[%s2749 + $0x48] sm:$0xf]
      %v2769 = vld [vmem:[%s2749 + $0x4c] sm:$0xf]
      %v2770 = vld [vmem:[%s2749 + $0x50] sm:$0xf]
      %v2771 = vld [vmem:[%s2749 + $0x54] sm:$0xf]
      %v2772 = vld [vmem:[%s2749 + $0x58] sm:$0xf]
      %v2773 = vld [vmem:[%s2749 + $0x5c] sm:$0xf]
      %v2774 = vld [vmem:[%s2749 + $0x60] sm:$0xf]
      %v2775 = vld [vmem:[%s2749 + $0x64] sm:$0xf]
      %v2776 = vld [vmem:[%s2749 + $0x68] sm:$0xf]
      %v2777 = vld [vmem:[%s2749 + $0x6c] sm:$0xf]
      %v2778 = vld [vmem:[%s2749 + $0x70] sm:$0xf]
      %v2779 = vld [vmem:[%s2749 + $0x74] sm:$0xf]
      %v2780 = vld [vmem:[%s2749 + $0x78] sm:$0xf]
      %v2781 = vld [vmem:[%s2749 + $0x7c] sm:$0xf]
      %v2782 = vrot.slane %v2049, 2
      %v2783 = vrot.slane %v2050, 2
      %v2818 = vunpack.c.l.b16 %v2750
      %v2819 = vunpack.c.l.b16 %v2751
      %v2820 = vunpack.c.l.b16 %v2752
      %v2821 = vunpack.c.l.b16 %v2753
      %v2822 = vunpack.c.l.b16 %v2754
      %v2823 = vunpack.c.l.b16 %v2755
      %v2824 = vunpack.c.l.b16 %v2756
      %v2825 = vunpack.c.l.b16 %v2757
      %v2826 = vunpack.c.l.b16 %v2758
      %v2827 = vunpack.c.l.b16 %v2759
      %v2828 = vunpack.c.l.b16 %v2760
      %v2829 = vunpack.c.l.b16 %v2761
      %v2830 = vunpack.c.l.b16 %v2762
      %v2831 = vunpack.c.l.b16 %v2763
      %v2832 = vunpack.c.l.b16 %v2764
      %v2833 = vunpack.c.l.b16 %v2765
      %v2834 = vunpack.c.l.b16 %v2766
      %v2835 = vunpack.c.l.b16 %v2767
      %v2836 = vunpack.c.l.b16 %v2768
      %v2837 = vunpack.c.l.b16 %v2769
      %v2838 = vunpack.c.l.b16 %v2770
      %v2839 = vunpack.c.l.b16 %v2771
      %v2840 = vunpack.c.l.b16 %v2772
      %v2841 = vunpack.c.l.b16 %v2773
      %v2842 = vunpack.c.l.b16 %v2774
      %v2843 = vunpack.c.l.b16 %v2775
      %v2844 = vunpack.c.l.b16 %v2776
      %v2845 = vunpack.c.l.b16 %v2777
      %v2846 = vunpack.c.l.b16 %v2778
      %v2847 = vunpack.c.l.b16 %v2779
      %v2848 = vunpack.c.l.b16 %v2780
      %v2849 = vunpack.c.l.b16 %v2781
      %v2850 = vpack.c.b16 %v2819, %v2818
      %v2851 = vpack.c.b16 %v2821, %v2820
      %v2852 = vpack.c.b16 %v2823, %v2822
      %v2853 = vpack.c.b16 %v2825, %v2824
      %v2854 = vpack.c.b16 %v2827, %v2826
      %v2855 = vpack.c.b16 %v2829, %v2828
      %v2856 = vpack.c.b16 %v2831, %v2830
      %v2857 = vpack.c.b16 %v2833, %v2832
      %v2858 = vpack.c.b16 %v2835, %v2834
      %v2859 = vpack.c.b16 %v2837, %v2836
      %v2860 = vpack.c.b16 %v2839, %v2838
      %v2861 = vpack.c.b16 %v2841, %v2840
      %v2862 = vpack.c.b16 %v2843, %v2842
      %v2863 = vpack.c.b16 %v2845, %v2844
      %v2864 = vpack.c.b16 %v2847, %v2846
      %v2865 = vpack.c.b16 %v2849, %v2848
      %2882 = vmatprep.subr.bf16.mxu0 0
      %2883 = vmatpush1.bf16.msra.mxu0 %v2850
      %2884 = vmatprep.subr.bf16.mxu0 0
      %2885 = vmatpush1.bf16.msra.mxu0 %v2851
      %2886 = vmatprep.subr.bf16.mxu0 0
      %2887 = vmatpush1.bf16.msra.mxu0 %v2852
      %2888 = vmatprep.subr.bf16.mxu0 0
      %2889 = vmatpush1.bf16.msra.mxu0 %v2853
      %2890 = vmatprep.subr.bf16.mxu0 0
      %2891 = vmatpush1.bf16.msra.mxu0 %v2854
      %2892 = vmatprep.subr.bf16.mxu0 0
      %2893 = vmatpush1.bf16.msra.mxu0 %v2855
      %2894 = vmatprep.subr.bf16.mxu0 0
      %2895 = vmatpush1.bf16.msra.mxu0 %v2856
      %2896 = vmatprep.subr.bf16.mxu0 0
      %2897 = vmatpush1.bf16.msra.mxu0 %v2857
      %2898 = vmatprep.subr.bf16.mxu0 0
      %2899 = vmatpush1.bf16.msra.mxu0 %v2858
      %2900 = vmatprep.subr.bf16.mxu0 0
      %2901 = vmatpush1.bf16.msra.mxu0 %v2859
      %2902 = vmatprep.subr.bf16.mxu0 0
      %2903 = vmatpush1.bf16.msra.mxu0 %v2860
      %2904 = vmatprep.subr.bf16.mxu0 0
      %2905 = vmatpush1.bf16.msra.mxu0 %v2861
      %2906 = vmatprep.subr.bf16.mxu0 0
      %2907 = vmatpush1.bf16.msra.mxu0 %v2862
      %2908 = vmatprep.subr.bf16.mxu0 0
      %2909 = vmatpush1.bf16.msra.mxu0 %v2863
      %2910 = vmatprep.subr.bf16.mxu0 0
      %2911 = vmatpush1.bf16.msra.mxu0 %v2864
      %2912 = vmatprep.subr.bf16.mxu0 0
      %2913 = vmatpush1.bf16.msra.mxu0 %v2865
      %2914 = vmatprep.mubr.bf16.mxu0 %v2783
      %2915 = vmatmul.mubr.bf16.gmra.mrb[0].mxu0 %v2782
      %v2916 = vpop.f32.mrb[0].mxu0
      %v2917 = vadd.f32 0.0, %v2916
      %v2918 = vpop.f32.mrb[0].mxu0
      %v2919 = vpop.f32.mrb[0].mxu0
      %v2920 = vpop.f32.mrb[0].mxu0
      %2921 = vdwg.mxu0
      %v2922 = vadd.f32 %v2748, %v2917
      %s2923 = scalar_lea.vmem %s3, 1664
      %v2924 = vld [vmem:[%s2923] sm:$0xf]
      %v2925 = vld [vmem:[%s2923 + $0x4] sm:$0xf]
      %v2926 = vld [vmem:[%s2923 + $0x8] sm:$0xf]
      %v2927 = vld [vmem:[%s2923 + $0xc] sm:$0xf]
      %v2928 = vld [vmem:[%s2923 + $0x10] sm:$0xf]
      %v2929 = vld [vmem:[%s2923 + $0x14] sm:$0xf]
      %v2930 = vld [vmem:[%s2923 + $0x18] sm:$0xf]
      %v2931 = vld [vmem:[%s2923 + $0x1c] sm:$0xf]
      %v2932 = vld [vmem:[%s2923 + $0x20] sm:$0xf]
      %v2933 = vld [vmem:[%s2923 + $0x24] sm:$0xf]
      %v2934 = vld [vmem:[%s2923 + $0x28] sm:$0xf]
      %v2935 = vld [vmem:[%s2923 + $0x2c] sm:$0xf]
      %v2936 = vld [vmem:[%s2923 + $0x30] sm:$0xf]
      %v2937 = vld [vmem:[%s2923 + $0x34] sm:$0xf]
      %v2938 = vld [vmem:[%s2923 + $0x38] sm:$0xf]
      %v2939 = vld [vmem:[%s2923 + $0x3c] sm:$0xf]
      %v2940 = vld [vmem:[%s2923 + $0x40] sm:$0xf]
      %v2941 = vld [vmem:[%s2923 + $0x44] sm:$0xf]
      %v2942 = vld [vmem:[%s2923 + $0x48] sm:$0xf]
      %v2943 = vld [vmem:[%s2923 + $0x4c] sm:$0xf]
      %v2944 = vld [vmem:[%s2923 + $0x50] sm:$0xf]
      %v2945 = vld [vmem:[%s2923 + $0x54] sm:$0xf]
      %v2946 = vld [vmem:[%s2923 + $0x58] sm:$0xf]
      %v2947 = vld [vmem:[%s2923 + $0x5c] sm:$0xf]
      %v2948 = vld [vmem:[%s2923 + $0x60] sm:$0xf]
      %v2949 = vld [vmem:[%s2923 + $0x64] sm:$0xf]
      %v2950 = vld [vmem:[%s2923 + $0x68] sm:$0xf]
      %v2951 = vld [vmem:[%s2923 + $0x6c] sm:$0xf]
      %v2952 = vld [vmem:[%s2923 + $0x70] sm:$0xf]
      %v2953 = vld [vmem:[%s2923 + $0x74] sm:$0xf]
      %v2954 = vld [vmem:[%s2923 + $0x78] sm:$0xf]
      %v2955 = vld [vmem:[%s2923 + $0x7c] sm:$0xf]
      %v2956 = vrot.slane %v2255, 2
      %v2957 = vrot.slane %v2258, 2
      %v2992 = vunpack.c.l.b16 %v2924
      %v2993 = vunpack.c.l.b16 %v2925
      %v2994 = vunpack.c.l.b16 %v2926
      %v2995 = vunpack.c.l.b16 %v2927
      %v2996 = vunpack.c.l.b16 %v2928
      %v2997 = vunpack.c.l.b16 %v2929
      %v2998 = vunpack.c.l.b16 %v2930
      %v2999 = vunpack.c.l.b16 %v2931
      %v3000 = vunpack.c.l.b16 %v2932
      %v3001 = vunpack.c.l.b16 %v2933
      %v3002 = vunpack.c.l.b16 %v2934
      %v3003 = vunpack.c.l.b16 %v2935
      %v3004 = vunpack.c.l.b16 %v2936
      %v3005 = vunpack.c.l.b16 %v2937
      %v3006 = vunpack.c.l.b16 %v2938
      %v3007 = vunpack.c.l.b16 %v2939
      %v3008 = vunpack.c.l.b16 %v2940
      %v3009 = vunpack.c.l.b16 %v2941
      %v3010 = vunpack.c.l.b16 %v2942
      %v3011 = vunpack.c.l.b16 %v2943
      %v3012 = vunpack.c.l.b16 %v2944
      %v3013 = vunpack.c.l.b16 %v2945
      %v3014 = vunpack.c.l.b16 %v2946
      %v3015 = vunpack.c.l.b16 %v2947
      %v3016 = vunpack.c.l.b16 %v2948
      %v3017 = vunpack.c.l.b16 %v2949
      %v3018 = vunpack.c.l.b16 %v2950
      %v3019 = vunpack.c.l.b16 %v2951
      %v3020 = vunpack.c.l.b16 %v2952
      %v3021 = vunpack.c.l.b16 %v2953
      %v3022 = vunpack.c.l.b16 %v2954
      %v3023 = vunpack.c.l.b16 %v2955
      %v3024 = vpack.c.b16 %v2993, %v2992
      %v3025 = vpack.c.b16 %v2995, %v2994
      %v3026 = vpack.c.b16 %v2997, %v2996
      %v3027 = vpack.c.b16 %v2999, %v2998
      %v3028 = vpack.c.b16 %v3001, %v3000
      %v3029 = vpack.c.b16 %v3003, %v3002
      %v3030 = vpack.c.b16 %v3005, %v3004
      %v3031 = vpack.c.b16 %v3007, %v3006
      %v3032 = vpack.c.b16 %v3009, %v3008
      %v3033 = vpack.c.b16 %v3011, %v3010
      %v3034 = vpack.c.b16 %v3013, %v3012
      %v3035 = vpack.c.b16 %v3015, %v3014
      %v3036 = vpack.c.b16 %v3017, %v3016
      %v3037 = vpack.c.b16 %v3019, %v3018
      %v3038 = vpack.c.b16 %v3021, %v3020
      %v3039 = vpack.c.b16 %v3023, %v3022
      %3056 = vmatprep.subr.bf16.mxu0 0
      %3057 = vmatpush1.bf16.msra.mxu0 %v3024
      %3058 = vmatprep.subr.bf16.mxu0 0
      %3059 = vmatpush1.bf16.msra.mxu0 %v3025
      %3060 = vmatprep.subr.bf16.mxu0 0
      %3061 = vmatpush1.bf16.msra.mxu0 %v3026
      %3062 = vmatprep.subr.bf16.mxu0 0
      %3063 = vmatpush1.bf16.msra.mxu0 %v3027
      %3064 = vmatprep.subr.bf16.mxu0 0
      %3065 = vmatpush1.bf16.msra.mxu0 %v3028
      %3066 = vmatprep.subr.bf16.mxu0 0
      %3067 = vmatpush1.bf16.msra.mxu0 %v3029
      %3068 = vmatprep.subr.bf16.mxu0 0
      %3069 = vmatpush1.bf16.msra.mxu0 %v3030
      %3070 = vmatprep.subr.bf16.mxu0 0
      %3071 = vmatpush1.bf16.msra.mxu0 %v3031
      %3072 = vmatprep.subr.bf16.mxu0 0
      %3073 = vmatpush1.bf16.msra.mxu0 %v3032
      %3074 = vmatprep.subr.bf16.mxu0 0
      %3075 = vmatpush1.bf16.msra.mxu0 %v3033
      %3076 = vmatprep.subr.bf16.mxu0 0
      %3077 = vmatpush1.bf16.msra.mxu0 %v3034
      %3078 = vmatprep.subr.bf16.mxu0 0
      %3079 = vmatpush1.bf16.msra.mxu0 %v3035
      %3080 = vmatprep.subr.bf16.mxu0 0
      %3081 = vmatpush1.bf16.msra.mxu0 %v3036
      %3082 = vmatprep.subr.bf16.mxu0 0
      %3083 = vmatpush1.bf16.msra.mxu0 %v3037
      %3084 = vmatprep.subr.bf16.mxu0 0
      %3085 = vmatpush1.bf16.msra.mxu0 %v3038
      %3086 = vmatprep.subr.bf16.mxu0 0
      %3087 = vmatpush1.bf16.msra.mxu0 %v3039
      %3088 = vmatprep.mubr.bf16.mxu0 %v2957
      %3089 = vmatmul.mubr.bf16.gmra.mrb[0].mxu0 %v2956
      %v3090 = vpop.f32.mrb[0].mxu0
      %v3091 = vadd.f32 0.0, %v3090
      %v3092 = vpop.f32.mrb[0].mxu0
      %v3093 = vpop.f32.mrb[0].mxu0
      %v3094 = vpop.f32.mrb[0].mxu0
      %3095 = vdwg.mxu0
      %v3096 = vadd.f32 %v2922, %v3091
      %s3097 = scalar_lea.vmem %s3, 1792
      %v3098 = vld [vmem:[%s3097] sm:$0xf]
      %v3099 = vld [vmem:[%s3097 + $0x4] sm:$0xf]
      %v3100 = vld [vmem:[%s3097 + $0x8] sm:$0xf]
      %v3101 = vld [vmem:[%s3097 + $0xc] sm:$0xf]
      %v3102 = vld [vmem:[%s3097 + $0x10] sm:$0xf]
      %v3103 = vld [vmem:[%s3097 + $0x14] sm:$0xf]
      %v3104 = vld [vmem:[%s3097 + $0x18] sm:$0xf]
      %v3105 = vld [vmem:[%s3097 + $0x1c] sm:$0xf]
      %v3106 = vld [vmem:[%s3097 + $0x20] sm:$0xf]
      %v3107 = vld [vmem:[%s3097 + $0x24] sm:$0xf]
      %v3108 = vld [vmem:[%s3097 + $0x28] sm:$0xf]
      %v3109 = vld [vmem:[%s3097 + $0x2c] sm:$0xf]
      %v3110 = vld [vmem:[%s3097 + $0x30] sm:$0xf]
      %v3111 = vld [vmem:[%s3097 + $0x34] sm:$0xf]
      %v3112 = vld [vmem:[%s3097 + $0x38] sm:$0xf]
      %v3113 = vld [vmem:[%s3097 + $0x3c] sm:$0xf]
      %v3114 = vld [vmem:[%s3097 + $0x40] sm:$0xf]
      %v3115 = vld [vmem:[%s3097 + $0x44] sm:$0xf]
      %v3116 = vld [vmem:[%s3097 + $0x48] sm:$0xf]
      %v3117 = vld [vmem:[%s3097 + $0x4c] sm:$0xf]
      %v3118 = vld [vmem:[%s3097 + $0x50] sm:$0xf]
      %v3119 = vld [vmem:[%s3097 + $0x54] sm:$0xf]
      %v3120 = vld [vmem:[%s3097 + $0x58] sm:$0xf]
      %v3121 = vld [vmem:[%s3097 + $0x5c] sm:$0xf]
      %v3122 = vld [vmem:[%s3097 + $0x60] sm:$0xf]
      %v3123 = vld [vmem:[%s3097 + $0x64] sm:$0xf]
      %v3124 = vld [vmem:[%s3097 + $0x68] sm:$0xf]
      %v3125 = vld [vmem:[%s3097 + $0x6c] sm:$0xf]
      %v3126 = vld [vmem:[%s3097 + $0x70] sm:$0xf]
      %v3127 = vld [vmem:[%s3097 + $0x74] sm:$0xf]
      %v3128 = vld [vmem:[%s3097 + $0x78] sm:$0xf]
      %v3129 = vld [vmem:[%s3097 + $0x7c] sm:$0xf]
      %v3130 = vrot.slane %v2049, 3
      %v3131 = vrot.slane %v2050, 3
      %v3166 = vunpack.c.l.b16 %v3098
      %v3167 = vunpack.c.l.b16 %v3099
      %v3168 = vunpack.c.l.b16 %v3100
      %v3169 = vunpack.c.l.b16 %v3101
      %v3170 = vunpack.c.l.b16 %v3102
      %v3171 = vunpack.c.l.b16 %v3103
      %v3172 = vunpack.c.l.b16 %v3104
      %v3173 = vunpack.c.l.b16 %v3105
      %v3174 = vunpack.c.l.b16 %v3106
      %v3175 = vunpack.c.l.b16 %v3107
      %v3176 = vunpack.c.l.b16 %v3108
      %v3177 = vunpack.c.l.b16 %v3109
      %v3178 = vunpack.c.l.b16 %v3110
      %v3179 = vunpack.c.l.b16 %v3111
      %v3180 = vunpack.c.l.b16 %v3112
      %v3181 = vunpack.c.l.b16 %v3113
      %v3182 = vunpack.c.l.b16 %v3114
      %v3183 = vunpack.c.l.b16 %v3115
      %v3184 = vunpack.c.l.b16 %v3116
      %v3185 = vunpack.c.l.b16 %v3117
      %v3186 = vunpack.c.l.b16 %v3118
      %v3187 = vunpack.c.l.b16 %v3119
      %v3188 = vunpack.c.l.b16 %v3120
      %v3189 = vunpack.c.l.b16 %v3121
      %v3190 = vunpack.c.l.b16 %v3122
      %v3191 = vunpack.c.l.b16 %v3123
      %v3192 = vunpack.c.l.b16 %v3124
      %v3193 = vunpack.c.l.b16 %v3125
      %v3194 = vunpack.c.l.b16 %v3126
      %v3195 = vunpack.c.l.b16 %v3127
      %v3196 = vunpack.c.l.b16 %v3128
      %v3197 = vunpack.c.l.b16 %v3129
      %v3198 = vpack.c.b16 %v3167, %v3166
      %v3199 = vpack.c.b16 %v3169, %v3168
      %v3200 = vpack.c.b16 %v3171, %v3170
      %v3201 = vpack.c.b16 %v3173, %v3172
      %v3202 = vpack.c.b16 %v3175, %v3174
      %v3203 = vpack.c.b16 %v3177, %v3176
      %v3204 = vpack.c.b16 %v3179, %v3178
      %v3205 = vpack.c.b16 %v3181, %v3180
      %v3206 = vpack.c.b16 %v3183, %v3182
      %v3207 = vpack.c.b16 %v3185, %v3184
      %v3208 = vpack.c.b16 %v3187, %v3186
      %v3209 = vpack.c.b16 %v3189, %v3188
      %v3210 = vpack.c.b16 %v3191, %v3190
      %v3211 = vpack.c.b16 %v3193, %v3192
      %v3212 = vpack.c.b16 %v3195, %v3194
      %v3213 = vpack.c.b16 %v3197, %v3196
      %3230 = vmatprep.subr.bf16.mxu0 0
      %3231 = vmatpush1.bf16.msra.mxu0 %v3198
      %3232 = vmatprep.subr.bf16.mxu0 0
      %3233 = vmatpush1.bf16.msra.mxu0 %v3199
      %3234 = vmatprep.subr.bf16.mxu0 0
      %3235 = vmatpush1.bf16.msra.mxu0 %v3200
      %3236 = vmatprep.subr.bf16.mxu0 0
      %3237 = vmatpush1.bf16.msra.mxu0 %v3201
      %3238 = vmatprep.subr.bf16.mxu0 0
      %3239 = vmatpush1.bf16.msra.mxu0 %v3202
      %3240 = vmatprep.subr.bf16.mxu0 0
      %3241 = vmatpush1.bf16.msra.mxu0 %v3203
      %3242 = vmatprep.subr.bf16.mxu0 0
      %3243 = vmatpush1.bf16.msra.mxu0 %v3204
      %3244 = vmatprep.subr.bf16.mxu0 0
      %3245 = vmatpush1.bf16.msra.mxu0 %v3205
      %3246 = vmatprep.subr.bf16.mxu0 0
      %3247 = vmatpush1.bf16.msra.mxu0 %v3206
      %3248 = vmatprep.subr.bf16.mxu0 0
      %3249 = vmatpush1.bf16.msra.mxu0 %v3207
      %3250 = vmatprep.subr.bf16.mxu0 0
      %3251 = vmatpush1.bf16.msra.mxu0 %v3208
      %3252 = vmatprep.subr.bf16.mxu0 0
      %3253 = vmatpush1.bf16.msra.mxu0 %v3209
      %3254 = vmatprep.subr.bf16.mxu0 0
      %3255 = vmatpush1.bf16.msra.mxu0 %v3210
      %3256 = vmatprep.subr.bf16.mxu0 0
      %3257 = vmatpush1.bf16.msra.mxu0 %v3211
      %3258 = vmatprep.subr.bf16.mxu0 0
      %3259 = vmatpush1.bf16.msra.mxu0 %v3212
      %3260 = vmatprep.subr.bf16.mxu0 0
      %3261 = vmatpush1.bf16.msra.mxu0 %v3213
      %3262 = vmatprep.mubr.bf16.mxu0 %v3131
      %3263 = vmatmul.mubr.bf16.gmra.mrb[0].mxu0 %v3130
      %v3264 = vpop.f32.mrb[0].mxu0
      %v3265 = vadd.f32 0.0, %v3264
      %v3266 = vpop.f32.mrb[0].mxu0
      %v3267 = vpop.f32.mrb[0].mxu0
      %v3268 = vpop.f32.mrb[0].mxu0
      %3269 = vdwg.mxu0
      %v3270 = vadd.f32 %v3096, %v3265
      %s3271 = scalar_lea.vmem %s3, 1920
      %v3272 = vld [vmem:[%s3271] sm:$0xf]
      %v3273 = vld [vmem:[%s3271 + $0x4] sm:$0xf]
      %v3274 = vld [vmem:[%s3271 + $0x8] sm:$0xf]
      %v3275 = vld [vmem:[%s3271 + $0xc] sm:$0xf]
      %v3276 = vld [vmem:[%s3271 + $0x10] sm:$0xf]
      %v3277 = vld [vmem:[%s3271 + $0x14] sm:$0xf]
      %v3278 = vld [vmem:[%s3271 + $0x18] sm:$0xf]
      %v3279 = vld [vmem:[%s3271 + $0x1c] sm:$0xf]
      %v3280 = vld [vmem:[%s3271 + $0x20] sm:$0xf]
      %v3281 = vld [vmem:[%s3271 + $0x24] sm:$0xf]
      %v3282 = vld [vmem:[%s3271 + $0x28] sm:$0xf]
      %v3283 = vld [vmem:[%s3271 + $0x2c] sm:$0xf]
      %v3284 = vld [vmem:[%s3271 + $0x30] sm:$0xf]
      %v3285 = vld [vmem:[%s3271 + $0x34] sm:$0xf]
      %v3286 = vld [vmem:[%s3271 + $0x38] sm:$0xf]
      %v3287 = vld [vmem:[%s3271 + $0x3c] sm:$0xf]
      %v3288 = vld [vmem:[%s3271 + $0x40] sm:$0xf]
      %v3289 = vld [vmem:[%s3271 + $0x44] sm:$0xf]
      %v3290 = vld [vmem:[%s3271 + $0x48] sm:$0xf]
      %v3291 = vld [vmem:[%s3271 + $0x4c] sm:$0xf]
      %v3292 = vld [vmem:[%s3271 + $0x50] sm:$0xf]
      %v3293 = vld [vmem:[%s3271 + $0x54] sm:$0xf]
      %v3294 = vld [vmem:[%s3271 + $0x58] sm:$0xf]
      %v3295 = vld [vmem:[%s3271 + $0x5c] sm:$0xf]
      %v3296 = vld [vmem:[%s3271 + $0x60] sm:$0xf]
      %v3297 = vld [vmem:[%s3271 + $0x64] sm:$0xf]
      %v3298 = vld [vmem:[%s3271 + $0x68] sm:$0xf]
      %v3299 = vld [vmem:[%s3271 + $0x6c] sm:$0xf]
      %v3300 = vld [vmem:[%s3271 + $0x70] sm:$0xf]
      %v3301 = vld [vmem:[%s3271 + $0x74] sm:$0xf]
      %v3302 = vld [vmem:[%s3271 + $0x78] sm:$0xf]
      %v3303 = vld [vmem:[%s3271 + $0x7c] sm:$0xf]
      %v3304 = vrot.slane %v2255, 3
      %v3305 = vrot.slane %v2258, 3
      %v3340 = vunpack.c.l.b16 %v3272
      %v3341 = vunpack.c.l.b16 %v3273
      %v3342 = vunpack.c.l.b16 %v3274
      %v3343 = vunpack.c.l.b16 %v3275
      %v3344 = vunpack.c.l.b16 %v3276
      %v3345 = vunpack.c.l.b16 %v3277
      %v3346 = vunpack.c.l.b16 %v3278
      %v3347 = vunpack.c.l.b16 %v3279
      %v3348 = vunpack.c.l.b16 %v3280
      %v3349 = vunpack.c.l.b16 %v3281
      %v3350 = vunpack.c.l.b16 %v3282
      %v3351 = vunpack.c.l.b16 %v3283
      %v3352 = vunpack.c.l.b16 %v3284
      %v3353 = vunpack.c.l.b16 %v3285
      %v3354 = vunpack.c.l.b16 %v3286
      %v3355 = vunpack.c.l.b16 %v3287
      %v3356 = vunpack.c.l.b16 %v3288
      %v3357 = vunpack.c.l.b16 %v3289
      %v3358 = vunpack.c.l.b16 %v3290
      %v3359 = vunpack.c.l.b16 %v3291
      %v3360 = vunpack.c.l.b16 %v3292
      %v3361 = vunpack.c.l.b16 %v3293
      %v3362 = vunpack.c.l.b16 %v3294
      %v3363 = vunpack.c.l.b16 %v3295
      %v3364 = vunpack.c.l.b16 %v3296
      %v3365 = vunpack.c.l.b16 %v3297
      %v3366 = vunpack.c.l.b16 %v3298
      %v3367 = vunpack.c.l.b16 %v3299
      %v3368 = vunpack.c.l.b16 %v3300
      %v3369 = vunpack.c.l.b16 %v3301
      %v3370 = vunpack.c.l.b16 %v3302
      %v3371 = vunpack.c.l.b16 %v3303
      %v3372 = vpack.c.b16 %v3341, %v3340
      %v3373 = vpack.c.b16 %v3343, %v3342
      %v3374 = vpack.c.b16 %v3345, %v3344
      %v3375 = vpack.c.b16 %v3347, %v3346
      %v3376 = vpack.c.b16 %v3349, %v3348
      %v3377 = vpack.c.b16 %v3351, %v3350
      %v3378 = vpack.c.b16 %v3353, %v3352
      %v3379 = vpack.c.b16 %v3355, %v3354
      %v3380 = vpack.c.b16 %v3357, %v3356
      %v3381 = vpack.c.b16 %v3359, %v3358
      %v3382 = vpack.c.b16 %v3361, %v3360
      %v3383 = vpack.c.b16 %v3363, %v3362
      %v3384 = vpack.c.b16 %v3365, %v3364
      %v3385 = vpack.c.b16 %v3367, %v3366
      %v3386 = vpack.c.b16 %v3369, %v3368
      %v3387 = vpack.c.b16 %v3371, %v3370
      %3404 = vmatprep.subr.bf16.mxu0 0
      %3405 = vmatpush1.bf16.msra.mxu0 %v3372
      %3406 = vmatprep.subr.bf16.mxu0 0
      %3407 = vmatpush1.bf16.msra.mxu0 %v3373
      %3408 = vmatprep.subr.bf16.mxu0 0
      %3409 = vmatpush1.bf16.msra.mxu0 %v3374
      %3410 = vmatprep.subr.bf16.mxu0 0
      %3411 = vmatpush1.bf16.msra.mxu0 %v3375
      %3412 = vmatprep.subr.bf16.mxu0 0
      %3413 = vmatpush1.bf16.msra.mxu0 %v3376
      %3414 = vmatprep.subr.bf16.mxu0 0
      %3415 = vmatpush1.bf16.msra.mxu0 %v3377
      %3416 = vmatprep.subr.bf16.mxu0 0
      %3417 = vmatpush1.bf16.msra.mxu0 %v3378
      %3418 = vmatprep.subr.bf16.mxu0 0
      %3419 = vmatpush1.bf16.msra.mxu0 %v3379
      %3420 = vmatprep.subr.bf16.mxu0 0
      %3421 = vmatpush1.bf16.msra.mxu0 %v3380
      %3422 = vmatprep.subr.bf16.mxu0 0
      %3423 = vmatpush1.bf16.msra.mxu0 %v3381
      %3424 = vmatprep.subr.bf16.mxu0 0
      %3425 = vmatpush1.bf16.msra.mxu0 %v3382
      %3426 = vmatprep.subr.bf16.mxu0 0
      %3427 = vmatpush1.bf16.msra.mxu0 %v3383
      %3428 = vmatprep.subr.bf16.mxu0 0
      %3429 = vmatpush1.bf16.msra.mxu0 %v3384
      %3430 = vmatprep.subr.bf16.mxu0 0
      %3431 = vmatpush1.bf16.msra.mxu0 %v3385
      %3432 = vmatprep.subr.bf16.mxu0 0
      %3433 = vmatpush1.bf16.msra.mxu0 %v3386
      %3434 = vmatprep.subr.bf16.mxu0 0
      %3435 = vmatpush1.bf16.msra.mxu0 %v3387
      %3436 = vmatprep.mubr.bf16.mxu0 %v3305
      %3437 = vmatmul.mubr.bf16.gmra.mrb[0].mxu0 %v3304
      %v3438 = vpop.f32.mrb[0].mxu0
      %v3439 = vadd.f32 0.0, %v3438
      %v3440 = vpop.f32.mrb[0].mxu0
      %v3441 = vpop.f32.mrb[0].mxu0
      %v3442 = vpop.f32.mrb[0].mxu0
      %3443 = vdwg.mxu0
      %v3444 = vadd.f32 %v3270, %v3439
      %v3445 = vpack.c.bf16 %v649, %v649
      %v3446 = vpack.c.bf16 %v650, %v650
      %s3447 = scalar_lea.vmem %s3, 2048
      %v3448 = vld [vmem:[%s3447] sm:$0xf]
      %v3449 = vld [vmem:[%s3447 + $0x4] sm:$0xf]
      %v3450 = vld [vmem:[%s3447 + $0x8] sm:$0xf]
      %v3451 = vld [vmem:[%s3447 + $0xc] sm:$0xf]
      %v3452 = vld [vmem:[%s3447 + $0x10] sm:$0xf]
      %v3453 = vld [vmem:[%s3447 + $0x14] sm:$0xf]
      %v3454 = vld [vmem:[%s3447 + $0x18] sm:$0xf]
      %v3455 = vld [vmem:[%s3447 + $0x1c] sm:$0xf]
      %v3456 = vld [vmem:[%s3447 + $0x20] sm:$0xf]
      %v3457 = vld [vmem:[%s3447 + $0x24] sm:$0xf]
      %v3458 = vld [vmem:[%s3447 + $0x28] sm:$0xf]
      %v3459 = vld [vmem:[%s3447 + $0x2c] sm:$0xf]
      %v3460 = vld [vmem:[%s3447 + $0x30] sm:$0xf]
      %v3461 = vld [vmem:[%s3447 + $0x34] sm:$0xf]
      %v3462 = vld [vmem:[%s3447 + $0x38] sm:$0xf]
      %v3463 = vld [vmem:[%s3447 + $0x3c] sm:$0xf]
      %v3464 = vld [vmem:[%s3447 + $0x40] sm:$0xf]
      %v3465 = vld [vmem:[%s3447 + $0x44] sm:$0xf]
      %v3466 = vld [vmem:[%s3447 + $0x48] sm:$0xf]
      %v3467 = vld [vmem:[%s3447 + $0x4c] sm:$0xf]
      %v3468 = vld [vmem:[%s3447 + $0x50] sm:$0xf]
      %v3469 = vld [vmem:[%s3447 + $0x54] sm:$0xf]
      %v3470 = vld [vmem:[%s3447 + $0x58] sm:$0xf]
      %v3471 = vld [vmem:[%s3447 + $0x5c] sm:$0xf]
      %v3472 = vld [vmem:[%s3447 + $0x60] sm:$0xf]
      %v3473 = vld [vmem:[%s3447 + $0x64] sm:$0xf]
      %v3474 = vld [vmem:[%s3447 + $0x68] sm:$0xf]
      %v3475 = vld [vmem:[%s3447 + $0x6c] sm:$0xf]
      %v3476 = vld [vmem:[%s3447 + $0x70] sm:$0xf]
      %v3477 = vld [vmem:[%s3447 + $0x74] sm:$0xf]
      %v3478 = vld [vmem:[%s3447 + $0x78] sm:$0xf]
      %v3479 = vld [vmem:[%s3447 + $0x7c] sm:$0xf]
      %v3512 = vunpack.c.l.b16 %v3448
      %v3513 = vunpack.c.l.b16 %v3449
      %v3514 = vunpack.c.l.b16 %v3450
      %v3515 = vunpack.c.l.b16 %v3451
      %v3516 = vunpack.c.l.b16 %v3452
      %v3517 = vunpack.c.l.b16 %v3453
      %v3518 = vunpack.c.l.b16 %v3454
      %v3519 = vunpack.c.l.b16 %v3455
      %v3520 = vunpack.c.l.b16 %v3456
      %v3521 = vunpack.c.l.b16 %v3457
      %v3522 = vunpack.c.l.b16 %v3458
      %v3523 = vunpack.c.l.b16 %v3459
      %v3524 = vunpack.c.l.b16 %v3460
      %v3525 = vunpack.c.l.b16 %v3461
      %v3526 = vunpack.c.l.b16 %v3462
      %v3527 = vunpack.c.l.b16 %v3463
      %v3528 = vunpack.c.l.b16 %v3464
      %v3529 = vunpack.c.l.b16 %v3465
      %v3530 = vunpack.c.l.b16 %v3466
      %v3531 = vunpack.c.l.b16 %v3467
      %v3532 = vunpack.c.l.b16 %v3468
      %v3533 = vunpack.c.l.b16 %v3469
      %v3534 = vunpack.c.l.b16 %v3470
      %v3535 = vunpack.c.l.b16 %v3471
      %v3536 = vunpack.c.l.b16 %v3472
      %v3537 = vunpack.c.l.b16 %v3473
      %v3538 = vunpack.c.l.b16 %v3474
      %v3539 = vunpack.c.l.b16 %v3475
      %v3540 = vunpack.c.l.b16 %v3476
      %v3541 = vunpack.c.l.b16 %v3477
      %v3542 = vunpack.c.l.b16 %v3478
      %v3543 = vunpack.c.l.b16 %v3479
      %v3544 = vpack.c.b16 %v3513, %v3512
      %v3545 = vpack.c.b16 %v3515, %v3514
      %v3546 = vpack.c.b16 %v3517, %v3516
      %v3547 = vpack.c.b16 %v3519, %v3518
      %v3548 = vpack.c.b16 %v3521, %v3520
      %v3549 = vpack.c.b16 %v3523, %v3522
      %v3550 = vpack.c.b16 %v3525, %v3524
      %v3551 = vpack.c.b16 %v3527, %v3526
      %v3552 = vpack.c.b16 %v3529, %v3528
      %v3553 = vpack.c.b16 %v3531, %v3530
      %v3554 = vpack.c.b16 %v3533, %v3532
      %v3555 = vpack.c.b16 %v3535, %v3534
      %v3556 = vpack.c.b16 %v3537, %v3536
      %v3557 = vpack.c.b16 %v3539, %v3538
      %v3558 = vpack.c.b16 %v3541, %v3540
      %v3559 = vpack.c.b16 %v3543, %v3542
      %3576 = vmatprep.subr.bf16.mxu0 0
      %3577 = vmatpush1.bf16.msra.mxu0 %v3544
      %3578 = vmatprep.subr.bf16.mxu0 0
      %3579 = vmatpush1.bf16.msra.mxu0 %v3545
      %3580 = vmatprep.subr.bf16.mxu0 0
      %3581 = vmatpush1.bf16.msra.mxu0 %v3546
      %3582 = vmatprep.subr.bf16.mxu0 0
      %3583 = vmatpush1.bf16.msra.mxu0 %v3547
      %3584 = vmatprep.subr.bf16.mxu0 0
      %3585 = vmatpush1.bf16.msra.mxu0 %v3548
      %3586 = vmatprep.subr.bf16.mxu0 0
      %3587 = vmatpush1.bf16.msra.mxu0 %v3549
      %3588 = vmatprep.subr.bf16.mxu0 0
      %3589 = vmatpush1.bf16.msra.mxu0 %v3550
      %3590 = vmatprep.subr.bf16.mxu0 0
      %3591 = vmatpush1.bf16.msra.mxu0 %v3551
      %3592 = vmatprep.subr.bf16.mxu0 0
      %3593 = vmatpush1.bf16.msra.mxu0 %v3552
      %3594 = vmatprep.subr.bf16.mxu0 0
      %3595 = vmatpush1.bf16.msra.mxu0 %v3553
      %3596 = vmatprep.subr.bf16.mxu0 0
      %3597 = vmatpush1.bf16.msra.mxu0 %v3554
      %3598 = vmatprep.subr.bf16.mxu0 0
      %3599 = vmatpush1.bf16.msra.mxu0 %v3555
      %3600 = vmatprep.subr.bf16.mxu0 0
      %3601 = vmatpush1.bf16.msra.mxu0 %v3556
      %3602 = vmatprep.subr.bf16.mxu0 0
      %3603 = vmatpush1.bf16.msra.mxu0 %v3557
      %3604 = vmatprep.subr.bf16.mxu0 0
      %3605 = vmatpush1.bf16.msra.mxu0 %v3558
      %3606 = vmatprep.subr.bf16.mxu0 0
      %3607 = vmatpush1.bf16.msra.mxu0 %v3559
      %3608 = vmatprep.mubr.bf16.mxu0 %v3446
      %3609 = vmatmul.mubr.bf16.gmra.mrb[0].mxu0 %v3445
      %v3610 = vpop.f32.mrb[0].mxu0
      %v3611 = vadd.f32 0.0, %v3610
      %v3612 = vpop.f32.mrb[0].mxu0
      %v3613 = vpop.f32.mrb[0].mxu0
      %v3614 = vpop.f32.mrb[0].mxu0
      %3615 = vdwg.mxu0
      %v3616 = vadd.f32 %v3444, %v3611
      %s3617 = scalar_lea.vmem %s3, 2176
      %v3618 = vld [vmem:[%s3617] sm:$0xf]
      %v3619 = vld [vmem:[%s3617 + $0x4] sm:$0xf]
      %v3620 = vld [vmem:[%s3617 + $0x8] sm:$0xf]
      %v3621 = vld [vmem:[%s3617 + $0xc] sm:$0xf]
      %v3622 = vld [vmem:[%s3617 + $0x10] sm:$0xf]
      %v3623 = vld [vmem:[%s3617 + $0x14] sm:$0xf]
      %v3624 = vld [vmem:[%s3617 + $0x18] sm:$0xf]
      %v3625 = vld [vmem:[%s3617 + $0x1c] sm:$0xf]
      %v3626 = vld [vmem:[%s3617 + $0x20] sm:$0xf]
      %v3627 = vld [vmem:[%s3617 + $0x24] sm:$0xf]
      %v3628 = vld [vmem:[%s3617 + $0x28] sm:$0xf]
      %v3629 = vld [vmem:[%s3617 + $0x2c] sm:$0xf]
      %v3630 = vld [vmem:[%s3617 + $0x30] sm:$0xf]
      %v3631 = vld [vmem:[%s3617 + $0x34] sm:$0xf]
      %v3632 = vld [vmem:[%s3617 + $0x38] sm:$0xf]
      %v3633 = vld [vmem:[%s3617 + $0x3c] sm:$0xf]
      %v3634 = vld [vmem:[%s3617 + $0x40] sm:$0xf]
      %v3635 = vld [vmem:[%s3617 + $0x44] sm:$0xf]
      %v3636 = vld [vmem:[%s3617 + $0x48] sm:$0xf]
      %v3637 = vld [vmem:[%s3617 + $0x4c] sm:$0xf]
      %v3638 = vld [vmem:[%s3617 + $0x50] sm:$0xf]
      %v3639 = vld [vmem:[%s3617 + $0x54] sm:$0xf]
      %v3640 = vld [vmem:[%s3617 + $0x58] sm:$0xf]
      %v3641 = vld [vmem:[%s3617 + $0x5c] sm:$0xf]
      %v3642 = vld [vmem:[%s3617 + $0x60] sm:$0xf]
      %v3643 = vld [vmem:[%s3617 + $0x64] sm:$0xf]
      %v3644 = vld [vmem:[%s3617 + $0x68] sm:$0xf]
      %v3645 = vld [vmem:[%s3617 + $0x6c] sm:$0xf]
      %v3646 = vld [vmem:[%s3617 + $0x70] sm:$0xf]
      %v3647 = vld [vmem:[%s3617 + $0x74] sm:$0xf]
      %v3648 = vld [vmem:[%s3617 + $0x78] sm:$0xf]
      %v3649 = vld [vmem:[%s3617 + $0x7c] sm:$0xf]
      %v3651 = vshrl.u32 %v3445, 16
      %v3654 = vshrl.u32 %v3446, 16
      %v3690 = vunpack.c.l.b16 %v3618
      %v3691 = vunpack.c.l.b16 %v3619
      %v3692 = vunpack.c.l.b16 %v3620
      %v3693 = vunpack.c.l.b16 %v3621
      %v3694 = vunpack.c.l.b16 %v3622
      %v3695 = vunpack.c.l.b16 %v3623
      %v3696 = vunpack.c.l.b16 %v3624
      %v3697 = vunpack.c.l.b16 %v3625
      %v3698 = vunpack.c.l.b16 %v3626
      %v3699 = vunpack.c.l.b16 %v3627
      %v3700 = vunpack.c.l.b16 %v3628
      %v3701 = vunpack.c.l.b16 %v3629
      %v3702 = vunpack.c.l.b16 %v3630
      %v3703 = vunpack.c.l.b16 %v3631
      %v3704 = vunpack.c.l.b16 %v3632
      %v3705 = vunpack.c.l.b16 %v3633
      %v3706 = vunpack.c.l.b16 %v3634
      %v3707 = vunpack.c.l.b16 %v3635
      %v3708 = vunpack.c.l.b16 %v3636
      %v3709 = vunpack.c.l.b16 %v3637
      %v3710 = vunpack.c.l.b16 %v3638
      %v3711 = vunpack.c.l.b16 %v3639
      %v3712 = vunpack.c.l.b16 %v3640
      %v3713 = vunpack.c.l.b16 %v3641
      %v3714 = vunpack.c.l.b16 %v3642
      %v3715 = vunpack.c.l.b16 %v3643
      %v3716 = vunpack.c.l.b16 %v3644
      %v3717 = vunpack.c.l.b16 %v3645
      %v3718 = vunpack.c.l.b16 %v3646
      %v3719 = vunpack.c.l.b16 %v3647
      %v3720 = vunpack.c.l.b16 %v3648
      %v3721 = vunpack.c.l.b16 %v3649
      %v3722 = vpack.c.b16 %v3691, %v3690
      %v3723 = vpack.c.b16 %v3693, %v3692
      %v3724 = vpack.c.b16 %v3695, %v3694
      %v3725 = vpack.c.b16 %v3697, %v3696
      %v3726 = vpack.c.b16 %v3699, %v3698
      %v3727 = vpack.c.b16 %v3701, %v3700
      %v3728 = vpack.c.b16 %v3703, %v3702
      %v3729 = vpack.c.b16 %v3705, %v3704
      %v3730 = vpack.c.b16 %v3707, %v3706
      %v3731 = vpack.c.b16 %v3709, %v3708
      %v3732 = vpack.c.b16 %v3711, %v3710
      %v3733 = vpack.c.b16 %v3713, %v3712
      %v3734 = vpack.c.b16 %v3715, %v3714
      %v3735 = vpack.c.b16 %v3717, %v3716
      %v3736 = vpack.c.b16 %v3719, %v3718
      %v3737 = vpack.c.b16 %v3721, %v3720
      %3754 = vmatprep.subr.bf16.mxu0 0
      %3755 = vmatpush1.bf16.msra.mxu0 %v3722
      %3756 = vmatprep.subr.bf16.mxu0 0
      %3757 = vmatpush1.bf16.msra.mxu0 %v3723
      %3758 = vmatprep.subr.bf16.mxu0 0
      %3759 = vmatpush1.bf16.msra.mxu0 %v3724
      %3760 = vmatprep.subr.bf16.mxu0 0
      %3761 = vmatpush1.bf16.msra.mxu0 %v3725
      %3762 = vmatprep.subr.bf16.mxu0 0
      %3763 = vmatpush1.bf16.msra.mxu0 %v3726
      %3764 = vmatprep.subr.bf16.mxu0 0
      %3765 = vmatpush1.bf16.msra.mxu0 %v3727
      %3766 = vmatprep.subr.bf16.mxu0 0
      %3767 = vmatpush1.bf16.msra.mxu0 %v3728
      %3768 = vmatprep.subr.bf16.mxu0 0
      %3769 = vmatpush1.bf16.msra.mxu0 %v3729
      %3770 = vmatprep.subr.bf16.mxu0 0
      %3771 = vmatpush1.bf16.msra.mxu0 %v3730
      %3772 = vmatprep.subr.bf16.mxu0 0
      %3773 = vmatpush1.bf16.msra.mxu0 %v3731
      %3774 = vmatprep.subr.bf16.mxu0 0
      %3775 = vmatpush1.bf16.msra.mxu0 %v3732
      %3776 = vmatprep.subr.bf16.mxu0 0
      %3777 = vmatpush1.bf16.msra.mxu0 %v3733
      %3778 = vmatprep.subr.bf16.mxu0 0
      %3779 = vmatpush1.bf16.msra.mxu0 %v3734
      %3780 = vmatprep.subr.bf16.mxu0 0
      %3781 = vmatpush1.bf16.msra.mxu0 %v3735
      %3782 = vmatprep.subr.bf16.mxu0 0
      %3783 = vmatpush1.bf16.msra.mxu0 %v3736
      %3784 = vmatprep.subr.bf16.mxu0 0
      %3785 = vmatpush1.bf16.msra.mxu0 %v3737
      %3786 = vmatprep.mubr.bf16.mxu0 %v3654
      %3787 = vmatmul.mubr.bf16.gmra.mrb[0].mxu0 %v3651
      %v3788 = vpop.f32.mrb[0].mxu0
      %v3789 = vadd.f32 0.0, %v3788
      %v3790 = vpop.f32.mrb[0].mxu0
      %v3791 = vpop.f32.mrb[0].mxu0
      %v3792 = vpop.f32.mrb[0].mxu0
      %3793 = vdwg.mxu0
      %v3794 = vadd.f32 %v3616, %v3789
      %s3795 = scalar_lea.vmem %s3, 2304
      %v3796 = vld [vmem:[%s3795] sm:$0xf]
      %v3797 = vld [vmem:[%s3795 + $0x4] sm:$0xf]
      %v3798 = vld [vmem:[%s3795 + $0x8] sm:$0xf]
      %v3799 = vld [vmem:[%s3795 + $0xc] sm:$0xf]
      %v3800 = vld [vmem:[%s3795 + $0x10] sm:$0xf]
      %v3801 = vld [vmem:[%s3795 + $0x14] sm:$0xf]
      %v3802 = vld [vmem:[%s3795 + $0x18] sm:$0xf]
      %v3803 = vld [vmem:[%s3795 + $0x1c] sm:$0xf]
      %v3804 = vld [vmem:[%s3795 + $0x20] sm:$0xf]
      %v3805 = vld [vmem:[%s3795 + $0x24] sm:$0xf]
      %v3806 = vld [vmem:[%s3795 + $0x28] sm:$0xf]
      %v3807 = vld [vmem:[%s3795 + $0x2c] sm:$0xf]
      %v3808 = vld [vmem:[%s3795 + $0x30] sm:$0xf]
      %v3809 = vld [vmem:[%s3795 + $0x34] sm:$0xf]
      %v3810 = vld [vmem:[%s3795 + $0x38] sm:$0xf]
      %v3811 = vld [vmem:[%s3795 + $0x3c] sm:$0xf]
      %v3812 = vld [vmem:[%s3795 + $0x40] sm:$0xf]
      %v3813 = vld [vmem:[%s3795 + $0x44] sm:$0xf]
      %v3814 = vld [vmem:[%s3795 + $0x48] sm:$0xf]
      %v3815 = vld [vmem:[%s3795 + $0x4c] sm:$0xf]
      %v3816 = vld [vmem:[%s3795 + $0x50] sm:$0xf]
      %v3817 = vld [vmem:[%s3795 + $0x54] sm:$0xf]
      %v3818 = vld [vmem:[%s3795 + $0x58] sm:$0xf]
      %v3819 = vld [vmem:[%s3795 + $0x5c] sm:$0xf]
      %v3820 = vld [vmem:[%s3795 + $0x60] sm:$0xf]
      %v3821 = vld [vmem:[%s3795 + $0x64] sm:$0xf]
      %v3822 = vld [vmem:[%s3795 + $0x68] sm:$0xf]
      %v3823 = vld [vmem:[%s3795 + $0x6c] sm:$0xf]
      %v3824 = vld [vmem:[%s3795 + $0x70] sm:$0xf]
      %v3825 = vld [vmem:[%s3795 + $0x74] sm:$0xf]
      %v3826 = vld [vmem:[%s3795 + $0x78] sm:$0xf]
      %v3827 = vld [vmem:[%s3795 + $0x7c] sm:$0xf]
      %v3830 = vrot.slane %v3445, 1
      %v3831 = vrot.slane %v3446, 1
      %v3866 = vunpack.c.l.b16 %v3796
      %v3867 = vunpack.c.l.b16 %v3797
      %v3868 = vunpack.c.l.b16 %v3798
      %v3869 = vunpack.c.l.b16 %v3799
      %v3870 = vunpack.c.l.b16 %v3800
      %v3871 = vunpack.c.l.b16 %v3801
      %v3872 = vunpack.c.l.b16 %v3802
      %v3873 = vunpack.c.l.b16 %v3803
      %v3874 = vunpack.c.l.b16 %v3804
      %v3875 = vunpack.c.l.b16 %v3805
      %v3876 = vunpack.c.l.b16 %v3806
      %v3877 = vunpack.c.l.b16 %v3807
      %v3878 = vunpack.c.l.b16 %v3808
      %v3879 = vunpack.c.l.b16 %v3809
      %v3880 = vunpack.c.l.b16 %v3810
      %v3881 = vunpack.c.l.b16 %v3811
      %v3882 = vunpack.c.l.b16 %v3812
      %v3883 = vunpack.c.l.b16 %v3813
      %v3884 = vunpack.c.l.b16 %v3814
      %v3885 = vunpack.c.l.b16 %v3815
      %v3886 = vunpack.c.l.b16 %v3816
      %v3887 = vunpack.c.l.b16 %v3817
      %v3888 = vunpack.c.l.b16 %v3818
      %v3889 = vunpack.c.l.b16 %v3819
      %v3890 = vunpack.c.l.b16 %v3820
      %v3891 = vunpack.c.l.b16 %v3821
      %v3892 = vunpack.c.l.b16 %v3822
      %v3893 = vunpack.c.l.b16 %v3823
      %v3894 = vunpack.c.l.b16 %v3824
      %v3895 = vunpack.c.l.b16 %v3825
      %v3896 = vunpack.c.l.b16 %v3826
      %v3897 = vunpack.c.l.b16 %v3827
      %v3898 = vpack.c.b16 %v3867, %v3866
      %v3899 = vpack.c.b16 %v3869, %v3868
      %v3900 = vpack.c.b16 %v3871, %v3870
      %v3901 = vpack.c.b16 %v3873, %v3872
      %v3902 = vpack.c.b16 %v3875, %v3874
      %v3903 = vpack.c.b16 %v3877, %v3876
      %v3904 = vpack.c.b16 %v3879, %v3878
      %v3905 = vpack.c.b16 %v3881, %v3880
      %v3906 = vpack.c.b16 %v3883, %v3882
      %v3907 = vpack.c.b16 %v3885, %v3884
      %v3908 = vpack.c.b16 %v3887, %v3886
      %v3909 = vpack.c.b16 %v3889, %v3888
      %v3910 = vpack.c.b16 %v3891, %v3890
      %v3911 = vpack.c.b16 %v3893, %v3892
      %v3912 = vpack.c.b16 %v3895, %v3894
      %v3913 = vpack.c.b16 %v3897, %v3896
      %3930 = vmatprep.subr.bf16.mxu0 0
      %3931 = vmatpush1.bf16.msra.mxu0 %v3898
      %3932 = vmatprep.subr.bf16.mxu0 0
      %3933 = vmatpush1.bf16.msra.mxu0 %v3899
      %3934 = vmatprep.subr.bf16.mxu0 0
      %3935 = vmatpush1.bf16.msra.mxu0 %v3900
      %3936 = vmatprep.subr.bf16.mxu0 0
      %3937 = vmatpush1.bf16.msra.mxu0 %v3901
      %3938 = vmatprep.subr.bf16.mxu0 0
      %3939 = vmatpush1.bf16.msra.mxu0 %v3902
      %3940 = vmatprep.subr.bf16.mxu0 0
      %3941 = vmatpush1.bf16.msra.mxu0 %v3903
      %3942 = vmatprep.subr.bf16.mxu0 0
      %3943 = vmatpush1.bf16.msra.mxu0 %v3904
      %3944 = vmatprep.subr.bf16.mxu0 0
      %3945 = vmatpush1.bf16.msra.mxu0 %v3905
      %3946 = vmatprep.subr.bf16.mxu0 0
      %3947 = vmatpush1.bf16.msra.mxu0 %v3906
      %3948 = vmatprep.subr.bf16.mxu0 0
      %3949 = vmatpush1.bf16.msra.mxu0 %v3907
      %3950 = vmatprep.subr.bf16.mxu0 0
      %3951 = vmatpush1.bf16.msra.mxu0 %v3908
      %3952 = vmatprep.subr.bf16.mxu0 0
      %3953 = vmatpush1.bf16.msra.mxu0 %v3909
      %3954 = vmatprep.subr.bf16.mxu0 0
      %3955 = vmatpush1.bf16.msra.mxu0 %v3910
      %3956 = vmatprep.subr.bf16.mxu0 0
      %3957 = vmatpush1.bf16.msra.mxu0 %v3911
      %3958 = vmatprep.subr.bf16.mxu0 0
      %3959 = vmatpush1.bf16.msra.mxu0 %v3912
      %3960 = vmatprep.subr.bf16.mxu0 0
      %3961 = vmatpush1.bf16.msra.mxu0 %v3913
      %3962 = vmatprep.mubr.bf16.mxu0 %v3831
      %3963 = vmatmul.mubr.bf16.gmra.mrb[0].mxu0 %v3830
      %v3964 = vpop.f32.mrb[0].mxu0
      %v3965 = vadd.f32 0.0, %v3964
      %v3966 = vpop.f32.mrb[0].mxu0
      %v3967 = vpop.f32.mrb[0].mxu0
      %v3968 = vpop.f32.mrb[0].mxu0
      %3969 = vdwg.mxu0
      %v3970 = vadd.f32 %v3794, %v3965
      %s3971 = scalar_lea.vmem %s3, 2432
      %v3972 = vld [vmem:[%s3971] sm:$0xf]
      %v3973 = vld [vmem:[%s3971 + $0x4] sm:$0xf]
      %v3974 = vld [vmem:[%s3971 + $0x8] sm:$0xf]
      %v3975 = vld [vmem:[%s3971 + $0xc] sm:$0xf]
      %v3976 = vld [vmem:[%s3971 + $0x10] sm:$0xf]
      %v3977 = vld [vmem:[%s3971 + $0x14] sm:$0xf]
      %v3978 = vld [vmem:[%s3971 + $0x18] sm:$0xf]
      %v3979 = vld [vmem:[%s3971 + $0x1c] sm:$0xf]
      %v3980 = vld [vmem:[%s3971 + $0x20] sm:$0xf]
      %v3981 = vld [vmem:[%s3971 + $0x24] sm:$0xf]
      %v3982 = vld [vmem:[%s3971 + $0x28] sm:$0xf]
      %v3983 = vld [vmem:[%s3971 + $0x2c] sm:$0xf]
      %v3984 = vld [vmem:[%s3971 + $0x30] sm:$0xf]
      %v3985 = vld [vmem:[%s3971 + $0x34] sm:$0xf]
      %v3986 = vld [vmem:[%s3971 + $0x38] sm:$0xf]
      %v3987 = vld [vmem:[%s3971 + $0x3c] sm:$0xf]
      %v3988 = vld [vmem:[%s3971 + $0x40] sm:$0xf]
      %v3989 = vld [vmem:[%s3971 + $0x44] sm:$0xf]
      %v3990 = vld [vmem:[%s3971 + $0x48] sm:$0xf]
      %v3991 = vld [vmem:[%s3971 + $0x4c] sm:$0xf]
      %v3992 = vld [vmem:[%s3971 + $0x50] sm:$0xf]
      %v3993 = vld [vmem:[%s3971 + $0x54] sm:$0xf]
      %v3994 = vld [vmem:[%s3971 + $0x58] sm:$0xf]
      %v3995 = vld [vmem:[%s3971 + $0x5c] sm:$0xf]
      %v3996 = vld [vmem:[%s3971 + $0x60] sm:$0xf]
      %v3997 = vld [vmem:[%s3971 + $0x64] sm:$0xf]
      %v3998 = vld [vmem:[%s3971 + $0x68] sm:$0xf]
      %v3999 = vld [vmem:[%s3971 + $0x6c] sm:$0xf]
      %v4000 = vld [vmem:[%s3971 + $0x70] sm:$0xf]
      %v4001 = vld [vmem:[%s3971 + $0x74] sm:$0xf]
      %v4002 = vld [vmem:[%s3971 + $0x78] sm:$0xf]
      %v4003 = vld [vmem:[%s3971 + $0x7c] sm:$0xf]
      %v4004 = vrot.slane %v3651, 1
      %v4005 = vrot.slane %v3654, 1
      %v4040 = vunpack.c.l.b16 %v3972
      %v4041 = vunpack.c.l.b16 %v3973
      %v4042 = vunpack.c.l.b16 %v3974
      %v4043 = vunpack.c.l.b16 %v3975
      %v4044 = vunpack.c.l.b16 %v3976
      %v4045 = vunpack.c.l.b16 %v3977
      %v4046 = vunpack.c.l.b16 %v3978
      %v4047 = vunpack.c.l.b16 %v3979
      %v4048 = vunpack.c.l.b16 %v3980
      %v4049 = vunpack.c.l.b16 %v3981
      %v4050 = vunpack.c.l.b16 %v3982
      %v4051 = vunpack.c.l.b16 %v3983
      %v4052 = vunpack.c.l.b16 %v3984
      %v4053 = vunpack.c.l.b16 %v3985
      %v4054 = vunpack.c.l.b16 %v3986
      %v4055 = vunpack.c.l.b16 %v3987
      %v4056 = vunpack.c.l.b16 %v3988
      %v4057 = vunpack.c.l.b16 %v3989
      %v4058 = vunpack.c.l.b16 %v3990
      %v4059 = vunpack.c.l.b16 %v3991
      %v4060 = vunpack.c.l.b16 %v3992
      %v4061 = vunpack.c.l.b16 %v3993
      %v4062 = vunpack.c.l.b16 %v3994
      %v4063 = vunpack.c.l.b16 %v3995
      %v4064 = vunpack.c.l.b16 %v3996
      %v4065 = vunpack.c.l.b16 %v3997
      %v4066 = vunpack.c.l.b16 %v3998
      %v4067 = vunpack.c.l.b16 %v3999
      %v4068 = vunpack.c.l.b16 %v4000
      %v4069 = vunpack.c.l.b16 %v4001
      %v4070 = vunpack.c.l.b16 %v4002
      %v4071 = vunpack.c.l.b16 %v4003
      %v4072 = vpack.c.b16 %v4041, %v4040
      %v4073 = vpack.c.b16 %v4043, %v4042
      %v4074 = vpack.c.b16 %v4045, %v4044
      %v4075 = vpack.c.b16 %v4047, %v4046
      %v4076 = vpack.c.b16 %v4049, %v4048
      %v4077 = vpack.c.b16 %v4051, %v4050
      %v4078 = vpack.c.b16 %v4053, %v4052
      %v4079 = vpack.c.b16 %v4055, %v4054
      %v4080 = vpack.c.b16 %v4057, %v4056
      %v4081 = vpack.c.b16 %v4059, %v4058
      %v4082 = vpack.c.b16 %v4061, %v4060
      %v4083 = vpack.c.b16 %v4063, %v4062
      %v4084 = vpack.c.b16 %v4065, %v4064
      %v4085 = vpack.c.b16 %v4067, %v4066
      %v4086 = vpack.c.b16 %v4069, %v4068
      %v4087 = vpack.c.b16 %v4071, %v4070
      %4104 = vmatprep.subr.bf16.mxu0 0
      %4105 = vmatpush1.bf16.msra.mxu0 %v4072
      %4106 = vmatprep.subr.bf16.mxu0 0
      %4107 = vmatpush1.bf16.msra.mxu0 %v4073
      %4108 = vmatprep.subr.bf16.mxu0 0
      %4109 = vmatpush1.bf16.msra.mxu0 %v4074
      %4110 = vmatprep.subr.bf16.mxu0 0
      %4111 = vmatpush1.bf16.msra.mxu0 %v4075
      %4112 = vmatprep.subr.bf16.mxu0 0
      %4113 = vmatpush1.bf16.msra.mxu0 %v4076
      %4114 = vmatprep.subr.bf16.mxu0 0
      %4115 = vmatpush1.bf16.msra.mxu0 %v4077
      %4116 = vmatprep.subr.bf16.mxu0 0
      %4117 = vmatpush1.bf16.msra.mxu0 %v4078
      %4118 = vmatprep.subr.bf16.mxu0 0
      %4119 = vmatpush1.bf16.msra.mxu0 %v4079
      %4120 = vmatprep.subr.bf16.mxu0 0
      %4121 = vmatpush1.bf16.msra.mxu0 %v4080
      %4122 = vmatprep.subr.bf16.mxu0 0
      %4123 = vmatpush1.bf16.msra.mxu0 %v4081
      %4124 = vmatprep.subr.bf16.mxu0 0
      %4125 = vmatpush1.bf16.msra.mxu0 %v4082
      %4126 = vmatprep.subr.bf16.mxu0 0
      %4127 = vmatpush1.bf16.msra.mxu0 %v4083
      %4128 = vmatprep.subr.bf16.mxu0 0
      %4129 = vmatpush1.bf16.msra.mxu0 %v4084
      %4130 = vmatprep.subr.bf16.mxu0 0
      %4131 = vmatpush1.bf16.msra.mxu0 %v4085
      %4132 = vmatprep.subr.bf16.mxu0 0
      %4133 = vmatpush1.bf16.msra.mxu0 %v4086
      %4134 = vmatprep.subr.bf16.mxu0 0
      %4135 = vmatpush1.bf16.msra.mxu0 %v4087
      %4136 = vmatprep.mubr.bf16.mxu0 %v4005
      %4137 = vmatmul.mubr.bf16.gmra.mrb[0].mxu0 %v4004
      %v4138 = vpop.f32.mrb[0].mxu0
      %v4139 = vadd.f32 0.0, %v4138
      %v4140 = vpop.f32.mrb[0].mxu0
      %v4141 = vpop.f32.mrb[0].mxu0
      %v4142 = vpop.f32.mrb[0].mxu0
      %4143 = vdwg.mxu0
      %v4144 = vadd.f32 %v3970, %v4139
      %s4145 = scalar_lea.vmem %s3, 2560
      %v4146 = vld [vmem:[%s4145] sm:$0xf]
      %v4147 = vld [vmem:[%s4145 + $0x4] sm:$0xf]
      %v4148 = vld [vmem:[%s4145 + $0x8] sm:$0xf]
      %v4149 = vld [vmem:[%s4145 + $0xc] sm:$0xf]
      %v4150 = vld [vmem:[%s4145 + $0x10] sm:$0xf]
      %v4151 = vld [vmem:[%s4145 + $0x14] sm:$0xf]
      %v4152 = vld [vmem:[%s4145 + $0x18] sm:$0xf]
      %v4153 = vld [vmem:[%s4145 + $0x1c] sm:$0xf]
      %v4154 = vld [vmem:[%s4145 + $0x20] sm:$0xf]
      %v4155 = vld [vmem:[%s4145 + $0x24] sm:$0xf]
      %v4156 = vld [vmem:[%s4145 + $0x28] sm:$0xf]
      %v4157 = vld [vmem:[%s4145 + $0x2c] sm:$0xf]
      %v4158 = vld [vmem:[%s4145 + $0x30] sm:$0xf]
      %v4159 = vld [vmem:[%s4145 + $0x34] sm:$0xf]
      %v4160 = vld [vmem:[%s4145 + $0x38] sm:$0xf]
      %v4161 = vld [vmem:[%s4145 + $0x3c] sm:$0xf]
      %v4162 = vld [vmem:[%s4145 + $0x40] sm:$0xf]
      %v4163 = vld [vmem:[%s4145 + $0x44] sm:$0xf]
      %v4164 = vld [vmem:[%s4145 + $0x48] sm:$0xf]
      %v4165 = vld [vmem:[%s4145 + $0x4c] sm:$0xf]
      %v4166 = vld [vmem:[%s4145 + $0x50] sm:$0xf]
      %v4167 = vld [vmem:[%s4145 + $0x54] sm:$0xf]
      %v4168 = vld [vmem:[%s4145 + $0x58] sm:$0xf]
      %v4169 = vld [vmem:[%s4145 + $0x5c] sm:$0xf]
      %v4170 = vld [vmem:[%s4145 + $0x60] sm:$0xf]
      %v4171 = vld [vmem:[%s4145 + $0x64] sm:$0xf]
      %v4172 = vld [vmem:[%s4145 + $0x68] sm:$0xf]
      %v4173 = vld [vmem:[%s4145 + $0x6c] sm:$0xf]
      %v4174 = vld [vmem:[%s4145 + $0x70] sm:$0xf]
      %v4175 = vld [vmem:[%s4145 + $0x74] sm:$0xf]
      %v4176 = vld [vmem:[%s4145 + $0x78] sm:$0xf]
      %v4177 = vld [vmem:[%s4145 + $0x7c] sm:$0xf]
      %v4178 = vrot.slane %v3445, 2
      %v4179 = vrot.slane %v3446, 2
      %v4214 = vunpack.c.l.b16 %v4146
      %v4215 = vunpack.c.l.b16 %v4147
      %v4216 = vunpack.c.l.b16 %v4148
      %v4217 = vunpack.c.l.b16 %v4149
      %v4218 = vunpack.c.l.b16 %v4150
      %v4219 = vunpack.c.l.b16 %v4151
      %v4220 = vunpack.c.l.b16 %v4152
      %v4221 = vunpack.c.l.b16 %v4153
      %v4222 = vunpack.c.l.b16 %v4154
      %v4223 = vunpack.c.l.b16 %v4155
      %v4224 = vunpack.c.l.b16 %v4156
      %v4225 = vunpack.c.l.b16 %v4157
      %v4226 = vunpack.c.l.b16 %v4158
      %v4227 = vunpack.c.l.b16 %v4159
      %v4228 = vunpack.c.l.b16 %v4160
      %v4229 = vunpack.c.l.b16 %v4161
      %v4230 = vunpack.c.l.b16 %v4162
      %v4231 = vunpack.c.l.b16 %v4163
      %v4232 = vunpack.c.l.b16 %v4164
      %v4233 = vunpack.c.l.b16 %v4165
      %v4234 = vunpack.c.l.b16 %v4166
      %v4235 = vunpack.c.l.b16 %v4167
      %v4236 = vunpack.c.l.b16 %v4168
      %v4237 = vunpack.c.l.b16 %v4169
      %v4238 = vunpack.c.l.b16 %v4170
      %v4239 = vunpack.c.l.b16 %v4171
      %v4240 = vunpack.c.l.b16 %v4172
      %v4241 = vunpack.c.l.b16 %v4173
      %v4242 = vunpack.c.l.b16 %v4174
      %v4243 = vunpack.c.l.b16 %v4175
      %v4244 = vunpack.c.l.b16 %v4176
      %v4245 = vunpack.c.l.b16 %v4177
      %v4246 = vpack.c.b16 %v4215, %v4214
      %v4247 = vpack.c.b16 %v4217, %v4216
      %v4248 = vpack.c.b16 %v4219, %v4218
      %v4249 = vpack.c.b16 %v4221, %v4220
      %v4250 = vpack.c.b16 %v4223, %v4222
      %v4251 = vpack.c.b16 %v4225, %v4224
      %v4252 = vpack.c.b16 %v4227, %v4226
      %v4253 = vpack.c.b16 %v4229, %v4228
      %v4254 = vpack.c.b16 %v4231, %v4230
      %v4255 = vpack.c.b16 %v4233, %v4232
      %v4256 = vpack.c.b16 %v4235, %v4234
      %v4257 = vpack.c.b16 %v4237, %v4236
      %v4258 = vpack.c.b16 %v4239, %v4238
      %v4259 = vpack.c.b16 %v4241, %v4240
      %v4260 = vpack.c.b16 %v4243, %v4242
      %v4261 = vpack.c.b16 %v4245, %v4244
      %4278 = vmatprep.subr.bf16.mxu0 0
      %4279 = vmatpush1.bf16.msra.mxu0 %v4246
      %4280 = vmatprep.subr.bf16.mxu0 0
      %4281 = vmatpush1.bf16.msra.mxu0 %v4247
      %4282 = vmatprep.subr.bf16.mxu0 0
      %4283 = vmatpush1.bf16.msra.mxu0 %v4248
      %4284 = vmatprep.subr.bf16.mxu0 0
      %4285 = vmatpush1.bf16.msra.mxu0 %v4249
      %4286 = vmatprep.subr.bf16.mxu0 0
      %4287 = vmatpush1.bf16.msra.mxu0 %v4250
      %4288 = vmatprep.subr.bf16.mxu0 0
      %4289 = vmatpush1.bf16.msra.mxu0 %v4251
      %4290 = vmatprep.subr.bf16.mxu0 0
      %4291 = vmatpush1.bf16.msra.mxu0 %v4252
      %4292 = vmatprep.subr.bf16.mxu0 0
      %4293 = vmatpush1.bf16.msra.mxu0 %v4253
      %4294 = vmatprep.subr.bf16.mxu0 0
      %4295 = vmatpush1.bf16.msra.mxu0 %v4254
      %4296 = vmatprep.subr.bf16.mxu0 0
      %4297 = vmatpush1.bf16.msra.mxu0 %v4255
      %4298 = vmatprep.subr.bf16.mxu0 0
      %4299 = vmatpush1.bf16.msra.mxu0 %v4256
      %4300 = vmatprep.subr.bf16.mxu0 0
      %4301 = vmatpush1.bf16.msra.mxu0 %v4257
      %4302 = vmatprep.subr.bf16.mxu0 0
      %4303 = vmatpush1.bf16.msra.mxu0 %v4258
      %4304 = vmatprep.subr.bf16.mxu0 0
      %4305 = vmatpush1.bf16.msra.mxu0 %v4259
      %4306 = vmatprep.subr.bf16.mxu0 0
      %4307 = vmatpush1.bf16.msra.mxu0 %v4260
      %4308 = vmatprep.subr.bf16.mxu0 0
      %4309 = vmatpush1.bf16.msra.mxu0 %v4261
      %4310 = vmatprep.mubr.bf16.mxu0 %v4179
      %4311 = vmatmul.mubr.bf16.gmra.mrb[0].mxu0 %v4178
      %v4312 = vpop.f32.mrb[0].mxu0
      %v4313 = vadd.f32 0.0, %v4312
      %v4314 = vpop.f32.mrb[0].mxu0
      %v4315 = vpop.f32.mrb[0].mxu0
      %v4316 = vpop.f32.mrb[0].mxu0
      %4317 = vdwg.mxu0
      %v4318 = vadd.f32 %v4144, %v4313
      %s4319 = scalar_lea.vmem %s3, 2688
      %v4320 = vld [vmem:[%s4319] sm:$0xf]
      %v4321 = vld [vmem:[%s4319 + $0x4] sm:$0xf]
      %v4322 = vld [vmem:[%s4319 + $0x8] sm:$0xf]
      %v4323 = vld [vmem:[%s4319 + $0xc] sm:$0xf]
      %v4324 = vld [vmem:[%s4319 + $0x10] sm:$0xf]
      %v4325 = vld [vmem:[%s4319 + $0x14] sm:$0xf]
      %v4326 = vld [vmem:[%s4319 + $0x18] sm:$0xf]
      %v4327 = vld [vmem:[%s4319 + $0x1c] sm:$0xf]
      %v4328 = vld [vmem:[%s4319 + $0x20] sm:$0xf]
      %v4329 = vld [vmem:[%s4319 + $0x24] sm:$0xf]
      %v4330 = vld [vmem:[%s4319 + $0x28] sm:$0xf]
      %v4331 = vld [vmem:[%s4319 + $0x2c] sm:$0xf]
      %v4332 = vld [vmem:[%s4319 + $0x30] sm:$0xf]
      %v4333 = vld [vmem:[%s4319 + $0x34] sm:$0xf]
      %v4334 = vld [vmem:[%s4319 + $0x38] sm:$0xf]
      %v4335 = vld [vmem:[%s4319 + $0x3c] sm:$0xf]
      %v4336 = vld [vmem:[%s4319 + $0x40] sm:$0xf]
      %v4337 = vld [vmem:[%s4319 + $0x44] sm:$0xf]
      %v4338 = vld [vmem:[%s4319 + $0x48] sm:$0xf]
      %v4339 = vld [vmem:[%s4319 + $0x4c] sm:$0xf]
      %v4340 = vld [vmem:[%s4319 + $0x50] sm:$0xf]
      %v4341 = vld [vmem:[%s4319 + $0x54] sm:$0xf]
      %v4342 = vld [vmem:[%s4319 + $0x58] sm:$0xf]
      %v4343 = vld [vmem:[%s4319 + $0x5c] sm:$0xf]
      %v4344 = vld [vmem:[%s4319 + $0x60] sm:$0xf]
      %v4345 = vld [vmem:[%s4319 + $0x64] sm:$0xf]
      %v4346 = vld [vmem:[%s4319 + $0x68] sm:$0xf]
      %v4347 = vld [vmem:[%s4319 + $0x6c] sm:$0xf]
      %v4348 = vld [vmem:[%s4319 + $0x70] sm:$0xf]
      %v4349 = vld [vmem:[%s4319 + $0x74] sm:$0xf]
      %v4350 = vld [vmem:[%s4319 + $0x78] sm:$0xf]
      %v4351 = vld [vmem:[%s4319 + $0x7c] sm:$0xf]
      %v4352 = vrot.slane %v3651, 2
      %v4353 = vrot.slane %v3654, 2
      %v4388 = vunpack.c.l.b16 %v4320
      %v4389 = vunpack.c.l.b16 %v4321
      %v4390 = vunpack.c.l.b16 %v4322
      %v4391 = vunpack.c.l.b16 %v4323
      %v4392 = vunpack.c.l.b16 %v4324
      %v4393 = vunpack.c.l.b16 %v4325
      %v4394 = vunpack.c.l.b16 %v4326
      %v4395 = vunpack.c.l.b16 %v4327
      %v4396 = vunpack.c.l.b16 %v4328
      %v4397 = vunpack.c.l.b16 %v4329
      %v4398 = vunpack.c.l.b16 %v4330
      %v4399 = vunpack.c.l.b16 %v4331
      %v4400 = vunpack.c.l.b16 %v4332
      %v4401 = vunpack.c.l.b16 %v4333
      %v4402 = vunpack.c.l.b16 %v4334
      %v4403 = vunpack.c.l.b16 %v4335
      %v4404 = vunpack.c.l.b16 %v4336
      %v4405 = vunpack.c.l.b16 %v4337
      %v4406 = vunpack.c.l.b16 %v4338
      %v4407 = vunpack.c.l.b16 %v4339
      %v4408 = vunpack.c.l.b16 %v4340
      %v4409 = vunpack.c.l.b16 %v4341
      %v4410 = vunpack.c.l.b16 %v4342
      %v4411 = vunpack.c.l.b16 %v4343
      %v4412 = vunpack.c.l.b16 %v4344
      %v4413 = vunpack.c.l.b16 %v4345
      %v4414 = vunpack.c.l.b16 %v4346
      %v4415 = vunpack.c.l.b16 %v4347
      %v4416 = vunpack.c.l.b16 %v4348
      %v4417 = vunpack.c.l.b16 %v4349
      %v4418 = vunpack.c.l.b16 %v4350
      %v4419 = vunpack.c.l.b16 %v4351
      %v4420 = vpack.c.b16 %v4389, %v4388
      %v4421 = vpack.c.b16 %v4391, %v4390
      %v4422 = vpack.c.b16 %v4393, %v4392
      %v4423 = vpack.c.b16 %v4395, %v4394
      %v4424 = vpack.c.b16 %v4397, %v4396
      %v4425 = vpack.c.b16 %v4399, %v4398
      %v4426 = vpack.c.b16 %v4401, %v4400
      %v4427 = vpack.c.b16 %v4403, %v4402
      %v4428 = vpack.c.b16 %v4405, %v4404
      %v4429 = vpack.c.b16 %v4407, %v4406
      %v4430 = vpack.c.b16 %v4409, %v4408
      %v4431 = vpack.c.b16 %v4411, %v4410
      %v4432 = vpack.c.b16 %v4413, %v4412
      %v4433 = vpack.c.b16 %v4415, %v4414
      %v4434 = vpack.c.b16 %v4417, %v4416
      %v4435 = vpack.c.b16 %v4419, %v4418
      %4452 = vmatprep.subr.bf16.mxu0 0
      %4453 = vmatpush1.bf16.msra.mxu0 %v4420
      %4454 = vmatprep.subr.bf16.mxu0 0
      %4455 = vmatpush1.bf16.msra.mxu0 %v4421
      %4456 = vmatprep.subr.bf16.mxu0 0
      %4457 = vmatpush1.bf16.msra.mxu0 %v4422
      %4458 = vmatprep.subr.bf16.mxu0 0
      %4459 = vmatpush1.bf16.msra.mxu0 %v4423
      %4460 = vmatprep.subr.bf16.mxu0 0
      %4461 = vmatpush1.bf16.msra.mxu0 %v4424
      %4462 = vmatprep.subr.bf16.mxu0 0
      %4463 = vmatpush1.bf16.msra.mxu0 %v4425
      %4464 = vmatprep.subr.bf16.mxu0 0
      %4465 = vmatpush1.bf16.msra.mxu0 %v4426
      %4466 = vmatprep.subr.bf16.mxu0 0
      %4467 = vmatpush1.bf16.msra.mxu0 %v4427
      %4468 = vmatprep.subr.bf16.mxu0 0
      %4469 = vmatpush1.bf16.msra.mxu0 %v4428
      %4470 = vmatprep.subr.bf16.mxu0 0
      %4471 = vmatpush1.bf16.msra.mxu0 %v4429
      %4472 = vmatprep.subr.bf16.mxu0 0
      %4473 = vmatpush1.bf16.msra.mxu0 %v4430
      %4474 = vmatprep.subr.bf16.mxu0 0
      %4475 = vmatpush1.bf16.msra.mxu0 %v4431
      %4476 = vmatprep.subr.bf16.mxu0 0
      %4477 = vmatpush1.bf16.msra.mxu0 %v4432
      %4478 = vmatprep.subr.bf16.mxu0 0
      %4479 = vmatpush1.bf16.msra.mxu0 %v4433
      %4480 = vmatprep.subr.bf16.mxu0 0
      %4481 = vmatpush1.bf16.msra.mxu0 %v4434
      %4482 = vmatprep.subr.bf16.mxu0 0
      %4483 = vmatpush1.bf16.msra.mxu0 %v4435
      %4484 = vmatprep.mubr.bf16.mxu0 %v4353
      %4485 = vmatmul.mubr.bf16.gmra.mrb[0].mxu0 %v4352
      %v4486 = vpop.f32.mrb[0].mxu0
      %v4487 = vadd.f32 0.0, %v4486
      %v4488 = vpop.f32.mrb[0].mxu0
      %v4489 = vpop.f32.mrb[0].mxu0
      %v4490 = vpop.f32.mrb[0].mxu0
      %4491 = vdwg.mxu0
      %v4492 = vadd.f32 %v4318, %v4487
      %s4493 = scalar_lea.vmem %s3, 2816
      %v4494 = vld [vmem:[%s4493] sm:$0xf]
      %v4495 = vld [vmem:[%s4493 + $0x4] sm:$0xf]
      %v4496 = vld [vmem:[%s4493 + $0x8] sm:$0xf]
      %v4497 = vld [vmem:[%s4493 + $0xc] sm:$0xf]
      %v4498 = vld [vmem:[%s4493 + $0x10] sm:$0xf]
      %v4499 = vld [vmem:[%s4493 + $0x14] sm:$0xf]
      %v4500 = vld [vmem:[%s4493 + $0x18] sm:$0xf]
      %v4501 = vld [vmem:[%s4493 + $0x1c] sm:$0xf]
      %v4502 = vld [vmem:[%s4493 + $0x20] sm:$0xf]
      %v4503 = vld [vmem:[%s4493 + $0x24] sm:$0xf]
      %v4504 = vld [vmem:[%s4493 + $0x28] sm:$0xf]
      %v4505 = vld [vmem:[%s4493 + $0x2c] sm:$0xf]
      %v4506 = vld [vmem:[%s4493 + $0x30] sm:$0xf]
      %v4507 = vld [vmem:[%s4493 + $0x34] sm:$0xf]
      %v4508 = vld [vmem:[%s4493 + $0x38] sm:$0xf]
      %v4509 = vld [vmem:[%s4493 + $0x3c] sm:$0xf]
      %v4510 = vld [vmem:[%s4493 + $0x40] sm:$0xf]
      %v4511 = vld [vmem:[%s4493 + $0x44] sm:$0xf]
      %v4512 = vld [vmem:[%s4493 + $0x48] sm:$0xf]
      %v4513 = vld [vmem:[%s4493 + $0x4c] sm:$0xf]
      %v4514 = vld [vmem:[%s4493 + $0x50] sm:$0xf]
      %v4515 = vld [vmem:[%s4493 + $0x54] sm:$0xf]
      %v4516 = vld [vmem:[%s4493 + $0x58] sm:$0xf]
      %v4517 = vld [vmem:[%s4493 + $0x5c] sm:$0xf]
      %v4518 = vld [vmem:[%s4493 + $0x60] sm:$0xf]
      %v4519 = vld [vmem:[%s4493 + $0x64] sm:$0xf]
      %v4520 = vld [vmem:[%s4493 + $0x68] sm:$0xf]
      %v4521 = vld [vmem:[%s4493 + $0x6c] sm:$0xf]
      %v4522 = vld [vmem:[%s4493 + $0x70] sm:$0xf]
      %v4523 = vld [vmem:[%s4493 + $0x74] sm:$0xf]
      %v4524 = vld [vmem:[%s4493 + $0x78] sm:$0xf]
      %v4525 = vld [vmem:[%s4493 + $0x7c] sm:$0xf]
      %v4526 = vrot.slane %v3445, 3
      %v4527 = vrot.slane %v3446, 3
      %v4562 = vunpack.c.l.b16 %v4494
      %v4563 = vunpack.c.l.b16 %v4495
      %v4564 = vunpack.c.l.b16 %v4496
      %v4565 = vunpack.c.l.b16 %v4497
      %v4566 = vunpack.c.l.b16 %v4498
      %v4567 = vunpack.c.l.b16 %v4499
      %v4568 = vunpack.c.l.b16 %v4500
      %v4569 = vunpack.c.l.b16 %v4501
      %v4570 = vunpack.c.l.b16 %v4502
      %v4571 = vunpack.c.l.b16 %v4503
      %v4572 = vunpack.c.l.b16 %v4504
      %v4573 = vunpack.c.l.b16 %v4505
      %v4574 = vunpack.c.l.b16 %v4506
      %v4575 = vunpack.c.l.b16 %v4507
      %v4576 = vunpack.c.l.b16 %v4508
      %v4577 = vunpack.c.l.b16 %v4509
      %v4578 = vunpack.c.l.b16 %v4510
      %v4579 = vunpack.c.l.b16 %v4511
      %v4580 = vunpack.c.l.b16 %v4512
      %v4581 = vunpack.c.l.b16 %v4513
      %v4582 = vunpack.c.l.b16 %v4514
      %v4583 = vunpack.c.l.b16 %v4515
      %v4584 = vunpack.c.l.b16 %v4516
      %v4585 = vunpack.c.l.b16 %v4517
      %v4586 = vunpack.c.l.b16 %v4518
      %v4587 = vunpack.c.l.b16 %v4519
      %v4588 = vunpack.c.l.b16 %v4520
      %v4589 = vunpack.c.l.b16 %v4521
      %v4590 = vunpack.c.l.b16 %v4522
      %v4591 = vunpack.c.l.b16 %v4523
      %v4592 = vunpack.c.l.b16 %v4524
      %v4593 = vunpack.c.l.b16 %v4525
      %v4594 = vpack.c.b16 %v4563, %v4562
      %v4595 = vpack.c.b16 %v4565, %v4564
      %v4596 = vpack.c.b16 %v4567, %v4566
      %v4597 = vpack.c.b16 %v4569, %v4568
      %v4598 = vpack.c.b16 %v4571, %v4570
      %v4599 = vpack.c.b16 %v4573, %v4572
      %v4600 = vpack.c.b16 %v4575, %v4574
      %v4601 = vpack.c.b16 %v4577, %v4576
      %v4602 = vpack.c.b16 %v4579, %v4578
      %v4603 = vpack.c.b16 %v4581, %v4580
      %v4604 = vpack.c.b16 %v4583, %v4582
      %v4605 = vpack.c.b16 %v4585, %v4584
      %v4606 = vpack.c.b16 %v4587, %v4586
      %v4607 = vpack.c.b16 %v4589, %v4588
      %v4608 = vpack.c.b16 %v4591, %v4590
      %v4609 = vpack.c.b16 %v4593, %v4592
      %4626 = vmatprep.subr.bf16.mxu0 0
      %4627 = vmatpush1.bf16.msra.mxu0 %v4594
      %4628 = vmatprep.subr.bf16.mxu0 0
      %4629 = vmatpush1.bf16.msra.mxu0 %v4595
      %4630 = vmatprep.subr.bf16.mxu0 0
      %4631 = vmatpush1.bf16.msra.mxu0 %v4596
      %4632 = vmatprep.subr.bf16.mxu0 0
      %4633 = vmatpush1.bf16.msra.mxu0 %v4597
      %4634 = vmatprep.subr.bf16.mxu0 0
      %4635 = vmatpush1.bf16.msra.mxu0 %v4598
      %4636 = vmatprep.subr.bf16.mxu0 0
      %4637 = vmatpush1.bf16.msra.mxu0 %v4599
      %4638 = vmatprep.subr.bf16.mxu0 0
      %4639 = vmatpush1.bf16.msra.mxu0 %v4600
      %4640 = vmatprep.subr.bf16.mxu0 0
      %4641 = vmatpush1.bf16.msra.mxu0 %v4601
      %4642 = vmatprep.subr.bf16.mxu0 0
      %4643 = vmatpush1.bf16.msra.mxu0 %v4602
      %4644 = vmatprep.subr.bf16.mxu0 0
      %4645 = vmatpush1.bf16.msra.mxu0 %v4603
      %4646 = vmatprep.subr.bf16.mxu0 0
      %4647 = vmatpush1.bf16.msra.mxu0 %v4604
      %4648 = vmatprep.subr.bf16.mxu0 0
      %4649 = vmatpush1.bf16.msra.mxu0 %v4605
      %4650 = vmatprep.subr.bf16.mxu0 0
      %4651 = vmatpush1.bf16.msra.mxu0 %v4606
      %4652 = vmatprep.subr.bf16.mxu0 0
      %4653 = vmatpush1.bf16.msra.mxu0 %v4607
      %4654 = vmatprep.subr.bf16.mxu0 0
      %4655 = vmatpush1.bf16.msra.mxu0 %v4608
      %4656 = vmatprep.subr.bf16.mxu0 0
      %4657 = vmatpush1.bf16.msra.mxu0 %v4609
      %4658 = vmatprep.mubr.bf16.mxu0 %v4527
      %4659 = vmatmul.mubr.bf16.gmra.mrb[0].mxu0 %v4526
      %v4660 = vpop.f32.mrb[0].mxu0
      %v4661 = vadd.f32 0.0, %v4660
      %v4662 = vpop.f32.mrb[0].mxu0
      %v4663 = vpop.f32.mrb[0].mxu0
      %v4664 = vpop.f32.mrb[0].mxu0
      %4665 = vdwg.mxu0
      %v4666 = vadd.f32 %v4492, %v4661
      %s4667 = scalar_lea.vmem %s3, 2944
      %v4668 = vld [vmem:[%s4667] sm:$0xf]
      %v4669 = vld [vmem:[%s4667 + $0x4] sm:$0xf]
      %v4670 = vld [vmem:[%s4667 + $0x8] sm:$0xf]
      %v4671 = vld [vmem:[%s4667 + $0xc] sm:$0xf]
      %v4672 = vld [vmem:[%s4667 + $0x10] sm:$0xf]
      %v4673 = vld [vmem:[%s4667 + $0x14] sm:$0xf]
      %v4674 = vld [vmem:[%s4667 + $0x18] sm:$0xf]
      %v4675 = vld [vmem:[%s4667 + $0x1c] sm:$0xf]
      %v4676 = vld [vmem:[%s4667 + $0x20] sm:$0xf]
      %v4677 = vld [vmem:[%s4667 + $0x24] sm:$0xf]
      %v4678 = vld [vmem:[%s4667 + $0x28] sm:$0xf]
      %v4679 = vld [vmem:[%s4667 + $0x2c] sm:$0xf]
      %v4680 = vld [vmem:[%s4667 + $0x30] sm:$0xf]
      %v4681 = vld [vmem:[%s4667 + $0x34] sm:$0xf]
      %v4682 = vld [vmem:[%s4667 + $0x38] sm:$0xf]
      %v4683 = vld [vmem:[%s4667 + $0x3c] sm:$0xf]
      %v4684 = vld [vmem:[%s4667 + $0x40] sm:$0xf]
      %v4685 = vld [vmem:[%s4667 + $0x44] sm:$0xf]
      %v4686 = vld [vmem:[%s4667 + $0x48] sm:$0xf]
      %v4687 = vld [vmem:[%s4667 + $0x4c] sm:$0xf]
      %v4688 = vld [vmem:[%s4667 + $0x50] sm:$0xf]
      %v4689 = vld [vmem:[%s4667 + $0x54] sm:$0xf]
      %v4690 = vld [vmem:[%s4667 + $0x58] sm:$0xf]
      %v4691 = vld [vmem:[%s4667 + $0x5c] sm:$0xf]
      %v4692 = vld [vmem:[%s4667 + $0x60] sm:$0xf]
      %v4693 = vld [vmem:[%s4667 + $0x64] sm:$0xf]
      %v4694 = vld [vmem:[%s4667 + $0x68] sm:$0xf]
      %v4695 = vld [vmem:[%s4667 + $0x6c] sm:$0xf]
      %v4696 = vld [vmem:[%s4667 + $0x70] sm:$0xf]
      %v4697 = vld [vmem:[%s4667 + $0x74] sm:$0xf]
      %v4698 = vld [vmem:[%s4667 + $0x78] sm:$0xf]
      %v4699 = vld [vmem:[%s4667 + $0x7c] sm:$0xf]
      %v4700 = vrot.slane %v3651, 3
      %v4701 = vrot.slane %v3654, 3
      %v4736 = vunpack.c.l.b16 %v4668
      %v4737 = vunpack.c.l.b16 %v4669
      %v4738 = vunpack.c.l.b16 %v4670
      %v4739 = vunpack.c.l.b16 %v4671
      %v4740 = vunpack.c.l.b16 %v4672
      %v4741 = vunpack.c.l.b16 %v4673
      %v4742 = vunpack.c.l.b16 %v4674
      %v4743 = vunpack.c.l.b16 %v4675
      %v4744 = vunpack.c.l.b16 %v4676
      %v4745 = vunpack.c.l.b16 %v4677
      %v4746 = vunpack.c.l.b16 %v4678
      %v4747 = vunpack.c.l.b16 %v4679
      %v4748 = vunpack.c.l.b16 %v4680
      %v4749 = vunpack.c.l.b16 %v4681
      %v4750 = vunpack.c.l.b16 %v4682
      %v4751 = vunpack.c.l.b16 %v4683
      %v4752 = vunpack.c.l.b16 %v4684
      %v4753 = vunpack.c.l.b16 %v4685
      %v4754 = vunpack.c.l.b16 %v4686
      %v4755 = vunpack.c.l.b16 %v4687
      %v4756 = vunpack.c.l.b16 %v4688
      %v4757 = vunpack.c.l.b16 %v4689
      %v4758 = vunpack.c.l.b16 %v4690
      %v4759 = vunpack.c.l.b16 %v4691
      %v4760 = vunpack.c.l.b16 %v4692
      %v4761 = vunpack.c.l.b16 %v4693
      %v4762 = vunpack.c.l.b16 %v4694
      %v4763 = vunpack.c.l.b16 %v4695
      %v4764 = vunpack.c.l.b16 %v4696
      %v4765 = vunpack.c.l.b16 %v4697
      %v4766 = vunpack.c.l.b16 %v4698
      %v4767 = vunpack.c.l.b16 %v4699
      %v4768 = vpack.c.b16 %v4737, %v4736
      %v4769 = vpack.c.b16 %v4739, %v4738
      %v4770 = vpack.c.b16 %v4741, %v4740
      %v4771 = vpack.c.b16 %v4743, %v4742
      %v4772 = vpack.c.b16 %v4745, %v4744
      %v4773 = vpack.c.b16 %v4747, %v4746
      %v4774 = vpack.c.b16 %v4749, %v4748
      %v4775 = vpack.c.b16 %v4751, %v4750
      %v4776 = vpack.c.b16 %v4753, %v4752
      %v4777 = vpack.c.b16 %v4755, %v4754
      %v4778 = vpack.c.b16 %v4757, %v4756
      %v4779 = vpack.c.b16 %v4759, %v4758
      %v4780 = vpack.c.b16 %v4761, %v4760
      %v4781 = vpack.c.b16 %v4763, %v4762
      %v4782 = vpack.c.b16 %v4765, %v4764
      %v4783 = vpack.c.b16 %v4767, %v4766
      %4800 = vmatprep.subr.bf16.mxu0 0
      %4801 = vmatpush1.bf16.msra.mxu0 %v4768
      %4802 = vmatprep.subr.bf16.mxu0 0
      %4803 = vmatpush1.bf16.msra.mxu0 %v4769
      %4804 = vmatprep.subr.bf16.mxu0 0
      %4805 = vmatpush1.bf16.msra.mxu0 %v4770
      %4806 = vmatprep.subr.bf16.mxu0 0
      %4807 = vmatpush1.bf16.msra.mxu0 %v4771
      %4808 = vmatprep.subr.bf16.mxu0 0
      %4809 = vmatpush1.bf16.msra.mxu0 %v4772
      %4810 = vmatprep.subr.bf16.mxu0 0
      %4811 = vmatpush1.bf16.msra.mxu0 %v4773
      %4812 = vmatprep.subr.bf16.mxu0 0
      %4813 = vmatpush1.bf16.msra.mxu0 %v4774
      %4814 = vmatprep.subr.bf16.mxu0 0
      %4815 = vmatpush1.bf16.msra.mxu0 %v4775
      %4816 = vmatprep.subr.bf16.mxu0 0
      %4817 = vmatpush1.bf16.msra.mxu0 %v4776
      %4818 = vmatprep.subr.bf16.mxu0 0
      %4819 = vmatpush1.bf16.msra.mxu0 %v4777
      %4820 = vmatprep.subr.bf16.mxu0 0
      %4821 = vmatpush1.bf16.msra.mxu0 %v4778
      %4822 = vmatprep.subr.bf16.mxu0 0
      %4823 = vmatpush1.bf16.msra.mxu0 %v4779
      %4824 = vmatprep.subr.bf16.mxu0 0
      %4825 = vmatpush1.bf16.msra.mxu0 %v4780
      %4826 = vmatprep.subr.bf16.mxu0 0
      %4827 = vmatpush1.bf16.msra.mxu0 %v4781
      %4828 = vmatprep.subr.bf16.mxu0 0
      %4829 = vmatpush1.bf16.msra.mxu0 %v4782
      %4830 = vmatprep.subr.bf16.mxu0 0
      %4831 = vmatpush1.bf16.msra.mxu0 %v4783
      %4832 = vmatprep.mubr.bf16.mxu0 %v4701
      %4833 = vmatmul.mubr.bf16.gmra.mrb[0].mxu0 %v4700
      %v4834 = vpop.f32.mrb[0].mxu0
      %v4835 = vadd.f32 0.0, %v4834
      %v4836 = vpop.f32.mrb[0].mxu0
      %v4837 = vpop.f32.mrb[0].mxu0
      %v4838 = vpop.f32.mrb[0].mxu0
      %4839 = vdwg.mxu0
      %v4840 = vadd.f32 %v4666, %v4835
      %v4841 = vpack.c.bf16 %v651, %v651
      %v4842 = vpack.c.bf16 %v652, %v652
      %s4843 = scalar_lea.vmem %s3, 3072
      %v4844 = vld [vmem:[%s4843] sm:$0xf]
      %v4845 = vld [vmem:[%s4843 + $0x4] sm:$0xf]
      %v4846 = vld [vmem:[%s4843 + $0x8] sm:$0xf]
      %v4847 = vld [vmem:[%s4843 + $0xc] sm:$0xf]
      %v4848 = vld [vmem:[%s4843 + $0x10] sm:$0xf]
      %v4849 = vld [vmem:[%s4843 + $0x14] sm:$0xf]
      %v4850 = vld [vmem:[%s4843 + $0x18] sm:$0xf]
      %v4851 = vld [vmem:[%s4843 + $0x1c] sm:$0xf]
      %v4852 = vld [vmem:[%s4843 + $0x20] sm:$0xf]
      %v4853 = vld [vmem:[%s4843 + $0x24] sm:$0xf]
      %v4854 = vld [vmem:[%s4843 + $0x28] sm:$0xf]
      %v4855 = vld [vmem:[%s4843 + $0x2c] sm:$0xf]
      %v4856 = vld [vmem:[%s4843 + $0x30] sm:$0xf]
      %v4857 = vld [vmem:[%s4843 + $0x34] sm:$0xf]
      %v4858 = vld [vmem:[%s4843 + $0x38] sm:$0xf]
      %v4859 = vld [vmem:[%s4843 + $0x3c] sm:$0xf]
      %v4860 = vld [vmem:[%s4843 + $0x40] sm:$0xf]
      %v4861 = vld [vmem:[%s4843 + $0x44] sm:$0xf]
      %v4862 = vld [vmem:[%s4843 + $0x48] sm:$0xf]
      %v4863 = vld [vmem:[%s4843 + $0x4c] sm:$0xf]
      %v4864 = vld [vmem:[%s4843 + $0x50] sm:$0xf]
      %v4865 = vld [vmem:[%s4843 + $0x54] sm:$0xf]
      %v4866 = vld [vmem:[%s4843 + $0x58] sm:$0xf]
      %v4867 = vld [vmem:[%s4843 + $0x5c] sm:$0xf]
      %v4868 = vld [vmem:[%s4843 + $0x60] sm:$0xf]
      %v4869 = vld [vmem:[%s4843 + $0x64] sm:$0xf]
      %v4870 = vld [vmem:[%s4843 + $0x68] sm:$0xf]
      %v4871 = vld [vmem:[%s4843 + $0x6c] sm:$0xf]
      %v4872 = vld [vmem:[%s4843 + $0x70] sm:$0xf]
      %v4873 = vld [vmem:[%s4843 + $0x74] sm:$0xf]
      %v4874 = vld [vmem:[%s4843 + $0x78] sm:$0xf]
      %v4875 = vld [vmem:[%s4843 + $0x7c] sm:$0xf]
      %v4908 = vunpack.c.l.b16 %v4844
      %v4909 = vunpack.c.l.b16 %v4845
      %v4910 = vunpack.c.l.b16 %v4846
      %v4911 = vunpack.c.l.b16 %v4847
      %v4912 = vunpack.c.l.b16 %v4848
      %v4913 = vunpack.c.l.b16 %v4849
      %v4914 = vunpack.c.l.b16 %v4850
      %v4915 = vunpack.c.l.b16 %v4851
      %v4916 = vunpack.c.l.b16 %v4852
      %v4917 = vunpack.c.l.b16 %v4853
      %v4918 = vunpack.c.l.b16 %v4854
      %v4919 = vunpack.c.l.b16 %v4855
      %v4920 = vunpack.c.l.b16 %v4856
      %v4921 = vunpack.c.l.b16 %v4857
      %v4922 = vunpack.c.l.b16 %v4858
      %v4923 = vunpack.c.l.b16 %v4859
      %v4924 = vunpack.c.l.b16 %v4860
      %v4925 = vunpack.c.l.b16 %v4861
      %v4926 = vunpack.c.l.b16 %v4862
      %v4927 = vunpack.c.l.b16 %v4863
      %v4928 = vunpack.c.l.b16 %v4864
      %v4929 = vunpack.c.l.b16 %v4865
      %v4930 = vunpack.c.l.b16 %v4866
      %v4931 = vunpack.c.l.b16 %v4867
      %v4932 = vunpack.c.l.b16 %v4868
      %v4933 = vunpack.c.l.b16 %v4869
      %v4934 = vunpack.c.l.b16 %v4870
      %v4935 = vunpack.c.l.b16 %v4871
      %v4936 = vunpack.c.l.b16 %v4872
      %v4937 = vunpack.c.l.b16 %v4873
      %v4938 = vunpack.c.l.b16 %v4874
      %v4939 = vunpack.c.l.b16 %v4875
      %v4940 = vpack.c.b16 %v4909, %v4908
      %v4941 = vpack.c.b16 %v4911, %v4910
      %v4942 = vpack.c.b16 %v4913, %v4912
      %v4943 = vpack.c.b16 %v4915, %v4914
      %v4944 = vpack.c.b16 %v4917, %v4916
      %v4945 = vpack.c.b16 %v4919, %v4918
      %v4946 = vpack.c.b16 %v4921, %v4920
      %v4947 = vpack.c.b16 %v4923, %v4922
      %v4948 = vpack.c.b16 %v4925, %v4924
      %v4949 = vpack.c.b16 %v4927, %v4926
      %v4950 = vpack.c.b16 %v4929, %v4928
      %v4951 = vpack.c.b16 %v4931, %v4930
      %v4952 = vpack.c.b16 %v4933, %v4932
      %v4953 = vpack.c.b16 %v4935, %v4934
      %v4954 = vpack.c.b16 %v4937, %v4936
      %v4955 = vpack.c.b16 %v4939, %v4938
      %4972 = vmatprep.subr.bf16.mxu0 0
      %4973 = vmatpush1.bf16.msra.mxu0 %v4940
      %4974 = vmatprep.subr.bf16.mxu0 0
      %4975 = vmatpush1.bf16.msra.mxu0 %v4941
      %4976 = vmatprep.subr.bf16.mxu0 0
      %4977 = vmatpush1.bf16.msra.mxu0 %v4942
      %4978 = vmatprep.subr.bf16.mxu0 0
      %4979 = vmatpush1.bf16.msra.mxu0 %v4943
      %4980 = vmatprep.subr.bf16.mxu0 0
      %4981 = vmatpush1.bf16.msra.mxu0 %v4944
      %4982 = vmatprep.subr.bf16.mxu0 0
      %4983 = vmatpush1.bf16.msra.mxu0 %v4945
      %4984 = vmatprep.subr.bf16.mxu0 0
      %4985 = vmatpush1.bf16.msra.mxu0 %v4946
      %4986 = vmatprep.subr.bf16.mxu0 0
      %4987 = vmatpush1.bf16.msra.mxu0 %v4947
      %4988 = vmatprep.subr.bf16.mxu0 0
      %4989 = vmatpush1.bf16.msra.mxu0 %v4948
      %4990 = vmatprep.subr.bf16.mxu0 0
      %4991 = vmatpush1.bf16.msra.mxu0 %v4949
      %4992 = vmatprep.subr.bf16.mxu0 0
      %4993 = vmatpush1.bf16.msra.mxu0 %v4950
      %4994 = vmatprep.subr.bf16.mxu0 0
      %4995 = vmatpush1.bf16.msra.mxu0 %v4951
      %4996 = vmatprep.subr.bf16.mxu0 0
      %4997 = vmatpush1.bf16.msra.mxu0 %v4952
      %4998 = vmatprep.subr.bf16.mxu0 0
      %4999 = vmatpush1.bf16.msra.mxu0 %v4953
      %5000 = vmatprep.subr.bf16.mxu0 0
      %5001 = vmatpush1.bf16.msra.mxu0 %v4954
      %5002 = vmatprep.subr.bf16.mxu0 0
      %5003 = vmatpush1.bf16.msra.mxu0 %v4955
      %5004 = vmatprep.mubr.bf16.mxu0 %v4842
      %5005 = vmatmul.mubr.bf16.gmra.mrb[0].mxu0 %v4841
      %v5006 = vpop.f32.mrb[0].mxu0
      %v5007 = vadd.f32 0.0, %v5006
      %v5008 = vpop.f32.mrb[0].mxu0
      %v5009 = vpop.f32.mrb[0].mxu0
      %v5010 = vpop.f32.mrb[0].mxu0
      %5011 = vdwg.mxu0
      %v5012 = vadd.f32 %v4840, %v5007
      %s5013 = scalar_lea.vmem %s3, 3200
      %v5014 = vld [vmem:[%s5013] sm:$0xf]
      %v5015 = vld [vmem:[%s5013 + $0x4] sm:$0xf]
      %v5016 = vld [vmem:[%s5013 + $0x8] sm:$0xf]
      %v5017 = vld [vmem:[%s5013 + $0xc] sm:$0xf]
      %v5018 = vld [vmem:[%s5013 + $0x10] sm:$0xf]
      %v5019 = vld [vmem:[%s5013 + $0x14] sm:$0xf]
      %v5020 = vld [vmem:[%s5013 + $0x18] sm:$0xf]
      %v5021 = vld [vmem:[%s5013 + $0x1c] sm:$0xf]
      %v5022 = vld [vmem:[%s5013 + $0x20] sm:$0xf]
      %v5023 = vld [vmem:[%s5013 + $0x24] sm:$0xf]
      %v5024 = vld [vmem:[%s5013 + $0x28] sm:$0xf]
      %v5025 = vld [vmem:[%s5013 + $0x2c] sm:$0xf]
      %v5026 = vld [vmem:[%s5013 + $0x30] sm:$0xf]
      %v5027 = vld [vmem:[%s5013 + $0x34] sm:$0xf]
      %v5028 = vld [vmem:[%s5013 + $0x38] sm:$0xf]
      %v5029 = vld [vmem:[%s5013 + $0x3c] sm:$0xf]
      %v5030 = vld [vmem:[%s5013 + $0x40] sm:$0xf]
      %v5031 = vld [vmem:[%s5013 + $0x44] sm:$0xf]
      %v5032 = vld [vmem:[%s5013 + $0x48] sm:$0xf]
      %v5033 = vld [vmem:[%s5013 + $0x4c] sm:$0xf]
      %v5034 = vld [vmem:[%s5013 + $0x50] sm:$0xf]
      %v5035 = vld [vmem:[%s5013 + $0x54] sm:$0xf]
      %v5036 = vld [vmem:[%s5013 + $0x58] sm:$0xf]
      %v5037 = vld [vmem:[%s5013 + $0x5c] sm:$0xf]
      %v5038 = vld [vmem:[%s5013 + $0x60] sm:$0xf]
      %v5039 = vld [vmem:[%s5013 + $0x64] sm:$0xf]
      %v5040 = vld [vmem:[%s5013 + $0x68] sm:$0xf]
      %v5041 = vld [vmem:[%s5013 + $0x6c] sm:$0xf]
      %v5042 = vld [vmem:[%s5013 + $0x70] sm:$0xf]
      %v5043 = vld [vmem:[%s5013 + $0x74] sm:$0xf]
      %v5044 = vld [vmem:[%s5013 + $0x78] sm:$0xf]
      %v5045 = vld [vmem:[%s5013 + $0x7c] sm:$0xf]
      %v5047 = vshrl.u32 %v4841, 16
      %v5050 = vshrl.u32 %v4842, 16
      %v5086 = vunpack.c.l.b16 %v5014
      %v5087 = vunpack.c.l.b16 %v5015
      %v5088 = vunpack.c.l.b16 %v5016
      %v5089 = vunpack.c.l.b16 %v5017
      %v5090 = vunpack.c.l.b16 %v5018
      %v5091 = vunpack.c.l.b16 %v5019
      %v5092 = vunpack.c.l.b16 %v5020
      %v5093 = vunpack.c.l.b16 %v5021
      %v5094 = vunpack.c.l.b16 %v5022
      %v5095 = vunpack.c.l.b16 %v5023
      %v5096 = vunpack.c.l.b16 %v5024
      %v5097 = vunpack.c.l.b16 %v5025
      %v5098 = vunpack.c.l.b16 %v5026
      %v5099 = vunpack.c.l.b16 %v5027
      %v5100 = vunpack.c.l.b16 %v5028
      %v5101 = vunpack.c.l.b16 %v5029
      %v5102 = vunpack.c.l.b16 %v5030
      %v5103 = vunpack.c.l.b16 %v5031
      %v5104 = vunpack.c.l.b16 %v5032
      %v5105 = vunpack.c.l.b16 %v5033
      %v5106 = vunpack.c.l.b16 %v5034
      %v5107 = vunpack.c.l.b16 %v5035
      %v5108 = vunpack.c.l.b16 %v5036
      %v5109 = vunpack.c.l.b16 %v5037
      %v5110 = vunpack.c.l.b16 %v5038
      %v5111 = vunpack.c.l.b16 %v5039
      %v5112 = vunpack.c.l.b16 %v5040
      %v5113 = vunpack.c.l.b16 %v5041
      %v5114 = vunpack.c.l.b16 %v5042
      %v5115 = vunpack.c.l.b16 %v5043
      %v5116 = vunpack.c.l.b16 %v5044
      %v5117 = vunpack.c.l.b16 %v5045
      %v5118 = vpack.c.b16 %v5087, %v5086
      %v5119 = vpack.c.b16 %v5089, %v5088
      %v5120 = vpack.c.b16 %v5091, %v5090
      %v5121 = vpack.c.b16 %v5093, %v5092
      %v5122 = vpack.c.b16 %v5095, %v5094
      %v5123 = vpack.c.b16 %v5097, %v5096
      %v5124 = vpack.c.b16 %v5099, %v5098
      %v5125 = vpack.c.b16 %v5101, %v5100
      %v5126 = vpack.c.b16 %v5103, %v5102
      %v5127 = vpack.c.b16 %v5105, %v5104
      %v5128 = vpack.c.b16 %v5107, %v5106
      %v5129 = vpack.c.b16 %v5109, %v5108
      %v5130 = vpack.c.b16 %v5111, %v5110
      %v5131 = vpack.c.b16 %v5113, %v5112
      %v5132 = vpack.c.b16 %v5115, %v5114
      %v5133 = vpack.c.b16 %v5117, %v5116
      %5150 = vmatprep.subr.bf16.mxu0 0
      %5151 = vmatpush1.bf16.msra.mxu0 %v5118
      %5152 = vmatprep.subr.bf16.mxu0 0
      %5153 = vmatpush1.bf16.msra.mxu0 %v5119
      %5154 = vmatprep.subr.bf16.mxu0 0
      %5155 = vmatpush1.bf16.msra.mxu0 %v5120
      %5156 = vmatprep.subr.bf16.mxu0 0
      %5157 = vmatpush1.bf16.msra.mxu0 %v5121
      %5158 = vmatprep.subr.bf16.mxu0 0
      %5159 = vmatpush1.bf16.msra.mxu0 %v5122
      %5160 = vmatprep.subr.bf16.mxu0 0
      %5161 = vmatpush1.bf16.msra.mxu0 %v5123
      %5162 = vmatprep.subr.bf16.mxu0 0
      %5163 = vmatpush1.bf16.msra.mxu0 %v5124
      %5164 = vmatprep.subr.bf16.mxu0 0
      %5165 = vmatpush1.bf16.msra.mxu0 %v5125
      %5166 = vmatprep.subr.bf16.mxu0 0
      %5167 = vmatpush1.bf16.msra.mxu0 %v5126
      %5168 = vmatprep.subr.bf16.mxu0 0
      %5169 = vmatpush1.bf16.msra.mxu0 %v5127
      %5170 = vmatprep.subr.bf16.mxu0 0
      %5171 = vmatpush1.bf16.msra.mxu0 %v5128
      %5172 = vmatprep.subr.bf16.mxu0 0
      %5173 = vmatpush1.bf16.msra.mxu0 %v5129
      %5174 = vmatprep.subr.bf16.mxu0 0
      %5175 = vmatpush1.bf16.msra.mxu0 %v5130
      %5176 = vmatprep.subr.bf16.mxu0 0
      %5177 = vmatpush1.bf16.msra.mxu0 %v5131
      %5178 = vmatprep.subr.bf16.mxu0 0
      %5179 = vmatpush1.bf16.msra.mxu0 %v5132
      %5180 = vmatprep.subr.bf16.mxu0 0
      %5181 = vmatpush1.bf16.msra.mxu0 %v5133
      %5182 = vmatprep.mubr.bf16.mxu0 %v5050
      %5183 = vmatmul.mubr.bf16.gmra.mrb[0].mxu0 %v5047
      %v5184 = vpop.f32.mrb[0].mxu0
      %v5185 = vadd.f32 0.0, %v5184
      %v5186 = vpop.f32.mrb[0].mxu0
      %v5187 = vpop.f32.mrb[0].mxu0
      %v5188 = vpop.f32.mrb[0].mxu0
      %5189 = vdwg.mxu0
      %v5190 = vadd.f32 %v5012, %v5185
      %s5191 = scalar_lea.vmem %s3, 3328
      %v5192 = vld [vmem:[%s5191] sm:$0xf]
      %v5193 = vld [vmem:[%s5191 + $0x4] sm:$0xf]
      %v5194 = vld [vmem:[%s5191 + $0x8] sm:$0xf]
      %v5195 = vld [vmem:[%s5191 + $0xc] sm:$0xf]
      %v5196 = vld [vmem:[%s5191 + $0x10] sm:$0xf]
      %v5197 = vld [vmem:[%s5191 + $0x14] sm:$0xf]
      %v5198 = vld [vmem:[%s5191 + $0x18] sm:$0xf]
      %v5199 = vld [vmem:[%s5191 + $0x1c] sm:$0xf]
      %v5200 = vld [vmem:[%s5191 + $0x20] sm:$0xf]
      %v5201 = vld [vmem:[%s5191 + $0x24] sm:$0xf]
      %v5202 = vld [vmem:[%s5191 + $0x28] sm:$0xf]
      %v5203 = vld [vmem:[%s5191 + $0x2c] sm:$0xf]
      %v5204 = vld [vmem:[%s5191 + $0x30] sm:$0xf]
      %v5205 = vld [vmem:[%s5191 + $0x34] sm:$0xf]
      %v5206 = vld [vmem:[%s5191 + $0x38] sm:$0xf]
      %v5207 = vld [vmem:[%s5191 + $0x3c] sm:$0xf]
      %v5208 = vld [vmem:[%s5191 + $0x40] sm:$0xf]
      %v5209 = vld [vmem:[%s5191 + $0x44] sm:$0xf]
      %v5210 = vld [vmem:[%s5191 + $0x48] sm:$0xf]
      %v5211 = vld [vmem:[%s5191 + $0x4c] sm:$0xf]
      %v5212 = vld [vmem:[%s5191 + $0x50] sm:$0xf]
      %v5213 = vld [vmem:[%s5191 + $0x54] sm:$0xf]
      %v5214 = vld [vmem:[%s5191 + $0x58] sm:$0xf]
      %v5215 = vld [vmem:[%s5191 + $0x5c] sm:$0xf]
      %v5216 = vld [vmem:[%s5191 + $0x60] sm:$0xf]
      %v5217 = vld [vmem:[%s5191 + $0x64] sm:$0xf]
      %v5218 = vld [vmem:[%s5191 + $0x68] sm:$0xf]
      %v5219 = vld [vmem:[%s5191 + $0x6c] sm:$0xf]
      %v5220 = vld [vmem:[%s5191 + $0x70] sm:$0xf]
      %v5221 = vld [vmem:[%s5191 + $0x74] sm:$0xf]
      %v5222 = vld [vmem:[%s5191 + $0x78] sm:$0xf]
      %v5223 = vld [vmem:[%s5191 + $0x7c] sm:$0xf]
      %v5226 = vrot.slane %v4841, 1
      %v5227 = vrot.slane %v4842, 1
      %v5262 = vunpack.c.l.b16 %v5192
      %v5263 = vunpack.c.l.b16 %v5193
      %v5264 = vunpack.c.l.b16 %v5194
      %v5265 = vunpack.c.l.b16 %v5195
      %v5266 = vunpack.c.l.b16 %v5196
      %v5267 = vunpack.c.l.b16 %v5197
      %v5268 = vunpack.c.l.b16 %v5198
      %v5269 = vunpack.c.l.b16 %v5199
      %v5270 = vunpack.c.l.b16 %v5200
      %v5271 = vunpack.c.l.b16 %v5201
      %v5272 = vunpack.c.l.b16 %v5202
      %v5273 = vunpack.c.l.b16 %v5203
      %v5274 = vunpack.c.l.b16 %v5204
      %v5275 = vunpack.c.l.b16 %v5205
      %v5276 = vunpack.c.l.b16 %v5206
      %v5277 = vunpack.c.l.b16 %v5207
      %v5278 = vunpack.c.l.b16 %v5208
      %v5279 = vunpack.c.l.b16 %v5209
      %v5280 = vunpack.c.l.b16 %v5210
      %v5281 = vunpack.c.l.b16 %v5211
      %v5282 = vunpack.c.l.b16 %v5212
      %v5283 = vunpack.c.l.b16 %v5213
      %v5284 = vunpack.c.l.b16 %v5214
      %v5285 = vunpack.c.l.b16 %v5215
      %v5286 = vunpack.c.l.b16 %v5216
      %v5287 = vunpack.c.l.b16 %v5217
      %v5288 = vunpack.c.l.b16 %v5218
      %v5289 = vunpack.c.l.b16 %v5219
      %v5290 = vunpack.c.l.b16 %v5220
      %v5291 = vunpack.c.l.b16 %v5221
      %v5292 = vunpack.c.l.b16 %v5222
      %v5293 = vunpack.c.l.b16 %v5223
      %v5294 = vpack.c.b16 %v5263, %v5262
      %v5295 = vpack.c.b16 %v5265, %v5264
      %v5296 = vpack.c.b16 %v5267, %v5266
      %v5297 = vpack.c.b16 %v5269, %v5268
      %v5298 = vpack.c.b16 %v5271, %v5270
      %v5299 = vpack.c.b16 %v5273, %v5272
      %v5300 = vpack.c.b16 %v5275, %v5274
      %v5301 = vpack.c.b16 %v5277, %v5276
      %v5302 = vpack.c.b16 %v5279, %v5278
      %v5303 = vpack.c.b16 %v5281, %v5280
      %v5304 = vpack.c.b16 %v5283, %v5282
      %v5305 = vpack.c.b16 %v5285, %v5284
      %v5306 = vpack.c.b16 %v5287, %v5286
      %v5307 = vpack.c.b16 %v5289, %v5288
      %v5308 = vpack.c.b16 %v5291, %v5290
      %v5309 = vpack.c.b16 %v5293, %v5292
      %5326 = vmatprep.subr.bf16.mxu0 0
      %5327 = vmatpush1.bf16.msra.mxu0 %v5294
      %5328 = vmatprep.subr.bf16.mxu0 0
      %5329 = vmatpush1.bf16.msra.mxu0 %v5295
      %5330 = vmatprep.subr.bf16.mxu0 0
      %5331 = vmatpush1.bf16.msra.mxu0 %v5296
      %5332 = vmatprep.subr.bf16.mxu0 0
      %5333 = vmatpush1.bf16.msra.mxu0 %v5297
      %5334 = vmatprep.subr.bf16.mxu0 0
      %5335 = vmatpush1.bf16.msra.mxu0 %v5298
      %5336 = vmatprep.subr.bf16.mxu0 0
      %5337 = vmatpush1.bf16.msra.mxu0 %v5299
      %5338 = vmatprep.subr.bf16.mxu0 0
      %5339 = vmatpush1.bf16.msra.mxu0 %v5300
      %5340 = vmatprep.subr.bf16.mxu0 0
      %5341 = vmatpush1.bf16.msra.mxu0 %v5301
      %5342 = vmatprep.subr.bf16.mxu0 0
      %5343 = vmatpush1.bf16.msra.mxu0 %v5302
      %5344 = vmatprep.subr.bf16.mxu0 0
      %5345 = vmatpush1.bf16.msra.mxu0 %v5303
      %5346 = vmatprep.subr.bf16.mxu0 0
      %5347 = vmatpush1.bf16.msra.mxu0 %v5304
      %5348 = vmatprep.subr.bf16.mxu0 0
      %5349 = vmatpush1.bf16.msra.mxu0 %v5305
      %5350 = vmatprep.subr.bf16.mxu0 0
      %5351 = vmatpush1.bf16.msra.mxu0 %v5306
      %5352 = vmatprep.subr.bf16.mxu0 0
      %5353 = vmatpush1.bf16.msra.mxu0 %v5307
      %5354 = vmatprep.subr.bf16.mxu0 0
      %5355 = vmatpush1.bf16.msra.mxu0 %v5308
      %5356 = vmatprep.subr.bf16.mxu0 0
      %5357 = vmatpush1.bf16.msra.mxu0 %v5309
      %5358 = vmatprep.mubr.bf16.mxu0 %v5227
      %5359 = vmatmul.mubr.bf16.gmra.mrb[0].mxu0 %v5226
      %v5360 = vpop.f32.mrb[0].mxu0
      %v5361 = vadd.f32 0.0, %v5360
      %v5362 = vpop.f32.mrb[0].mxu0
      %v5363 = vpop.f32.mrb[0].mxu0
      %v5364 = vpop.f32.mrb[0].mxu0
      %5365 = vdwg.mxu0
      %v5366 = vadd.f32 %v5190, %v5361
      %s5367 = scalar_lea.vmem %s3, 3456
      %v5368 = vld [vmem:[%s5367] sm:$0xf]
      %v5369 = vld [vmem:[%s5367 + $0x4] sm:$0xf]
      %v5370 = vld [vmem:[%s5367 + $0x8] sm:$0xf]
      %v5371 = vld [vmem:[%s5367 + $0xc] sm:$0xf]
      %v5372 = vld [vmem:[%s5367 + $0x10] sm:$0xf]
      %v5373 = vld [vmem:[%s5367 + $0x14] sm:$0xf]
      %v5374 = vld [vmem:[%s5367 + $0x18] sm:$0xf]
      %v5375 = vld [vmem:[%s5367 + $0x1c] sm:$0xf]
      %v5376 = vld [vmem:[%s5367 + $0x20] sm:$0xf]
      %v5377 = vld [vmem:[%s5367 + $0x24] sm:$0xf]
      %v5378 = vld [vmem:[%s5367 + $0x28] sm:$0xf]
      %v5379 = vld [vmem:[%s5367 + $0x2c] sm:$0xf]
      %v5380 = vld [vmem:[%s5367 + $0x30] sm:$0xf]
      %v5381 = vld [vmem:[%s5367 + $0x34] sm:$0xf]
      %v5382 = vld [vmem:[%s5367 + $0x38] sm:$0xf]
      %v5383 = vld [vmem:[%s5367 + $0x3c] sm:$0xf]
      %v5384 = vld [vmem:[%s5367 + $0x40] sm:$0xf]
      %v5385 = vld [vmem:[%s5367 + $0x44] sm:$0xf]
      %v5386 = vld [vmem:[%s5367 + $0x48] sm:$0xf]
      %v5387 = vld [vmem:[%s5367 + $0x4c] sm:$0xf]
      %v5388 = vld [vmem:[%s5367 + $0x50] sm:$0xf]
      %v5389 = vld [vmem:[%s5367 + $0x54] sm:$0xf]
      %v5390 = vld [vmem:[%s5367 + $0x58] sm:$0xf]
      %v5391 = vld [vmem:[%s5367 + $0x5c] sm:$0xf]
      %v5392 = vld [vmem:[%s5367 + $0x60] sm:$0xf]
      %v5393 = vld [vmem:[%s5367 + $0x64] sm:$0xf]
      %v5394 = vld [vmem:[%s5367 + $0x68] sm:$0xf]
      %v5395 = vld [vmem:[%s5367 + $0x6c] sm:$0xf]
      %v5396 = vld [vmem:[%s5367 + $0x70] sm:$0xf]
      %v5397 = vld [vmem:[%s5367 + $0x74] sm:$0xf]
      %v5398 = vld [vmem:[%s5367 + $0x78] sm:$0xf]
      %v5399 = vld [vmem:[%s5367 + $0x7c] sm:$0xf]
      %v5400 = vrot.slane %v5047, 1
      %v5401 = vrot.slane %v5050, 1
      %v5436 = vunpack.c.l.b16 %v5368
      %v5437 = vunpack.c.l.b16 %v5369
      %v5438 = vunpack.c.l.b16 %v5370
      %v5439 = vunpack.c.l.b16 %v5371
      %v5440 = vunpack.c.l.b16 %v5372
      %v5441 = vunpack.c.l.b16 %v5373
      %v5442 = vunpack.c.l.b16 %v5374
      %v5443 = vunpack.c.l.b16 %v5375
      %v5444 = vunpack.c.l.b16 %v5376
      %v5445 = vunpack.c.l.b16 %v5377
      %v5446 = vunpack.c.l.b16 %v5378
      %v5447 = vunpack.c.l.b16 %v5379
      %v5448 = vunpack.c.l.b16 %v5380
      %v5449 = vunpack.c.l.b16 %v5381
      %v5450 = vunpack.c.l.b16 %v5382
      %v5451 = vunpack.c.l.b16 %v5383
      %v5452 = vunpack.c.l.b16 %v5384
      %v5453 = vunpack.c.l.b16 %v5385
      %v5454 = vunpack.c.l.b16 %v5386
      %v5455 = vunpack.c.l.b16 %v5387
      %v5456 = vunpack.c.l.b16 %v5388
      %v5457 = vunpack.c.l.b16 %v5389
      %v5458 = vunpack.c.l.b16 %v5390
      %v5459 = vunpack.c.l.b16 %v5391
      %v5460 = vunpack.c.l.b16 %v5392
      %v5461 = vunpack.c.l.b16 %v5393
      %v5462 = vunpack.c.l.b16 %v5394
      %v5463 = vunpack.c.l.b16 %v5395
      %v5464 = vunpack.c.l.b16 %v5396
      %v5465 = vunpack.c.l.b16 %v5397
      %v5466 = vunpack.c.l.b16 %v5398
      %v5467 = vunpack.c.l.b16 %v5399
      %v5468 = vpack.c.b16 %v5437, %v5436
      %v5469 = vpack.c.b16 %v5439, %v5438
      %v5470 = vpack.c.b16 %v5441, %v5440
      %v5471 = vpack.c.b16 %v5443, %v5442
      %v5472 = vpack.c.b16 %v5445, %v5444
      %v5473 = vpack.c.b16 %v5447, %v5446
      %v5474 = vpack.c.b16 %v5449, %v5448
      %v5475 = vpack.c.b16 %v5451, %v5450
      %v5476 = vpack.c.b16 %v5453, %v5452
      %v5477 = vpack.c.b16 %v5455, %v5454
      %v5478 = vpack.c.b16 %v5457, %v5456
      %v5479 = vpack.c.b16 %v5459, %v5458
      %v5480 = vpack.c.b16 %v5461, %v5460
      %v5481 = vpack.c.b16 %v5463, %v5462
      %v5482 = vpack.c.b16 %v5465, %v5464
      %v5483 = vpack.c.b16 %v5467, %v5466
      %5500 = vmatprep.subr.bf16.mxu0 0
      %5501 = vmatpush1.bf16.msra.mxu0 %v5468
      %5502 = vmatprep.subr.bf16.mxu0 0
      %5503 = vmatpush1.bf16.msra.mxu0 %v5469
      %5504 = vmatprep.subr.bf16.mxu0 0
      %5505 = vmatpush1.bf16.msra.mxu0 %v5470
      %5506 = vmatprep.subr.bf16.mxu0 0
      %5507 = vmatpush1.bf16.msra.mxu0 %v5471
      %5508 = vmatprep.subr.bf16.mxu0 0
      %5509 = vmatpush1.bf16.msra.mxu0 %v5472
      %5510 = vmatprep.subr.bf16.mxu0 0
      %5511 = vmatpush1.bf16.msra.mxu0 %v5473
      %5512 = vmatprep.subr.bf16.mxu0 0
      %5513 = vmatpush1.bf16.msra.mxu0 %v5474
      %5514 = vmatprep.subr.bf16.mxu0 0
      %5515 = vmatpush1.bf16.msra.mxu0 %v5475
      %5516 = vmatprep.subr.bf16.mxu0 0
      %5517 = vmatpush1.bf16.msra.mxu0 %v5476
      %5518 = vmatprep.subr.bf16.mxu0 0
      %5519 = vmatpush1.bf16.msra.mxu0 %v5477
      %5520 = vmatprep.subr.bf16.mxu0 0
      %5521 = vmatpush1.bf16.msra.mxu0 %v5478
      %5522 = vmatprep.subr.bf16.mxu0 0
      %5523 = vmatpush1.bf16.msra.mxu0 %v5479
      %5524 = vmatprep.subr.bf16.mxu0 0
      %5525 = vmatpush1.bf16.msra.mxu0 %v5480
      %5526 = vmatprep.subr.bf16.mxu0 0
      %5527 = vmatpush1.bf16.msra.mxu0 %v5481
      %5528 = vmatprep.subr.bf16.mxu0 0
      %5529 = vmatpush1.bf16.msra.mxu0 %v5482
      %5530 = vmatprep.subr.bf16.mxu0 0
      %5531 = vmatpush1.bf16.msra.mxu0 %v5483
      %5532 = vmatprep.mubr.bf16.mxu0 %v5401
      %5533 = vmatmul.mubr.bf16.gmra.mrb[0].mxu0 %v5400
      %v5534 = vpop.f32.mrb[0].mxu0
      %v5535 = vadd.f32 0.0, %v5534
      %v5536 = vpop.f32.mrb[0].mxu0
      %v5537 = vpop.f32.mrb[0].mxu0
      %v5538 = vpop.f32.mrb[0].mxu0
      %5539 = vdwg.mxu0
      %v5540 = vadd.f32 %v5366, %v5535
      %s5541 = scalar_lea.vmem %s3, 3584
      %v5542 = vld [vmem:[%s5541] sm:$0xf]
      %v5543 = vld [vmem:[%s5541 + $0x4] sm:$0xf]
      %v5544 = vld [vmem:[%s5541 + $0x8] sm:$0xf]
      %v5545 = vld [vmem:[%s5541 + $0xc] sm:$0xf]
      %v5546 = vld [vmem:[%s5541 + $0x10] sm:$0xf]
      %v5547 = vld [vmem:[%s5541 + $0x14] sm:$0xf]
      %v5548 = vld [vmem:[%s5541 + $0x18] sm:$0xf]
      %v5549 = vld [vmem:[%s5541 + $0x1c] sm:$0xf]
      %v5550 = vld [vmem:[%s5541 + $0x20] sm:$0xf]
      %v5551 = vld [vmem:[%s5541 + $0x24] sm:$0xf]
      %v5552 = vld [vmem:[%s5541 + $0x28] sm:$0xf]
      %v5553 = vld [vmem:[%s5541 + $0x2c] sm:$0xf]
      %v5554 = vld [vmem:[%s5541 + $0x30] sm:$0xf]
      %v5555 = vld [vmem:[%s5541 + $0x34] sm:$0xf]
      %v5556 = vld [vmem:[%s5541 + $0x38] sm:$0xf]
      %v5557 = vld [vmem:[%s5541 + $0x3c] sm:$0xf]
      %v5558 = vld [vmem:[%s5541 + $0x40] sm:$0xf]
      %v5559 = vld [vmem:[%s5541 + $0x44] sm:$0xf]
      %v5560 = vld [vmem:[%s5541 + $0x48] sm:$0xf]
      %v5561 = vld [vmem:[%s5541 + $0x4c] sm:$0xf]
      %v5562 = vld [vmem:[%s5541 + $0x50] sm:$0xf]
      %v5563 = vld [vmem:[%s5541 + $0x54] sm:$0xf]
      %v5564 = vld [vmem:[%s5541 + $0x58] sm:$0xf]
      %v5565 = vld [vmem:[%s5541 + $0x5c] sm:$0xf]
      %v5566 = vld [vmem:[%s5541 + $0x60] sm:$0xf]
      %v5567 = vld [vmem:[%s5541 + $0x64] sm:$0xf]
      %v5568 = vld [vmem:[%s5541 + $0x68] sm:$0xf]
      %v5569 = vld [vmem:[%s5541 + $0x6c] sm:$0xf]
      %v5570 = vld [vmem:[%s5541 + $0x70] sm:$0xf]
      %v5571 = vld [vmem:[%s5541 + $0x74] sm:$0xf]
      %v5572 = vld [vmem:[%s5541 + $0x78] sm:$0xf]
      %v5573 = vld [vmem:[%s5541 + $0x7c] sm:$0xf]
      %v5574 = vrot.slane %v4841, 2
      %v5575 = vrot.slane %v4842, 2
      %v5610 = vunpack.c.l.b16 %v5542
      %v5611 = vunpack.c.l.b16 %v5543
      %v5612 = vunpack.c.l.b16 %v5544
      %v5613 = vunpack.c.l.b16 %v5545
      %v5614 = vunpack.c.l.b16 %v5546
      %v5615 = vunpack.c.l.b16 %v5547
      %v5616 = vunpack.c.l.b16 %v5548
      %v5617 = vunpack.c.l.b16 %v5549
      %v5618 = vunpack.c.l.b16 %v5550
      %v5619 = vunpack.c.l.b16 %v5551
      %v5620 = vunpack.c.l.b16 %v5552
      %v5621 = vunpack.c.l.b16 %v5553
      %v5622 = vunpack.c.l.b16 %v5554
      %v5623 = vunpack.c.l.b16 %v5555
      %v5624 = vunpack.c.l.b16 %v5556
      %v5625 = vunpack.c.l.b16 %v5557
      %v5626 = vunpack.c.l.b16 %v5558
      %v5627 = vunpack.c.l.b16 %v5559
      %v5628 = vunpack.c.l.b16 %v5560
      %v5629 = vunpack.c.l.b16 %v5561
      %v5630 = vunpack.c.l.b16 %v5562
      %v5631 = vunpack.c.l.b16 %v5563
      %v5632 = vunpack.c.l.b16 %v5564
      %v5633 = vunpack.c.l.b16 %v5565
      %v5634 = vunpack.c.l.b16 %v5566
      %v5635 = vunpack.c.l.b16 %v5567
      %v5636 = vunpack.c.l.b16 %v5568
      %v5637 = vunpack.c.l.b16 %v5569
      %v5638 = vunpack.c.l.b16 %v5570
      %v5639 = vunpack.c.l.b16 %v5571
      %v5640 = vunpack.c.l.b16 %v5572
      %v5641 = vunpack.c.l.b16 %v5573
      %v5642 = vpack.c.b16 %v5611, %v5610
      %v5643 = vpack.c.b16 %v5613, %v5612
      %v5644 = vpack.c.b16 %v5615, %v5614
      %v5645 = vpack.c.b16 %v5617, %v5616
      %v5646 = vpack.c.b16 %v5619, %v5618
      %v5647 = vpack.c.b16 %v5621, %v5620
      %v5648 = vpack.c.b16 %v5623, %v5622
      %v5649 = vpack.c.b16 %v5625, %v5624
      %v5650 = vpack.c.b16 %v5627, %v5626
      %v5651 = vpack.c.b16 %v5629, %v5628
      %v5652 = vpack.c.b16 %v5631, %v5630
      %v5653 = vpack.c.b16 %v5633, %v5632
      %v5654 = vpack.c.b16 %v5635, %v5634
      %v5655 = vpack.c.b16 %v5637, %v5636
      %v5656 = vpack.c.b16 %v5639, %v5638
      %v5657 = vpack.c.b16 %v5641, %v5640
      %5674 = vmatprep.subr.bf16.mxu0 0
      %5675 = vmatpush1.bf16.msra.mxu0 %v5642
      %5676 = vmatprep.subr.bf16.mxu0 0
      %5677 = vmatpush1.bf16.msra.mxu0 %v5643
      %5678 = vmatprep.subr.bf16.mxu0 0
      %5679 = vmatpush1.bf16.msra.mxu0 %v5644
      %5680 = vmatprep.subr.bf16.mxu0 0
      %5681 = vmatpush1.bf16.msra.mxu0 %v5645
      %5682 = vmatprep.subr.bf16.mxu0 0
      %5683 = vmatpush1.bf16.msra.mxu0 %v5646
      %5684 = vmatprep.subr.bf16.mxu0 0
      %5685 = vmatpush1.bf16.msra.mxu0 %v5647
      %5686 = vmatprep.subr.bf16.mxu0 0
      %5687 = vmatpush1.bf16.msra.mxu0 %v5648
      %5688 = vmatprep.subr.bf16.mxu0 0
      %5689 = vmatpush1.bf16.msra.mxu0 %v5649
      %5690 = vmatprep.subr.bf16.mxu0 0
      %5691 = vmatpush1.bf16.msra.mxu0 %v5650
      %5692 = vmatprep.subr.bf16.mxu0 0
      %5693 = vmatpush1.bf16.msra.mxu0 %v5651
      %5694 = vmatprep.subr.bf16.mxu0 0
      %5695 = vmatpush1.bf16.msra.mxu0 %v5652
      %5696 = vmatprep.subr.bf16.mxu0 0
      %5697 = vmatpush1.bf16.msra.mxu0 %v5653
      %5698 = vmatprep.subr.bf16.mxu0 0
      %5699 = vmatpush1.bf16.msra.mxu0 %v5654
      %5700 = vmatprep.subr.bf16.mxu0 0
      %5701 = vmatpush1.bf16.msra.mxu0 %v5655
      %5702 = vmatprep.subr.bf16.mxu0 0
      %5703 = vmatpush1.bf16.msra.mxu0 %v5656
      %5704 = vmatprep.subr.bf16.mxu0 0
      %5705 = vmatpush1.bf16.msra.mxu0 %v5657
      %5706 = vmatprep.mubr.bf16.mxu0 %v5575
      %5707 = vmatmul.mubr.bf16.gmra.mrb[0].mxu0 %v5574
      %v5708 = vpop.f32.mrb[0].mxu0
      %v5709 = vadd.f32 0.0, %v5708
      %v5710 = vpop.f32.mrb[0].mxu0
      %v5711 = vpop.f32.mrb[0].mxu0
      %v5712 = vpop.f32.mrb[0].mxu0
      %5713 = vdwg.mxu0
      %v5714 = vadd.f32 %v5540, %v5709
      %s5715 = scalar_lea.vmem %s3, 3712
      %v5716 = vld [vmem:[%s5715] sm:$0xf]
      %v5717 = vld [vmem:[%s5715 + $0x4] sm:$0xf]
      %v5718 = vld [vmem:[%s5715 + $0x8] sm:$0xf]
      %v5719 = vld [vmem:[%s5715 + $0xc] sm:$0xf]
      %v5720 = vld [vmem:[%s5715 + $0x10] sm:$0xf]
      %v5721 = vld [vmem:[%s5715 + $0x14] sm:$0xf]
      %v5722 = vld [vmem:[%s5715 + $0x18] sm:$0xf]
      %v5723 = vld [vmem:[%s5715 + $0x1c] sm:$0xf]
      %v5724 = vld [vmem:[%s5715 + $0x20] sm:$0xf]
      %v5725 = vld [vmem:[%s5715 + $0x24] sm:$0xf]
      %v5726 = vld [vmem:[%s5715 + $0x28] sm:$0xf]
      %v5727 = vld [vmem:[%s5715 + $0x2c] sm:$0xf]
      %v5728 = vld [vmem:[%s5715 + $0x30] sm:$0xf]
      %v5729 = vld [vmem:[%s5715 + $0x34] sm:$0xf]
      %v5730 = vld [vmem:[%s5715 + $0x38] sm:$0xf]
      %v5731 = vld [vmem:[%s5715 + $0x3c] sm:$0xf]
      %v5732 = vld [vmem:[%s5715 + $0x40] sm:$0xf]
      %v5733 = vld [vmem:[%s5715 + $0x44] sm:$0xf]
      %v5734 = vld [vmem:[%s5715 + $0x48] sm:$0xf]
      %v5735 = vld [vmem:[%s5715 + $0x4c] sm:$0xf]
      %v5736 = vld [vmem:[%s5715 + $0x50] sm:$0xf]
      %v5737 = vld [vmem:[%s5715 + $0x54] sm:$0xf]
      %v5738 = vld [vmem:[%s5715 + $0x58] sm:$0xf]
      %v5739 = vld [vmem:[%s5715 + $0x5c] sm:$0xf]
      %v5740 = vld [vmem:[%s5715 + $0x60] sm:$0xf]
      %v5741 = vld [vmem:[%s5715 + $0x64] sm:$0xf]
      %v5742 = vld [vmem:[%s5715 + $0x68] sm:$0xf]
      %v5743 = vld [vmem:[%s5715 + $0x6c] sm:$0xf]
      %v5744 = vld [vmem:[%s5715 + $0x70] sm:$0xf]
      %v5745 = vld [vmem:[%s5715 + $0x74] sm:$0xf]
      %v5746 = vld [vmem:[%s5715 + $0x78] sm:$0xf]
      %v5747 = vld [vmem:[%s5715 + $0x7c] sm:$0xf]
      %v5748 = vrot.slane %v5047, 2
      %v5749 = vrot.slane %v5050, 2
      %v5784 = vunpack.c.l.b16 %v5716
      %v5785 = vunpack.c.l.b16 %v5717
      %v5786 = vunpack.c.l.b16 %v5718
      %v5787 = vunpack.c.l.b16 %v5719
      %v5788 = vunpack.c.l.b16 %v5720
      %v5789 = vunpack.c.l.b16 %v5721
      %v5790 = vunpack.c.l.b16 %v5722
      %v5791 = vunpack.c.l.b16 %v5723
      %v5792 = vunpack.c.l.b16 %v5724
      %v5793 = vunpack.c.l.b16 %v5725
      %v5794 = vunpack.c.l.b16 %v5726
      %v5795 = vunpack.c.l.b16 %v5727
      %v5796 = vunpack.c.l.b16 %v5728
      %v5797 = vunpack.c.l.b16 %v5729
      %v5798 = vunpack.c.l.b16 %v5730
      %v5799 = vunpack.c.l.b16 %v5731
      %v5800 = vunpack.c.l.b16 %v5732
      %v5801 = vunpack.c.l.b16 %v5733
      %v5802 = vunpack.c.l.b16 %v5734
      %v5803 = vunpack.c.l.b16 %v5735
      %v5804 = vunpack.c.l.b16 %v5736
      %v5805 = vunpack.c.l.b16 %v5737
      %v5806 = vunpack.c.l.b16 %v5738
      %v5807 = vunpack.c.l.b16 %v5739
      %v5808 = vunpack.c.l.b16 %v5740
      %v5809 = vunpack.c.l.b16 %v5741
      %v5810 = vunpack.c.l.b16 %v5742
      %v5811 = vunpack.c.l.b16 %v5743
      %v5812 = vunpack.c.l.b16 %v5744
      %v5813 = vunpack.c.l.b16 %v5745
      %v5814 = vunpack.c.l.b16 %v5746
      %v5815 = vunpack.c.l.b16 %v5747
      %v5816 = vpack.c.b16 %v5785, %v5784
      %v5817 = vpack.c.b16 %v5787, %v5786
      %v5818 = vpack.c.b16 %v5789, %v5788
      %v5819 = vpack.c.b16 %v5791, %v5790
      %v5820 = vpack.c.b16 %v5793, %v5792
      %v5821 = vpack.c.b16 %v5795, %v5794
      %v5822 = vpack.c.b16 %v5797, %v5796
      %v5823 = vpack.c.b16 %v5799, %v5798
      %v5824 = vpack.c.b16 %v5801, %v5800
      %v5825 = vpack.c.b16 %v5803, %v5802
      %v5826 = vpack.c.b16 %v5805, %v5804
      %v5827 = vpack.c.b16 %v5807, %v5806
      %v5828 = vpack.c.b16 %v5809, %v5808
      %v5829 = vpack.c.b16 %v5811, %v5810
      %v5830 = vpack.c.b16 %v5813, %v5812
      %v5831 = vpack.c.b16 %v5815, %v5814
      %5848 = vmatprep.subr.bf16.mxu0 0
      %5849 = vmatpush1.bf16.msra.mxu0 %v5816
      %5850 = vmatprep.subr.bf16.mxu0 0
      %5851 = vmatpush1.bf16.msra.mxu0 %v5817
      %5852 = vmatprep.subr.bf16.mxu0 0
      %5853 = vmatpush1.bf16.msra.mxu0 %v5818
      %5854 = vmatprep.subr.bf16.mxu0 0
      %5855 = vmatpush1.bf16.msra.mxu0 %v5819
      %5856 = vmatprep.subr.bf16.mxu0 0
      %5857 = vmatpush1.bf16.msra.mxu0 %v5820
      %5858 = vmatprep.subr.bf16.mxu0 0
      %5859 = vmatpush1.bf16.msra.mxu0 %v5821
      %5860 = vmatprep.subr.bf16.mxu0 0
      %5861 = vmatpush1.bf16.msra.mxu0 %v5822
      %5862 = vmatprep.subr.bf16.mxu0 0
      %5863 = vmatpush1.bf16.msra.mxu0 %v5823
      %5864 = vmatprep.subr.bf16.mxu0 0
      %5865 = vmatpush1.bf16.msra.mxu0 %v5824
      %5866 = vmatprep.subr.bf16.mxu0 0
      %5867 = vmatpush1.bf16.msra.mxu0 %v5825
      %5868 = vmatprep.subr.bf16.mxu0 0
      %5869 = vmatpush1.bf16.msra.mxu0 %v5826
      %5870 = vmatprep.subr.bf16.mxu0 0
      %5871 = vmatpush1.bf16.msra.mxu0 %v5827
      %5872 = vmatprep.subr.bf16.mxu0 0
      %5873 = vmatpush1.bf16.msra.mxu0 %v5828
      %5874 = vmatprep.subr.bf16.mxu0 0
      %5875 = vmatpush1.bf16.msra.mxu0 %v5829
      %5876 = vmatprep.subr.bf16.mxu0 0
      %5877 = vmatpush1.bf16.msra.mxu0 %v5830
      %5878 = vmatprep.subr.bf16.mxu0 0
      %5879 = vmatpush1.bf16.msra.mxu0 %v5831
      %5880 = vmatprep.mubr.bf16.mxu0 %v5749
      %5881 = vmatmul.mubr.bf16.gmra.mrb[0].mxu0 %v5748
      %v5882 = vpop.f32.mrb[0].mxu0
      %v5883 = vadd.f32 0.0, %v5882
      %v5884 = vpop.f32.mrb[0].mxu0
      %v5885 = vpop.f32.mrb[0].mxu0
      %v5886 = vpop.f32.mrb[0].mxu0
      %5887 = vdwg.mxu0
      %v5888 = vadd.f32 %v5714, %v5883
      %s5889 = scalar_lea.vmem %s3, 3840
      %v5890 = vld [vmem:[%s5889] sm:$0xf]
      %v5891 = vld [vmem:[%s5889 + $0x4] sm:$0xf]
      %v5892 = vld [vmem:[%s5889 + $0x8] sm:$0xf]
      %v5893 = vld [vmem:[%s5889 + $0xc] sm:$0xf]
      %v5894 = vld [vmem:[%s5889 + $0x10] sm:$0xf]
      %v5895 = vld [vmem:[%s5889 + $0x14] sm:$0xf]
      %v5896 = vld [vmem:[%s5889 + $0x18] sm:$0xf]
      %v5897 = vld [vmem:[%s5889 + $0x1c] sm:$0xf]
      %v5898 = vld [vmem:[%s5889 + $0x20] sm:$0xf]
      %v5899 = vld [vmem:[%s5889 + $0x24] sm:$0xf]
      %v5900 = vld [vmem:[%s5889 + $0x28] sm:$0xf]
      %v5901 = vld [vmem:[%s5889 + $0x2c] sm:$0xf]
      %v5902 = vld [vmem:[%s5889 + $0x30] sm:$0xf]
      %v5903 = vld [vmem:[%s5889 + $0x34] sm:$0xf]
      %v5904 = vld [vmem:[%s5889 + $0x38] sm:$0xf]
      %v5905 = vld [vmem:[%s5889 + $0x3c] sm:$0xf]
      %v5906 = vld [vmem:[%s5889 + $0x40] sm:$0xf]
      %v5907 = vld [vmem:[%s5889 + $0x44] sm:$0xf]
      %v5908 = vld [vmem:[%s5889 + $0x48] sm:$0xf]
      %v5909 = vld [vmem:[%s5889 + $0x4c] sm:$0xf]
      %v5910 = vld [vmem:[%s5889 + $0x50] sm:$0xf]
      %v5911 = vld [vmem:[%s5889 + $0x54] sm:$0xf]
      %v5912 = vld [vmem:[%s5889 + $0x58] sm:$0xf]
      %v5913 = vld [vmem:[%s5889 + $0x5c] sm:$0xf]
      %v5914 = vld [vmem:[%s5889 + $0x60] sm:$0xf]
      %v5915 = vld [vmem:[%s5889 + $0x64] sm:$0xf]
      %v5916 = vld [vmem:[%s5889 + $0x68] sm:$0xf]
      %v5917 = vld [vmem:[%s5889 + $0x6c] sm:$0xf]
      %v5918 = vld [vmem:[%s5889 + $0x70] sm:$0xf]
      %v5919 = vld [vmem:[%s5889 + $0x74] sm:$0xf]
      %v5920 = vld [vmem:[%s5889 + $0x78] sm:$0xf]
      %v5921 = vld [vmem:[%s5889 + $0x7c] sm:$0xf]
      %v5922 = vrot.slane %v4841, 3
      %v5923 = vrot.slane %v4842, 3
      %v5958 = vunpack.c.l.b16 %v5890
      %v5959 = vunpack.c.l.b16 %v5891
      %v5960 = vunpack.c.l.b16 %v5892
      %v5961 = vunpack.c.l.b16 %v5893
      %v5962 = vunpack.c.l.b16 %v5894
      %v5963 = vunpack.c.l.b16 %v5895
      %v5964 = vunpack.c.l.b16 %v5896
      %v5965 = vunpack.c.l.b16 %v5897
      %v5966 = vunpack.c.l.b16 %v5898
      %v5967 = vunpack.c.l.b16 %v5899
      %v5968 = vunpack.c.l.b16 %v5900
      %v5969 = vunpack.c.l.b16 %v5901
      %v5970 = vunpack.c.l.b16 %v5902
      %v5971 = vunpack.c.l.b16 %v5903
      %v5972 = vunpack.c.l.b16 %v5904
      %v5973 = vunpack.c.l.b16 %v5905
      %v5974 = vunpack.c.l.b16 %v5906
      %v5975 = vunpack.c.l.b16 %v5907
      %v5976 = vunpack.c.l.b16 %v5908
      %v5977 = vunpack.c.l.b16 %v5909
      %v5978 = vunpack.c.l.b16 %v5910
      %v5979 = vunpack.c.l.b16 %v5911
      %v5980 = vunpack.c.l.b16 %v5912
      %v5981 = vunpack.c.l.b16 %v5913
      %v5982 = vunpack.c.l.b16 %v5914
      %v5983 = vunpack.c.l.b16 %v5915
      %v5984 = vunpack.c.l.b16 %v5916
      %v5985 = vunpack.c.l.b16 %v5917
      %v5986 = vunpack.c.l.b16 %v5918
      %v5987 = vunpack.c.l.b16 %v5919
      %v5988 = vunpack.c.l.b16 %v5920
      %v5989 = vunpack.c.l.b16 %v5921
      %v5990 = vpack.c.b16 %v5959, %v5958
      %v5991 = vpack.c.b16 %v5961, %v5960
      %v5992 = vpack.c.b16 %v5963, %v5962
      %v5993 = vpack.c.b16 %v5965, %v5964
      %v5994 = vpack.c.b16 %v5967, %v5966
      %v5995 = vpack.c.b16 %v5969, %v5968
      %v5996 = vpack.c.b16 %v5971, %v5970
      %v5997 = vpack.c.b16 %v5973, %v5972
      %v5998 = vpack.c.b16 %v5975, %v5974
      %v5999 = vpack.c.b16 %v5977, %v5976
      %v6000 = vpack.c.b16 %v5979, %v5978
      %v6001 = vpack.c.b16 %v5981, %v5980
      %v6002 = vpack.c.b16 %v5983, %v5982
      %v6003 = vpack.c.b16 %v5985, %v5984
      %v6004 = vpack.c.b16 %v5987, %v5986
      %v6005 = vpack.c.b16 %v5989, %v5988
      %6022 = vmatprep.subr.bf16.mxu0 0
      %6023 = vmatpush1.bf16.msra.mxu0 %v5990
      %6024 = vmatprep.subr.bf16.mxu0 0
      %6025 = vmatpush1.bf16.msra.mxu0 %v5991
      %6026 = vmatprep.subr.bf16.mxu0 0
      %6027 = vmatpush1.bf16.msra.mxu0 %v5992
      %6028 = vmatprep.subr.bf16.mxu0 0
      %6029 = vmatpush1.bf16.msra.mxu0 %v5993
      %6030 = vmatprep.subr.bf16.mxu0 0
      %6031 = vmatpush1.bf16.msra.mxu0 %v5994
      %6032 = vmatprep.subr.bf16.mxu0 0
      %6033 = vmatpush1.bf16.msra.mxu0 %v5995
      %6034 = vmatprep.subr.bf16.mxu0 0
      %6035 = vmatpush1.bf16.msra.mxu0 %v5996
      %6036 = vmatprep.subr.bf16.mxu0 0
      %6037 = vmatpush1.bf16.msra.mxu0 %v5997
      %6038 = vmatprep.subr.bf16.mxu0 0
      %6039 = vmatpush1.bf16.msra.mxu0 %v5998
      %6040 = vmatprep.subr.bf16.mxu0 0
      %6041 = vmatpush1.bf16.msra.mxu0 %v5999
      %6042 = vmatprep.subr.bf16.mxu0 0
      %6043 = vmatpush1.bf16.msra.mxu0 %v6000
      %6044 = vmatprep.subr.bf16.mxu0 0
      %6045 = vmatpush1.bf16.msra.mxu0 %v6001
      %6046 = vmatprep.subr.bf16.mxu0 0
      %6047 = vmatpush1.bf16.msra.mxu0 %v6002
      %6048 = vmatprep.subr.bf16.mxu0 0
      %6049 = vmatpush1.bf16.msra.mxu0 %v6003
      %6050 = vmatprep.subr.bf16.mxu0 0
      %6051 = vmatpush1.bf16.msra.mxu0 %v6004
      %6052 = vmatprep.subr.bf16.mxu0 0
      %6053 = vmatpush1.bf16.msra.mxu0 %v6005
      %6054 = vmatprep.mubr.bf16.mxu0 %v5923
      %6055 = vmatmul.mubr.bf16.gmra.mrb[0].mxu0 %v5922
      %v6056 = vpop.f32.mrb[0].mxu0
      %v6057 = vadd.f32 0.0, %v6056
      %v6058 = vpop.f32.mrb[0].mxu0
      %v6059 = vpop.f32.mrb[0].mxu0
      %v6060 = vpop.f32.mrb[0].mxu0
      %6061 = vdwg.mxu0
      %v6062 = vadd.f32 %v5888, %v6057
      %s6063 = scalar_lea.vmem %s3, 3968
      %v6064 = vld [vmem:[%s6063] sm:$0xf]
      %v6065 = vld [vmem:[%s6063 + $0x4] sm:$0xf]
      %v6066 = vld [vmem:[%s6063 + $0x8] sm:$0xf]
      %v6067 = vld [vmem:[%s6063 + $0xc] sm:$0xf]
      %v6068 = vld [vmem:[%s6063 + $0x10] sm:$0xf]
      %v6069 = vld [vmem:[%s6063 + $0x14] sm:$0xf]
      %v6070 = vld [vmem:[%s6063 + $0x18] sm:$0xf]
      %v6071 = vld [vmem:[%s6063 + $0x1c] sm:$0xf]
      %v6072 = vld [vmem:[%s6063 + $0x20] sm:$0xf]
      %v6073 = vld [vmem:[%s6063 + $0x24] sm:$0xf]
      %v6074 = vld [vmem:[%s6063 + $0x28] sm:$0xf]
      %v6075 = vld [vmem:[%s6063 + $0x2c] sm:$0xf]
      %v6076 = vld [vmem:[%s6063 + $0x30] sm:$0xf]
      %v6077 = vld [vmem:[%s6063 + $0x34] sm:$0xf]
      %v6078 = vld [vmem:[%s6063 + $0x38] sm:$0xf]
      %v6079 = vld [vmem:[%s6063 + $0x3c] sm:$0xf]
      %v6080 = vld [vmem:[%s6063 + $0x40] sm:$0xf]
      %v6081 = vld [vmem:[%s6063 + $0x44] sm:$0xf]
      %v6082 = vld [vmem:[%s6063 + $0x48] sm:$0xf]
      %v6083 = vld [vmem:[%s6063 + $0x4c] sm:$0xf]
      %v6084 = vld [vmem:[%s6063 + $0x50] sm:$0xf]
      %v6085 = vld [vmem:[%s6063 + $0x54] sm:$0xf]
      %v6086 = vld [vmem:[%s6063 + $0x58] sm:$0xf]
      %v6087 = vld [vmem:[%s6063 + $0x5c] sm:$0xf]
      %v6088 = vld [vmem:[%s6063 + $0x60] sm:$0xf]
      %v6089 = vld [vmem:[%s6063 + $0x64] sm:$0xf]
      %v6090 = vld [vmem:[%s6063 + $0x68] sm:$0xf]
      %v6091 = vld [vmem:[%s6063 + $0x6c] sm:$0xf]
      %v6092 = vld [vmem:[%s6063 + $0x70] sm:$0xf]
      %v6093 = vld [vmem:[%s6063 + $0x74] sm:$0xf]
      %v6094 = vld [vmem:[%s6063 + $0x78] sm:$0xf]
      %v6095 = vld [vmem:[%s6063 + $0x7c] sm:$0xf]
      %v6096 = vrot.slane %v5047, 3
      %v6097 = vrot.slane %v5050, 3
      %v6132 = vunpack.c.l.b16 %v6064
      %v6133 = vunpack.c.l.b16 %v6065
      %v6134 = vunpack.c.l.b16 %v6066
      %v6135 = vunpack.c.l.b16 %v6067
      %v6136 = vunpack.c.l.b16 %v6068
      %v6137 = vunpack.c.l.b16 %v6069
      %v6138 = vunpack.c.l.b16 %v6070
      %v6139 = vunpack.c.l.b16 %v6071
      %v6140 = vunpack.c.l.b16 %v6072
      %v6141 = vunpack.c.l.b16 %v6073
      %v6142 = vunpack.c.l.b16 %v6074
      %v6143 = vunpack.c.l.b16 %v6075
      %v6144 = vunpack.c.l.b16 %v6076
      %v6145 = vunpack.c.l.b16 %v6077
      %v6146 = vunpack.c.l.b16 %v6078
      %v6147 = vunpack.c.l.b16 %v6079
      %v6148 = vunpack.c.l.b16 %v6080
      %v6149 = vunpack.c.l.b16 %v6081
      %v6150 = vunpack.c.l.b16 %v6082
      %v6151 = vunpack.c.l.b16 %v6083
      %v6152 = vunpack.c.l.b16 %v6084
      %v6153 = vunpack.c.l.b16 %v6085
      %v6154 = vunpack.c.l.b16 %v6086
      %v6155 = vunpack.c.l.b16 %v6087
      %v6156 = vunpack.c.l.b16 %v6088
      %v6157 = vunpack.c.l.b16 %v6089
      %v6158 = vunpack.c.l.b16 %v6090
      %v6159 = vunpack.c.l.b16 %v6091
      %v6160 = vunpack.c.l.b16 %v6092
      %v6161 = vunpack.c.l.b16 %v6093
      %v6162 = vunpack.c.l.b16 %v6094
      %v6163 = vunpack.c.l.b16 %v6095
      %v6164 = vpack.c.b16 %v6133, %v6132
      %v6165 = vpack.c.b16 %v6135, %v6134
      %v6166 = vpack.c.b16 %v6137, %v6136
      %v6167 = vpack.c.b16 %v6139, %v6138
      %v6168 = vpack.c.b16 %v6141, %v6140
      %v6169 = vpack.c.b16 %v6143, %v6142
      %v6170 = vpack.c.b16 %v6145, %v6144
      %v6171 = vpack.c.b16 %v6147, %v6146
      %v6172 = vpack.c.b16 %v6149, %v6148
      %v6173 = vpack.c.b16 %v6151, %v6150
      %v6174 = vpack.c.b16 %v6153, %v6152
      %v6175 = vpack.c.b16 %v6155, %v6154
      %v6176 = vpack.c.b16 %v6157, %v6156
      %v6177 = vpack.c.b16 %v6159, %v6158
      %v6178 = vpack.c.b16 %v6161, %v6160
      %v6179 = vpack.c.b16 %v6163, %v6162
      %6196 = vmatprep.subr.bf16.mxu0 0
      %6197 = vmatpush1.bf16.msra.mxu0 %v6164
      %6198 = vmatprep.subr.bf16.mxu0 0
      %6199 = vmatpush1.bf16.msra.mxu0 %v6165
      %6200 = vmatprep.subr.bf16.mxu0 0
      %6201 = vmatpush1.bf16.msra.mxu0 %v6166
      %6202 = vmatprep.subr.bf16.mxu0 0
      %6203 = vmatpush1.bf16.msra.mxu0 %v6167
      %6204 = vmatprep.subr.bf16.mxu0 0
      %6205 = vmatpush1.bf16.msra.mxu0 %v6168
      %6206 = vmatprep.subr.bf16.mxu0 0
      %6207 = vmatpush1.bf16.msra.mxu0 %v6169
      %6208 = vmatprep.subr.bf16.mxu0 0
      %6209 = vmatpush1.bf16.msra.mxu0 %v6170
      %6210 = vmatprep.subr.bf16.mxu0 0
      %6211 = vmatpush1.bf16.msra.mxu0 %v6171
      %6212 = vmatprep.subr.bf16.mxu0 0
      %6213 = vmatpush1.bf16.msra.mxu0 %v6172
      %6214 = vmatprep.subr.bf16.mxu0 0
      %6215 = vmatpush1.bf16.msra.mxu0 %v6173
      %6216 = vmatprep.subr.bf16.mxu0 0
      %6217 = vmatpush1.bf16.msra.mxu0 %v6174
      %6218 = vmatprep.subr.bf16.mxu0 0
      %6219 = vmatpush1.bf16.msra.mxu0 %v6175
      %6220 = vmatprep.subr.bf16.mxu0 0
      %6221 = vmatpush1.bf16.msra.mxu0 %v6176
      %6222 = vmatprep.subr.bf16.mxu0 0
      %6223 = vmatpush1.bf16.msra.mxu0 %v6177
      %6224 = vmatprep.subr.bf16.mxu0 0
      %6225 = vmatpush1.bf16.msra.mxu0 %v6178
      %6226 = vmatprep.subr.bf16.mxu0 0
      %6227 = vmatpush1.bf16.msra.mxu0 %v6179
      %6228 = vmatprep.mubr.bf16.mxu0 %v6097
      %6229 = vmatmul.mubr.bf16.gmra.mrb[0].mxu0 %v6096
      %v6230 = vpop.f32.mrb[0].mxu0
      %v6231 = vadd.f32 0.0, %v6230
      %v6232 = vpop.f32.mrb[0].mxu0
      %v6233 = vpop.f32.mrb[0].mxu0
      %v6234 = vpop.f32.mrb[0].mxu0
      %6235 = vdwg.mxu0
      %v6236 = vadd.f32 %v6062, %v6231
      %v6237 = vmax.f32 %v6236, 0.0
      %v6238 = vld [vmem:[%s496] sm:$0x1]
      %v6239 = vld [vmem:[%s499] sm:$0x1]
      %v6240 = vld [vmem:[%s7] sm:$0xff]
      %v6241 = vld [vmem:[%s7 + $0x8] sm:$0xff]
      %v6242 = vld [vmem:[%s7 + $0x10] sm:$0xff]
      %v6243 = vld [vmem:[%s7 + $0x18] sm:$0xff]
      %v6244 = vld [vmem:[%s8] sm:$0xff]
      %v6245 = vld [vmem:[%s8 + $0x8] sm:$0xff]
      %v6246 = vld [vmem:[%s8 + $0x10] sm:$0xff]
      %v6247 = vld [vmem:[%s8 + $0x18] sm:$0xff]
      %vm6248 = vcmask 261120
      %v6250 = vsel %vm6248, %v6238, 0
      %6252 = vmatprep.subr.mxu0 0.0
      %6253 = vmatpush1.msra.mxu0 %v6244
      %6254 = vmatprep.subr.mxu0 0.0
      %6255 = vmatpush1.msra.mxu0 %v6245
      %6256 = vmatprep.subr.mxu0 0.0
      %6257 = vmatpush1.msra.mxu0 %v6246
      %6258 = vmatprep.subr.mxu0 0.0
      %6259 = vmatpush1.msra.mxu0 %v6247
      %6260 = vmatprep.subr.mxu0 0.0
      %6261 = vmatpush1.msra.mxu0 0.0
      %6262 = vmatprep.subr.mxu0 0.0
      %6263 = vmatpush1.msra.mxu0 0.0
      %6264 = vmatprep.subr.mxu0 0.0
      %6265 = vmatpush1.msra.mxu0 0.0
      %6266 = vmatprep.subr.mxu0 0.0
      %6267 = vmatpush1.msra.mxu0 0.0
      %6268 = vmatprep.subr.mxu0 0.0
      %6269 = vmatpush1.msra.mxu0 0.0
      %6270 = vmatprep.subr.mxu0 0.0
      %6271 = vmatpush1.msra.mxu0 0.0
      %6272 = vmatprep.subr.mxu0 0.0
      %6273 = vmatpush1.msra.mxu0 0.0
      %6274 = vmatprep.subr.mxu0 0.0
      %6275 = vmatpush1.msra.mxu0 0.0
      %6276 = vmatprep.subr.mxu0 0.0
      %6277 = vmatpush1.msra.mxu0 0.0
      %6278 = vmatprep.subr.mxu0 0.0
      %6279 = vmatpush1.msra.mxu0 0.0
      %6280 = vmatprep.subr.mxu0 0.0
      %6281 = vmatpush1.msra.mxu0 0.0
      %6282 = vmatprep.subr.mxu0 0.0
      %6283 = vmatpush1.msra.mxu0 0.0
      %6284 = vmatprep.subr.mxu0 0.0
      %6285 = vmatpush1.msra.mxu0 0.0
      %6286 = vmatprep.subr.mxu0 0.0
      %6287 = vmatpush1.msra.mxu0 0.0
      %6288 = vmatprep.subr.mxu0 0.0
      %6289 = vmatpush1.msra.mxu0 0.0
      %6290 = vmatprep.subr.mxu0 0.0
      %6291 = vmatpush1.msra.mxu0 0.0
      %6292 = vmatprep.subr.mxu0 0.0
      %6293 = vmatpush1.msra.mxu0 0.0
      %6294 = vmatprep.subr.mxu0 0.0
      %6295 = vmatpush1.msra.mxu0 0.0
      %6296 = vmatprep.subr.mxu0 0.0
      %6297 = vmatpush1.msra.mxu0 0.0
      %6298 = vmatprep.subr.mxu0 0.0
      %6299 = vmatpush1.msra.mxu0 0.0
      %6300 = vmatprep.subr.mxu0 0.0
      %6301 = vmatpush1.msra.mxu0 0.0
      %6302 = vmatprep.subr.mxu0 0.0
      %6303 = vmatpush1.msra.mxu0 0.0
      %6304 = vmatprep.subr.mxu0 0.0
      %6305 = vmatpush1.msra.mxu0 0.0
      %6306 = vmatprep.subr.mxu0 0.0
      %6307 = vmatpush1.msra.mxu0 0.0
      %6308 = vmatprep.subr.mxu0 0.0
      %6309 = vmatpush1.msra.mxu0 0.0
      %6310 = vmatprep.subr.mxu0 0.0
      %6311 = vmatpush1.msra.mxu0 0.0
      %6312 = vmatprep.subr.mxu0 0.0
      %6313 = vmatpush1.msra.mxu0 0.0
      %6314 = vmatprep.subr.mxu0 0.0
      %6315 = vmatpush1.msra.mxu0 0.0
      %6316 = vmatprep.mubr.f32.mxu0 0.0
      %6317 = vmatmul.mubr.f32.gmra.mrb[0].mxu0 %v6250
      %v6318 = vpop.f32.mrb[0].mxu0
      %v6319 = vadd.f32 0.0, %v6318
      %v6320 = vpop.f32.mrb[0].mxu0
      %6321 = vdwg.mxu0
      %v6323 = vsel %vm6248, %v6237, 0
      %6325 = vmatprep.subr.mxu0 0.0
      %6326 = vmatpush1.msra.mxu0 %v6240
      %6327 = vmatprep.subr.mxu0 0.0
      %6328 = vmatpush1.msra.mxu0 %v6241
      %6329 = vmatprep.subr.mxu0 0.0
      %6330 = vmatpush1.msra.mxu0 %v6242
      %6331 = vmatprep.subr.mxu0 0.0
      %6332 = vmatpush1.msra.mxu0 %v6243
      %6333 = vmatprep.subr.mxu0 0.0
      %6334 = vmatpush1.msra.mxu0 0.0
      %6335 = vmatprep.subr.mxu0 0.0
      %6336 = vmatpush1.msra.mxu0 0.0
      %6337 = vmatprep.subr.mxu0 0.0
      %6338 = vmatpush1.msra.mxu0 0.0
      %6339 = vmatprep.subr.mxu0 0.0
      %6340 = vmatpush1.msra.mxu0 0.0
      %6341 = vmatprep.subr.mxu0 0.0
      %6342 = vmatpush1.msra.mxu0 0.0
      %6343 = vmatprep.subr.mxu0 0.0
      %6344 = vmatpush1.msra.mxu0 0.0
      %6345 = vmatprep.subr.mxu0 0.0
      %6346 = vmatpush1.msra.mxu0 0.0
      %6347 = vmatprep.subr.mxu0 0.0
      %6348 = vmatpush1.msra.mxu0 0.0
      %6349 = vmatprep.subr.mxu0 0.0
      %6350 = vmatpush1.msra.mxu0 0.0
      %6351 = vmatprep.subr.mxu0 0.0
      %6352 = vmatpush1.msra.mxu0 0.0
      %6353 = vmatprep.subr.mxu0 0.0
      %6354 = vmatpush1.msra.mxu0 0.0
      %6355 = vmatprep.subr.mxu0 0.0
      %6356 = vmatpush1.msra.mxu0 0.0
      %6357 = vmatprep.subr.mxu0 0.0
      %6358 = vmatpush1.msra.mxu0 0.0
      %6359 = vmatprep.subr.mxu0 0.0
      %6360 = vmatpush1.msra.mxu0 0.0
      %6361 = vmatprep.subr.mxu0 0.0
      %6362 = vmatpush1.msra.mxu0 0.0
      %6363 = vmatprep.subr.mxu0 0.0
      %6364 = vmatpush1.msra.mxu0 0.0
      %6365 = vmatprep.subr.mxu0 0.0
      %6366 = vmatpush1.msra.mxu0 0.0
      %6367 = vmatprep.subr.mxu0 0.0
      %6368 = vmatpush1.msra.mxu0 0.0
      %6369 = vmatprep.subr.mxu0 0.0
      %6370 = vmatpush1.msra.mxu0 0.0
      %6371 = vmatprep.subr.mxu0 0.0
      %6372 = vmatpush1.msra.mxu0 0.0
      %6373 = vmatprep.subr.mxu0 0.0
      %6374 = vmatpush1.msra.mxu0 0.0
      %6375 = vmatprep.subr.mxu0 0.0
      %6376 = vmatpush1.msra.mxu0 0.0
      %6377 = vmatprep.subr.mxu0 0.0
      %6378 = vmatpush1.msra.mxu0 0.0
      %6379 = vmatprep.subr.mxu0 0.0
      %6380 = vmatpush1.msra.mxu0 0.0
      %6381 = vmatprep.subr.mxu0 0.0
      %6382 = vmatpush1.msra.mxu0 0.0
      %6383 = vmatprep.subr.mxu0 0.0
      %6384 = vmatpush1.msra.mxu0 0.0
      %6385 = vmatprep.subr.mxu0 0.0
      %6386 = vmatpush1.msra.mxu0 0.0
      %6387 = vmatprep.subr.mxu0 0.0
      %6388 = vmatpush1.msra.mxu0 0.0
      %6389 = vmatprep.mubr.f32.mxu0 0.0
      %6390 = vmatmul.mubr.f32.gmra.mrb[0].mxu0 %v6323
      %v6391 = vpop.f32.mrb[0].mxu0
      %v6392 = vadd.f32 %v6319, %v6391
      %v6393 = vpop.f32.mrb[0].mxu0
      %6394 = vdwg.mxu0
      %v6395 = vld [vmem:[%s9] sm:$0x1]
      %v6396 = vadd.f32 %v6392, %v6395
      %v6397 = vxor.u32 %v6396, 2147483648
      %v6398 = vmul.f32 %v6397, 1.442695
      %v6399 = vpow.pop %v6398
      %v6400 = vadd.f32 %v6399, 1.0
      %v6401 = vrcp.pop %v6400
      %v6402 = vmul.f32 1.0, %v6401
      %v6403 = vtanh.pop %v6396
      %v6405 = vlaneseq
      %v6406 = vshrl.u32 %v6405, 7
      %v6407 = vsub.s32 0, %v6406
      %v6408 = vrot.slane %v6239, %v6407
      %6409 = vrot.lane.b32.xlu0 %v6408, 32
      %v6410 = vpop.permute.xlu0 %6409
      %v6412 = vmul.f32 %v6402, %v6410
      %6414 = vrot.lane.b32.xlu0 %v6403, 64
      %v6415 = vpop.permute.xlu0 %6414
      %v6417 = vmul.f32 %v6402, %v6415
      %6419 = vrot.lane.b32.xlu0 %v6417, 32
      %v6420 = vpop.permute.xlu0 %6419
      %v6422 = vadd.f32 %v6412, %v6420
      %v6423 = vtanh.pop %v6422
      %6425 = vrot.lane.b32.xlu0 %v6423, 64
      %v6426 = vpop.permute.xlu0 %6425
      %v6428 = vmul.f32 %v6402, %v6426
      %6430 = vrot.lane.b32.xlu0 %v6428, 32
      %v6431 = vpop.permute.xlu0 %6430
      %vm6433 = vcmask 253952
      %6434 = vst.msk [vmem:[%s505] sm:$0x1] %vm6433, %v6431
      %6436 = vrot.lane.b32.xlu0 %v6422, 96
      %v6437 = vpop.permute.xlu0 %6436
      %6439 = vst.msk [vmem:[%s508] sm:$0x1] %vm6433, %v6437
      %v6440 = vld [vmem:[%s10] sm:$0xff]
      %v6441 = vld [vmem:[%s10 + $0x8] sm:$0xff]
      %v6442 = vld [vmem:[%s10 + $0x10] sm:$0xff]
      %v6443 = vld [vmem:[%s10 + $0x18] sm:$0xff]
      %v6444 = vld [vmem:[%s11] sm:$0x1]
      %v6445 = vsel %vm6248, %v6431, 0
      %6447 = vmatprep.subr.mxu0 0.0
      %6448 = vmatpush1.msra.mxu0 %v6440
      %6449 = vmatprep.subr.mxu0 0.0
      %6450 = vmatpush1.msra.mxu0 %v6441
      %6451 = vmatprep.subr.mxu0 0.0
      %6452 = vmatpush1.msra.mxu0 %v6442
      %6453 = vmatprep.subr.mxu0 0.0
      %6454 = vmatpush1.msra.mxu0 %v6443
      %6455 = vmatprep.subr.mxu0 0.0
      %6456 = vmatpush1.msra.mxu0 0.0
      %6457 = vmatprep.subr.mxu0 0.0
      %6458 = vmatpush1.msra.mxu0 0.0
      %6459 = vmatprep.subr.mxu0 0.0
      %6460 = vmatpush1.msra.mxu0 0.0
      %6461 = vmatprep.subr.mxu0 0.0
      %6462 = vmatpush1.msra.mxu0 0.0
      %6463 = vmatprep.subr.mxu0 0.0
      %6464 = vmatpush1.msra.mxu0 0.0
      %6465 = vmatprep.subr.mxu0 0.0
      %6466 = vmatpush1.msra.mxu0 0.0
      %6467 = vmatprep.subr.mxu0 0.0
      %6468 = vmatpush1.msra.mxu0 0.0
      %6469 = vmatprep.subr.mxu0 0.0
      %6470 = vmatpush1.msra.mxu0 0.0
      %6471 = vmatprep.subr.mxu0 0.0
      %6472 = vmatpush1.msra.mxu0 0.0
      %6473 = vmatprep.subr.mxu0 0.0
      %6474 = vmatpush1.msra.mxu0 0.0
      %6475 = vmatprep.subr.mxu0 0.0
      %6476 = vmatpush1.msra.mxu0 0.0
      %6477 = vmatprep.subr.mxu0 0.0
      %6478 = vmatpush1.msra.mxu0 0.0
      %6479 = vmatprep.subr.mxu0 0.0
      %6480 = vmatpush1.msra.mxu0 0.0
      %6481 = vmatprep.subr.mxu0 0.0
      %6482 = vmatpush1.msra.mxu0 0.0
      %6483 = vmatprep.subr.mxu0 0.0
      %6484 = vmatpush1.msra.mxu0 0.0
      %6485 = vmatprep.subr.mxu0 0.0
      %6486 = vmatpush1.msra.mxu0 0.0
      %6487 = vmatprep.subr.mxu0 0.0
      %6488 = vmatpush1.msra.mxu0 0.0
      %6489 = vmatprep.subr.mxu0 0.0
      %6490 = vmatpush1.msra.mxu0 0.0
      %6491 = vmatprep.subr.mxu0 0.0
      %6492 = vmatpush1.msra.mxu0 0.0
      %6493 = vmatprep.subr.mxu0 0.0
      %6494 = vmatpush1.msra.mxu0 0.0
      %6495 = vmatprep.subr.mxu0 0.0
      %6496 = vmatpush1.msra.mxu0 0.0
      %6497 = vmatprep.subr.mxu0 0.0
      %6498 = vmatpush1.msra.mxu0 0.0
      %6499 = vmatprep.subr.mxu0 0.0
      %6500 = vmatpush1.msra.mxu0 0.0
      %6501 = vmatprep.subr.mxu0 0.0
      %6502 = vmatpush1.msra.mxu0 0.0
      %6503 = vmatprep.subr.mxu0 0.0
      %6504 = vmatpush1.msra.mxu0 0.0
      %6505 = vmatprep.subr.mxu0 0.0
      %6506 = vmatpush1.msra.mxu0 0.0
      %6507 = vmatprep.subr.mxu0 0.0
      %6508 = vmatpush1.msra.mxu0 0.0
      %6509 = vmatprep.subr.mxu0 0.0
      %6510 = vmatpush1.msra.mxu0 0.0
      %6511 = vmatprep.mubr.f32.mxu0 0.0
      %6512 = vmatmul.mubr.f32.gmra.mrb[0].mxu0 %v6445
      %v6513 = vpop.f32.mrb[0].mxu0
      %v6514 = vadd.f32 %v6444, %v6513
      %v6515 = vpop.f32.mrb[0].mxu0
      %6516 = vdwg.mxu0
      %vm6517 = vcmask 114688
      %6518 = vst.msk [vmem:[%s502] sm:$0x1] %vm6517, %v6514
      %p6519 = scmp.lt.s32.totalorder %s26, 1
      %s6520 = scalar_select %p6519, %s26, 1
      %s6521 = scalar_lea.vmem %s12, %s6520
      %p6522 = scmp.lt.s32.totalorder %s26, 1
      %s6523 = scalar_select %p6522, %s26, 1
      %s6524 = scalar_lea.vmem %s13, %s6523
      %p6525 = scmp.lt.s32.totalorder %s26, 1
      %s6526 = scalar_select %p6525, %s26, 1
      %s6527 = scalar_lea.vmem %s14, %s6526
      // Predicated region
      $region69: #{pcg_policy_forward.1} parent=67 // pred_check
        %p6528 = pneg %p311
      $region70: #{pcg_policy_forward.1} parent=67 // pred_check_branch
        %6530 = sbr.rel (%p6528) target = $region72
      $region71: #{pcg_policy_forward.1} parent=67 // pred_region
        _
      $region72: #{pcg_policy_forward.1} parent=67 // pred_fallthru
        _
      // Predicated region
      $region73: #{pcg_policy_forward.1} parent=67 // pred_check
        %p6531 = pneg %p337
      $region74: #{pcg_policy_forward.1} parent=67 // pred_check_branch
        %6533 = sbr.rel (%p6531) target = $region76
      $region75: #{pcg_policy_forward.1} parent=67 // pred_region
        _
      $region76: #{pcg_policy_forward.1} parent=67 // pred_fallthru
        _
      // Predicated region
      $region77: #{pcg_policy_forward.1} parent=67 // pred_check
        %p6534 = pneg %p363
      $region78: #{pcg_policy_forward.1} parent=67 // pred_check_branch
        %6536 = sbr.rel (%p6534) target = $region80
      $region79: #{pcg_policy_forward.1} parent=67 // pred_region
        _
      $region80: #{pcg_policy_forward.1} parent=67 // pred_fallthru
        _
    $region68: #{pcg_policy_forward.1} parent=5 // pred_fallthru
      _
    %p6537 = scmp.le.s32.totalorder 2, %s21
    // Predicated region
    $region81: #{pcg_policy_forward.1} parent=5 // pred_check
      %p6538 = pneg %p6537
    $region82: #{pcg_policy_forward.1} parent=5 // pred_check_branch
      %6540 = sbr.rel (%p6538) target = $region84
    $region83: #{pcg_policy_forward.1} parent=5 // pred_region
      %s6541 = ssub.s32 %s21, 2
      // Predicated region
      $region85: #{pcg_policy_forward.1} parent=83 // pred_check
        %p6542 = pneg %p317
      $region86: #{pcg_policy_forward.1} parent=83 // pred_check_branch
        %6544 = sbr.rel (%p6542) target = $region88
      $region87: #{pcg_policy_forward.1} parent=83 // pred_region
        %p6545 = scmp.lt.s32.totalorder %s27, 1
        %s6546 = scalar_select %p6545, %s27, 1
        %s6547 = scalar_lea.vmem %s12, %s6546
      $region88: #{pcg_policy_forward.1} parent=83 // pred_fallthru
        _
      // Predicated region
      $region89: #{pcg_policy_forward.1} parent=83 // pred_check
        %p6548 = pneg %p343
      $region90: #{pcg_policy_forward.1} parent=83 // pred_check_branch
        %6550 = sbr.rel (%p6548) target = $region92
      $region91: #{pcg_policy_forward.1} parent=83 // pred_region
        %p6551 = scmp.lt.s32.totalorder %s27, 1
        %s6552 = scalar_select %p6551, %s27, 1
        %s6553 = scalar_lea.vmem %s13, %s6552
      $region92: #{pcg_policy_forward.1} parent=83 // pred_fallthru
        _
      // Predicated region
      $region93: #{pcg_policy_forward.1} parent=83 // pred_check
        %p6554 = pneg %p369
      $region94: #{pcg_policy_forward.1} parent=83 // pred_check_branch
        %6556 = sbr.rel (%p6554) target = $region96
      $region95: #{pcg_policy_forward.1} parent=83 // pred_region
        %p6557 = scmp.lt.s32.totalorder %s27, 1
        %s6558 = scalar_select %p6557, %s27, 1
        %s6559 = scalar_lea.vmem %s14, %s6558
      $region96: #{pcg_policy_forward.1} parent=83 // pred_fallthru
        _
    $region84: #{pcg_policy_forward.1} parent=5 // pred_fallthru
      _
  $region6: #{pcg_policy_forward.1} parent=0 // loop_footer
    %s25 = sadd.s32 1, %s21
  $region7: #{pcg_policy_forward.1} parent=0 // loop_footer_branch
    %20 = sbr.rel target = $region3
  $region8: #{pcg_policy_forward.1} parent=0 // loop_exit
    _

</llo_original>
